<compile_context>
chip_gen: v7x
topology: tpu7x:2x2x1
jax: 0.10.0
libtpu: 0.0.40
codegen_flags: <defaults>
</compile_context>

<pallas_src>
import functools
import math

import jax
import jax.numpy as jnp
from jax.experimental import pallas as pl
from jax.experimental.pallas import tpu as pltpu

# -------------------- config (small, consistent with BERTConfig) --------------------
VOCAB = 128
N_LAYERS = 2
MAX_SEQ = 8
D_MODEL = 32
N_HEADS = 4
D_HEAD = D_MODEL // N_HEADS
FFN = 64
PAD_IDX = 1
LN_EPS = 1e-12
INIT_RANGE = 0.02

VEC_LANES = 128  # lane width of the packed small-vector array (>= VOCAB)

# Row layout of the packed small-vector array `vecs` ((8 + 8*L, 128) f32).
ROW_EMB_LN_G, ROW_EMB_LN_B = 0, 1
ROW_FINAL_LN_G, ROW_FINAL_LN_B = 2, 3
ROW_LMH_DENSE_B, ROW_LMH_LN_G, ROW_LMH_LN_B, ROW_LMH_DEC_B = 4, 5, 6, 7
N_GLOBAL_ROWS = 8
# per-layer row offsets (base = N_GLOBAL_ROWS + ROWS_PER_LAYER * layer)
L_LN1_G, L_LN1_B, L_BQKV, L_BO, L_LN2_G, L_LN2_B, L_B1, L_B2 = range(8)
ROWS_PER_LAYER = 8


# -------------------------------- fused Pallas kernel --------------------------------
def _roberta_kernel(emb_ref, vec_ref, wqkvo_ref, w1_ref, w2_ref,
                    lmh_dense_w_ref, lmh_dec_w_ref,
                    logits_ref,
                    *, n_layers, seq, n_heads, d_head, eps):
    f32 = jnp.float32
    d_model = n_heads * d_head
    rows = emb_ref.shape[0]          # sequences-in-block * seq (static)
    bblk = rows // seq               # whole sequences folded into this block
    inv_sqrt2 = 1.0 / math.sqrt(2.0)

    vecs = vec_ref[...]              # one (8+8L, 128) load; statically sliced below

    def vrow(r, width):
        return vecs[r:r + 1, :width]     # (1, width) row; broadcasts over `rows`

    def layernorm(x, g, b):
        mu = jnp.mean(x, axis=-1, keepdims=True)
        var = jnp.mean((x - mu) ** 2, axis=-1, keepdims=True)
        return (x - mu) * jax.lax.rsqrt(var + eps) * g + b

    def gelu(x):  # exact (erf-based) GELU, matches HF hidden_act='gelu'
        return 0.5 * x * (1.0 + jax.lax.erf(x * inv_sqrt2))

    # (rows, D) activation block; everything stays f32 (VPU/EUP f32 on all gens).
    x = emb_ref[...]
    x = layernorm(x, vrow(ROW_EMB_LN_G, d_model), vrow(ROW_EMB_LN_B, d_model))

    for l in range(n_layers):        # static unroll; weights indexed by layer
        base = N_GLOBAL_ROWS + ROWS_PER_LAYER * l
        wqkvo = wqkvo_ref[l]                       # (D, 4D): [wq/sqrt(dh)|wk|wv|wo]
        wqkv = wqkvo[:, :3 * d_model]
        wo = wqkvo[:, 3 * d_model:]

        # ---------------- self-attention block (pre-LayerNorm) ----------------
        xn = layernorm(x, vrow(base + L_LN1_G, d_model), vrow(base + L_LN1_B, d_model))
        qkv = (jnp.dot(xn, wqkv, preferred_element_type=f32)
               + vrow(base + L_BQKV, 3 * d_model))                 # (rows, 3D)
        # Split back into whole sequences; attention never mixes sequences.
        q = qkv[:, :d_model].reshape(bblk, seq, d_model)
        k = qkv[:, d_model:2 * d_model].reshape(bblk, seq, d_model)
        v = qkv[:, 2 * d_model:].reshape(bblk, seq, d_model)
        ctx_heads = []
        for h in range(n_heads):     # static unroll; dots batched over sequences
            lo, hi = h * d_head, (h + 1) * d_head
            qh, kh, vh = q[:, :, lo:hi], k[:, :, lo:hi], v[:, :, lo:hi]
            # 1/sqrt(d_head) already folded into wq/bq at pack time.
            s = jnp.einsum('bqd,bkd->bqk', qh, kh, preferred_element_type=f32)
            m = jnp.max(s, axis=-1, keepdims=True)
            p = jnp.exp(s - m)
            p = p * pl.reciprocal(jnp.sum(p, axis=-1, keepdims=True), approx=False)
            ctx_heads.append(jnp.einsum('bqk,bkd->bqd', p, vh,
                                        preferred_element_type=f32))
        # concat heads -> single (rows, D) @ (D, D) output projection
        ctx = jnp.concatenate(ctx_heads, axis=-1).reshape(rows, d_model)
        x = x + jnp.dot(ctx, wo, preferred_element_type=f32) + vrow(base + L_BO, d_model)

        # ------------------------ FFN block (pre-LayerNorm) --------------------
        xn2 = layernorm(x, vrow(base + L_LN2_G, d_model), vrow(base + L_LN2_B, d_model))
        h1 = gelu(jnp.dot(xn2, w1_ref[l], preferred_element_type=f32)
                  + vrow(base + L_B1, w1_ref.shape[-1]))
        x = (x + jnp.dot(h1, w2_ref[l], preferred_element_type=f32)
             + vrow(base + L_B2, d_model))

    # ------------------- final LayerNorm + LM head -----------------------------
    x = layernorm(x, vrow(ROW_FINAL_LN_G, d_model), vrow(ROW_FINAL_LN_B, d_model))
    hh = gelu(jnp.dot(x, lmh_dense_w_ref[...], preferred_element_type=f32)
              + vrow(ROW_LMH_DENSE_B, d_model))
    hh = layernorm(hh, vrow(ROW_LMH_LN_G, d_model), vrow(ROW_LMH_LN_B, d_model))
    vocab = lmh_dec_w_ref.shape[-1]
    logits = (jnp.dot(hh, lmh_dec_w_ref[...], preferred_element_type=f32)
              + vrow(ROW_LMH_DEC_B, vocab))              # (rows, V=128) lane-dense
    logits_ref[...] = logits.astype(logits_ref.dtype)


# -------------------------------- parameter init ------------------------------------
def init_params(key):
    def normal(key, shape):
        return INIT_RANGE * jax.random.normal(key, shape, dtype=jnp.float32)

    keys = iter(jax.random.split(key, 64))
    p = {}
    word_emb = normal(next(keys), (VOCAB, D_MODEL)).at[PAD_IDX].set(0.0)
    pos_emb = normal(next(keys), (MAX_SEQ + 2, D_MODEL)).at[PAD_IDX].set(0.0)
    type_emb = normal(next(keys), (1, D_MODEL))
    p["word_emb"], p["pos_emb"], p["type_emb"] = word_emb, pos_emb, type_emb
    p["emb_ln_g"] = jnp.ones((D_MODEL,), jnp.float32)
    p["emb_ln_b"] = jnp.zeros((D_MODEL,), jnp.float32)

    layers = []
    for _ in range(N_LAYERS):
        lp = {
            "ln1_g": jnp.ones((D_MODEL,), jnp.float32),
            "ln1_b": jnp.zeros((D_MODEL,), jnp.float32),
            "wq": normal(next(keys), (D_MODEL, D_MODEL)),
            "bq": jnp.zeros((D_MODEL,), jnp.float32),
            "wk": normal(next(keys), (D_MODEL, D_MODEL)),
            "bk": jnp.zeros((D_MODEL,), jnp.float32),
            "wv": normal(next(keys), (D_MODEL, D_MODEL)),
            "bv": jnp.zeros((D_MODEL,), jnp.float32),
            "wo": normal(next(keys), (D_MODEL, D_MODEL)),
            "bo": jnp.zeros((D_MODEL,), jnp.float32),
            "ln2_g": jnp.ones((D_MODEL,), jnp.float32),
            "ln2_b": jnp.zeros((D_MODEL,), jnp.float32),
            "w1": normal(next(keys), (D_MODEL, FFN)),
            "b1": jnp.zeros((FFN,), jnp.float32),
            "w2": normal(next(keys), (FFN, D_MODEL)),
            "b2": jnp.zeros((D_MODEL,), jnp.float32),
        }
        layers.append(lp)
    p["layers"] = layers

    p["final_ln_g"] = jnp.ones((D_MODEL,), jnp.float32)
    p["final_ln_b"] = jnp.zeros((D_MODEL,), jnp.float32)

    p["lmh_dense_w"] = normal(next(keys), (D_MODEL, D_MODEL))
    p["lmh_dense_b"] = jnp.zeros((D_MODEL,), jnp.float32)
    p["lmh_ln_g"] = jnp.ones((D_MODEL,), jnp.float32)
    p["lmh_ln_b"] = jnp.zeros((D_MODEL,), jnp.float32)
    # lm_head decoder weight is TIED to word_emb (HF default); only its bias is free.
    p["lmh_dec_b"] = jnp.zeros((VOCAB,), jnp.float32)
    return p


def _pad_row(v, lanes=VEC_LANES):
    out = jnp.zeros((1, lanes), jnp.float32)
    return out.at[0, :v.shape[0]].set(v.astype(jnp.float32))


def pack_params(p):
    """One-time weight repack:
      * stack per-layer weights with a leading layer axis,
      * fuse [wq/sqrt(dh) | wk | wv | wo] into one lane-dense (D, 4D=128) matrix,
      * fold the attention scale into the Q projection (weight AND bias),
      * pack every small vector (all LN gammas/betas, all biases) into a single
        (8 + 8*L, 128) array -> one prologue DMA instead of 16 tiny padded ones,
      * tie the lm_head decoder weight to the word embedding (HF default)."""
    scale = 1.0 / math.sqrt(D_HEAD)
    rows = [
        _pad_row(p["emb_ln_g"]), _pad_row(p["emb_ln_b"]),
        _pad_row(p["final_ln_g"]), _pad_row(p["final_ln_b"]),
        _pad_row(p["lmh_dense_b"]), _pad_row(p["lmh_ln_g"]), _pad_row(p["lmh_ln_b"]),
        _pad_row(p["lmh_dec_b"]),
    ]
    wqkvo, w1s, w2s = [], [], []
    for lp in p["layers"]:
        rows += [
            _pad_row(lp["ln1_g"]), _pad_row(lp["ln1_b"]),
            _pad_row(jnp.concatenate([lp["bq"] * scale, lp["bk"], lp["bv"]])),
            _pad_row(lp["bo"]),
            _pad_row(lp["ln2_g"]), _pad_row(lp["ln2_b"]),
            _pad_row(lp["b1"]), _pad_row(lp["b2"]),
        ]
        wqkvo.append(jnp.concatenate(
            [lp["wq"] * scale, lp["wk"], lp["wv"], lp["wo"]], axis=1))   # (D, 4D)
        w1s.append(lp["w1"])
        w2s.append(lp["w2"])
    return {
        "word_emb": p["word_emb"],
        "pos_emb": p["pos_emb"],
        "type_emb": p["type_emb"],
        "vecs": jnp.concatenate(rows, axis=0),           # (8 + 8L, 128)
        "wqkvo": jnp.stack(wqkvo),                       # (L, D, 4D)
        "w1": jnp.stack(w1s),                            # (L, D, F)
        "w2": jnp.stack(w2s),                            # (L, F, D)
        "lmh_dense_w": p["lmh_dense_w"],                 # (D, D)
        "lmh_dec_w": p["word_emb"].T,                    # (D, V) tied decoder weight
    }


# -------------------------------- forward pass ---------------------------------------
def _resident_spec(shape):
    # Whole array in VMEM, same (zero) block index for every grid step => one DMA,
    # never re-fetched.  (pl.Buffered(1) would also drop the unused second buffer,
    # left at default: the whole resident weight set is < 200 KiB here.)
    nd = len(shape)
    return pl.BlockSpec(shape, lambda i, _nd=nd: (0,) * _nd)


def _cost_estimate(batch, seq, vec_rows):
    rows = batch * seq
    d, f, v, h, dh = D_MODEL, FFN, VOCAB, N_HEADS, D_HEAD
    per_layer = (2 * rows * d * 3 * d                    # fused QKV projection
                 + 4 * batch * h * seq * seq * dh        # scores + ctx
                 + 2 * rows * d * d                      # output projection
                 + 2 * rows * d * f + 2 * rows * f * d)  # FFN
    flops = N_LAYERS * per_layer + 2 * rows * d * d + 2 * rows * d * v
    transcendentals = (N_LAYERS * (batch * h * seq * seq + rows * f)   # exp + gelu
                       + rows * d                                      # lm-head gelu
                       + rows * (2 * N_LAYERS + 4))                    # LN rsqrt
    weight_bytes = 4 * (vec_rows * VEC_LANES
                        + N_LAYERS * (d * 4 * d + d * f + f * d)
                        + d * d + d * v)
    bytes_accessed = 4 * rows * (d + v) + weight_bytes
    return pl.CostEstimate(flops=flops, transcendentals=transcendentals,
                           bytes_accessed=bytes_accessed)


def roberta_prelayernorm_mlm(packed, input_ids):
    batch, seq = input_ids.shape

    # Embedding gathers + Roberta position ids stay in plain JAX glue.
    # TODO(synk): data-dependent embedding gather has no clean Pallas equivalent here.
    mask = (input_ids != PAD_IDX).astype(jnp.int32)
    position_ids = jnp.cumsum(mask, axis=1) * mask + PAD_IDX
    emb = (packed["word_emb"][input_ids]
           + packed["pos_emb"][position_ids]
           + packed["type_emb"][0]).astype(jnp.float32)             # (B, S, D)

    # Fold batch rows into the sublane axis: (B, S, D) -> (B*S, D).  Keep 2 grid
    # steps when the batch splits evenly so both v7x TensorCores get work
    # (sequential-loop noop on v5e/v6e); each step still pushes several sequences'
    # rows through one set of matmuls.
    total_rows = batch * seq
    n_blocks = 2 if (batch % 2 == 0 and batch >= 2) else 1
    rows_per_block = total_rows // n_blocks
    emb2d = emb.reshape(total_rows, D_MODEL)

    weights = (packed["vecs"], packed["wqkvo"], packed["w1"], packed["w2"],
               packed["lmh_dense_w"], packed["lmh_dec_w"])

    kernel = functools.partial(
        _roberta_kernel,
        n_layers=N_LAYERS, seq=seq, n_heads=N_HEADS, d_head=D_HEAD, eps=LN_EPS)

    logits = pl.pallas_call(
        kernel,
        out_shape=jax.ShapeDtypeStruct((total_rows, VOCAB), jnp.float32),
        grid=(n_blocks,),
        in_specs=[pl.BlockSpec((rows_per_block, D_MODEL), lambda i: (i, 0))]
                 + [_resident_spec(w.shape) for w in weights],
        out_specs=pl.BlockSpec((rows_per_block, VOCAB), lambda i: (i, 0)),
        compiler_params=pltpu.CompilerParams(
            dimension_semantics=("parallel",),
            vmem_limit_bytes=4 * 1024 * 1024),   # true footprint ~200 KiB
        cost_estimate=_cost_estimate(batch, seq, packed["vecs"].shape[0]),
    )(emb2d, *weights)
    return logits.reshape(batch, seq, VOCAB)


# ------------------------------------ main --------------------------------------------
if __name__ == "__main__":
    key = jax.random.PRNGKey(0)
    k_param, k_ids = jax.random.split(key)
    params = init_params(k_param)
    packed = pack_params(params)   # one-time weight repack (stack/fuse/pack/tie)

    # 4 small sequences -> 2 parallel grid steps of 16 folded rows each.
    batch, seq = 4, MAX_SEQ
    input_ids = jax.random.randint(k_ids, (batch, seq), 0, VOCAB, dtype=jnp.int32)

    logits = jax.jit(roberta_prelayernorm_mlm)(packed, input_ids)
    jax.block_until_ready(logits)
    assert logits.shape == (batch, seq, VOCAB)
    assert bool(jnp.all(jnp.isfinite(logits)))
    print("KERNEL_OK")
</pallas_src>

<mosaic_0001>
module attributes {stable_mosaic.version = 11 : i64} {
  func.func @_roberta_kernel(%arg0: i32, %arg1: memref<16x32xf32, #tpu.memory_space<vmem>>, %arg2: memref<24x128xf32, #tpu.memory_space<vmem>>, %arg3: memref<2x32x128xf32, #tpu.memory_space<vmem>>, %arg4: memref<2x32x64xf32, #tpu.memory_space<vmem>>, %arg5: memref<2x64x32xf32, #tpu.memory_space<vmem>>, %arg6: memref<32x32xf32, #tpu.memory_space<vmem>>, %arg7: memref<32x128xf32, #tpu.memory_space<vmem>>, %arg8: memref<16x128xf32, #tpu.memory_space<vmem>>) attributes {dimension_semantics = [#tpu.dimension_semantics<parallel>], iteration_bounds = array<i64: 2>, scalar_prefetch = 0 : i64, scratch_operands = 0 : i64, tpu.core_type = #tpu.core_type<tc>, window_params = [{transform_indices = @transform_0, window_bounds = array<i64: 16, 32>}, {pipeline_mode = #tpu.pipeline_mode<synchronous>, transform_indices = @transform_1, window_bounds = array<i64: 24, 128>}, {pipeline_mode = #tpu.pipeline_mode<synchronous>, transform_indices = @transform_2, window_bounds = array<i64: 2, 32, 128>}, {pipeline_mode = #tpu.pipeline_mode<synchronous>, transform_indices = @transform_3, window_bounds = array<i64: 2, 32, 64>}, {pipeline_mode = #tpu.pipeline_mode<synchronous>, transform_indices = @transform_4, window_bounds = array<i64: 2, 64, 32>}, {pipeline_mode = #tpu.pipeline_mode<synchronous>, transform_indices = @transform_5, window_bounds = array<i64: 32, 32>}, {pipeline_mode = #tpu.pipeline_mode<synchronous>, transform_indices = @transform_6, window_bounds = array<i64: 32, 128>}, {transform_indices = @transform_7, window_bounds = array<i64: 16, 128>}]} {
    %c0 = arith.constant 0 : index
    %c0_0 = arith.constant 0 : index
    %0 = vector.load %arg2[%c0, %c0_0] : memref<24x128xf32, #tpu.memory_space<vmem>>, vector<24x128xf32>
    %c0_1 = arith.constant 0 : index
    %c0_2 = arith.constant 0 : index
    %1 = vector.load %arg1[%c0_1, %c0_2] : memref<16x32xf32, #tpu.memory_space<vmem>>, vector<16x32xf32>
    %2 = vector.extract_strided_slice %0 {offsets = [0, 0], sizes = [1, 32], strides = [1, 1]} : vector<24x128xf32> to vector<1x32xf32>
    %3 = vector.extract_strided_slice %0 {offsets = [1, 0], sizes = [1, 32], strides = [1, 1]} : vector<24x128xf32> to vector<1x32xf32>
    %cst = arith.constant dense<0.000000e+00> : vector<16xf32>
    %4 = vector.multi_reduction <add>, %1, %cst [1] : vector<16x32xf32> to vector<16xf32>
    %5 = vector.shape_cast %4 : vector<16xf32> to vector<16x1xf32>
    %cst_3 = arith.constant 3.200000e+01 : f32
    %6 = vector.broadcast %cst_3 : f32 to vector<16x1xf32>
    %7 = arith.divf %5, %6 : vector<16x1xf32>
    %8 = vector.broadcast %7 : vector<16x1xf32> to vector<16x32xf32>
    %9 = arith.subf %1, %8 : vector<16x32xf32>
    %10 = arith.mulf %9, %9 : vector<16x32xf32>
    %cst_4 = arith.constant dense<0.000000e+00> : vector<16xf32>
    %11 = vector.multi_reduction <add>, %10, %cst_4 [1] : vector<16x32xf32> to vector<16xf32>
    %12 = vector.shape_cast %11 : vector<16xf32> to vector<16x1xf32>
    %cst_5 = arith.constant 3.200000e+01 : f32
    %13 = vector.broadcast %cst_5 : f32 to vector<16x1xf32>
    %14 = arith.divf %12, %13 : vector<16x1xf32>
    %15 = vector.broadcast %7 : vector<16x1xf32> to vector<16x32xf32>
    %16 = arith.subf %1, %15 : vector<16x32xf32>
    %cst_6 = arith.constant 9.99999996E-13 : f32
    %17 = vector.broadcast %cst_6 : f32 to vector<16x1xf32>
    %18 = arith.addf %14, %17 : vector<16x1xf32>
    %19 = math.rsqrt %18 : vector<16x1xf32>
    %20 = vector.broadcast %19 : vector<16x1xf32> to vector<16x32xf32>
    %21 = arith.mulf %16, %20 : vector<16x32xf32>
    %22 = vector.broadcast %2 : vector<1x32xf32> to vector<16x32xf32>
    %23 = arith.mulf %21, %22 : vector<16x32xf32>
    %24 = vector.broadcast %3 : vector<1x32xf32> to vector<16x32xf32>
    %25 = arith.addf %23, %24 : vector<16x32xf32>
    %c0_7 = arith.constant 0 : index
    %c0_8 = arith.constant 0 : index
    %c0_9 = arith.constant 0 : index
    %26 = vector.load %arg3[%c0_7, %c0_8, %c0_9] : memref<2x32x128xf32, #tpu.memory_space<vmem>>, vector<1x32x128xf32>
    %27 = vector.shape_cast %26 : vector<1x32x128xf32> to vector<32x128xf32>
    %28 = vector.extract_strided_slice %27 {offsets = [0, 0], sizes = [32, 96], strides = [1, 1]} : vector<32x128xf32> to vector<32x96xf32>
    %29 = vector.extract_strided_slice %27 {offsets = [0, 96], sizes = [32, 32], strides = [1, 1]} : vector<32x128xf32> to vector<32x32xf32>
    %30 = vector.extract_strided_slice %0 {offsets = [8, 0], sizes = [1, 32], strides = [1, 1]} : vector<24x128xf32> to vector<1x32xf32>
    %31 = vector.extract_strided_slice %0 {offsets = [9, 0], sizes = [1, 32], strides = [1, 1]} : vector<24x128xf32> to vector<1x32xf32>
    %cst_10 = arith.constant dense<0.000000e+00> : vector<16xf32>
    %32 = vector.multi_reduction <add>, %25, %cst_10 [1] : vector<16x32xf32> to vector<16xf32>
    %33 = vector.shape_cast %32 : vector<16xf32> to vector<16x1xf32>
    %cst_11 = arith.constant 3.200000e+01 : f32
    %34 = vector.broadcast %cst_11 : f32 to vector<16x1xf32>
    %35 = arith.divf %33, %34 : vector<16x1xf32>
    %36 = vector.broadcast %35 : vector<16x1xf32> to vector<16x32xf32>
    %37 = arith.subf %25, %36 : vector<16x32xf32>
    %38 = arith.mulf %37, %37 : vector<16x32xf32>
    %cst_12 = arith.constant dense<0.000000e+00> : vector<16xf32>
    %39 = vector.multi_reduction <add>, %38, %cst_12 [1] : vector<16x32xf32> to vector<16xf32>
    %40 = vector.shape_cast %39 : vector<16xf32> to vector<16x1xf32>
    %cst_13 = arith.constant 3.200000e+01 : f32
    %41 = vector.broadcast %cst_13 : f32 to vector<16x1xf32>
    %42 = arith.divf %40, %41 : vector<16x1xf32>
    %43 = vector.broadcast %35 : vector<16x1xf32> to vector<16x32xf32>
    %44 = arith.subf %25, %43 : vector<16x32xf32>
    %cst_14 = arith.constant 9.99999996E-13 : f32
    %45 = vector.broadcast %cst_14 : f32 to vector<16x1xf32>
    %46 = arith.addf %42, %45 : vector<16x1xf32>
    %47 = math.rsqrt %46 : vector<16x1xf32>
    %48 = vector.broadcast %47 : vector<16x1xf32> to vector<16x32xf32>
    %49 = arith.mulf %44, %48 : vector<16x32xf32>
    %50 = vector.broadcast %30 : vector<1x32xf32> to vector<16x32xf32>
    %51 = arith.mulf %49, %50 : vector<16x32xf32>
    %52 = vector.broadcast %31 : vector<1x32xf32> to vector<16x32xf32>
    %53 = arith.addf %51, %52 : vector<16x32xf32>
    %cst_15 = arith.constant dense<0.000000e+00> : vector<16x96xf32>
    %54 = tpu.matmul %53, %28, %cst_15 {dimension_numbers = #tpu.dot_dimension_numbers<[1], [0], [0], [1], [0, 0, 1, 1], [], []>} : vector<16x32xf32>, vector<32x96xf32>, vector<16x96xf32> -> vector<16x96xf32>
    %55 = vector.extract_strided_slice %0 {offsets = [10, 0], sizes = [1, 96], strides = [1, 1]} : vector<24x128xf32> to vector<1x96xf32>
    %56 = vector.broadcast %55 : vector<1x96xf32> to vector<16x96xf32>
    %57 = arith.addf %54, %56 : vector<16x96xf32>
    %58 = vector.extract_strided_slice %57 {offsets = [0, 0], sizes = [16, 32], strides = [1, 1]} : vector<16x96xf32> to vector<16x32xf32>
    %59 = vector.shape_cast %58 : vector<16x32xf32> to vector<2x8x32xf32>
    %60 = vector.extract_strided_slice %57 {offsets = [0, 32], sizes = [16, 32], strides = [1, 1]} : vector<16x96xf32> to vector<16x32xf32>
    %61 = vector.shape_cast %60 : vector<16x32xf32> to vector<2x8x32xf32>
    %62 = vector.extract_strided_slice %57 {offsets = [0, 64], sizes = [16, 32], strides = [1, 1]} : vector<16x96xf32> to vector<16x32xf32>
    %63 = vector.shape_cast %62 : vector<16x32xf32> to vector<2x8x32xf32>
    %64 = vector.extract_strided_slice %59 {offsets = [0, 0, 0], sizes = [2, 8, 8], strides = [1, 1, 1]} : vector<2x8x32xf32> to vector<2x8x8xf32>
    %65 = vector.extract_strided_slice %61 {offsets = [0, 0, 0], sizes = [2, 8, 8], strides = [1, 1, 1]} : vector<2x8x32xf32> to vector<2x8x8xf32>
    %66 = vector.extract_strided_slice %63 {offsets = [0, 0, 0], sizes = [2, 8, 8], strides = [1, 1, 1]} : vector<2x8x32xf32> to vector<2x8x8xf32>
    "tpu.trace_start"() <{level = 10 : i32, message = "bqd,bkd->bqk"}> : () -> ()
    %cst_16 = arith.constant dense<0.000000e+00> : vector<2x8x8xf32>
    %67 = tpu.matmul %64, %65, %cst_16 {dimension_numbers = #tpu.dot_dimension_numbers<[2], [2], [1], [1], [0, 0, 0, 1, 1, 1], [0], [0]>} : vector<2x8x8xf32>, vector<2x8x8xf32>, vector<2x8x8xf32> -> vector<2x8x8xf32>
    "tpu.trace_stop"() : () -> ()
    %cst_17 = arith.constant dense<0xFF800000> : vector<2x8xf32>
    %68 = vector.multi_reduction <maximumf>, %67, %cst_17 [2] : vector<2x8x8xf32> to vector<2x8xf32>
    %69 = vector.shape_cast %68 : vector<2x8xf32> to vector<2x8x1xf32>
    %70 = vector.broadcast %69 : vector<2x8x1xf32> to vector<2x8x8xf32>
    %71 = arith.subf %67, %70 : vector<2x8x8xf32>
    %72 = math.exp %71 : vector<2x8x8xf32>
    %cst_18 = arith.constant dense<0.000000e+00> : vector<2x8xf32>
    %73 = vector.multi_reduction <add>, %72, %cst_18 [2] : vector<2x8x8xf32> to vector<2x8xf32>
    %74 = vector.shape_cast %73 : vector<2x8xf32> to vector<2x8x1xf32>
    %75 = tpu.reciprocal %74 : vector<2x8x1xf32> -> vector<2x8x1xf32>
    %76 = vector.broadcast %75 : vector<2x8x1xf32> to vector<2x8x8xf32>
    %77 = arith.mulf %72, %76 : vector<2x8x8xf32>
    "tpu.trace_start"() <{level = 10 : i32, message = "bqk,bkd->bqd"}> : () -> ()
    %cst_19 = arith.constant dense<0.000000e+00> : vector<2x8x8xf32>
    %78 = tpu.matmul %77, %66, %cst_19 {dimension_numbers = #tpu.dot_dimension_numbers<[2], [1], [1], [2], [0, 0, 0, 1, 1, 2], [0], [0]>} : vector<2x8x8xf32>, vector<2x8x8xf32>, vector<2x8x8xf32> -> vector<2x8x8xf32>
    "tpu.trace_stop"() : () -> ()
    %79 = vector.extract_strided_slice %59 {offsets = [0, 0, 8], sizes = [2, 8, 8], strides = [1, 1, 1]} : vector<2x8x32xf32> to vector<2x8x8xf32>
    %80 = vector.extract_strided_slice %61 {offsets = [0, 0, 8], sizes = [2, 8, 8], strides = [1, 1, 1]} : vector<2x8x32xf32> to vector<2x8x8xf32>
    %81 = vector.extract_strided_slice %63 {offsets = [0, 0, 8], sizes = [2, 8, 8], strides = [1, 1, 1]} : vector<2x8x32xf32> to vector<2x8x8xf32>
    "tpu.trace_start"() <{level = 10 : i32, message = "bqd,bkd->bqk"}> : () -> ()
    %cst_20 = arith.constant dense<0.000000e+00> : vector<2x8x8xf32>
    %82 = tpu.matmul %79, %80, %cst_20 {dimension_numbers = #tpu.dot_dimension_numbers<[2], [2], [1], [1], [0, 0, 0, 1, 1, 1], [0], [0]>} : vector<2x8x8xf32>, vector<2x8x8xf32>, vector<2x8x8xf32> -> vector<2x8x8xf32>
    "tpu.trace_stop"() : () -> ()
    %cst_21 = arith.constant dense<0xFF800000> : vector<2x8xf32>
    %83 = vector.multi_reduction <maximumf>, %82, %cst_21 [2] : vector<2x8x8xf32> to vector<2x8xf32>
    %84 = vector.shape_cast %83 : vector<2x8xf32> to vector<2x8x1xf32>
    %85 = vector.broadcast %84 : vector<2x8x1xf32> to vector<2x8x8xf32>
    %86 = arith.subf %82, %85 : vector<2x8x8xf32>
    %87 = math.exp %86 : vector<2x8x8xf32>
    %cst_22 = arith.constant dense<0.000000e+00> : vector<2x8xf32>
    %88 = vector.multi_reduction <add>, %87, %cst_22 [2] : vector<2x8x8xf32> to vector<2x8xf32>
    %89 = vector.shape_cast %88 : vector<2x8xf32> to vector<2x8x1xf32>
    %90 = tpu.reciprocal %89 : vector<2x8x1xf32> -> vector<2x8x1xf32>
    %91 = vector.broadcast %90 : vector<2x8x1xf32> to vector<2x8x8xf32>
    %92 = arith.mulf %87, %91 : vector<2x8x8xf32>
    "tpu.trace_start"() <{level = 10 : i32, message = "bqk,bkd->bqd"}> : () -> ()
    %cst_23 = arith.constant dense<0.000000e+00> : vector<2x8x8xf32>
    %93 = tpu.matmul %92, %81, %cst_23 {dimension_numbers = #tpu.dot_dimension_numbers<[2], [1], [1], [2], [0, 0, 0, 1, 1, 2], [0], [0]>} : vector<2x8x8xf32>, vector<2x8x8xf32>, vector<2x8x8xf32> -> vector<2x8x8xf32>
    "tpu.trace_stop"() : () -> ()
    %94 = vector.extract_strided_slice %59 {offsets = [0, 0, 16], sizes = [2, 8, 8], strides = [1, 1, 1]} : vector<2x8x32xf32> to vector<2x8x8xf32>
    %95 = vector.extract_strided_slice %61 {offsets = [0, 0, 16], sizes = [2, 8, 8], strides = [1, 1, 1]} : vector<2x8x32xf32> to vector<2x8x8xf32>
    %96 = vector.extract_strided_slice %63 {offsets = [0, 0, 16], sizes = [2, 8, 8], strides = [1, 1, 1]} : vector<2x8x32xf32> to vector<2x8x8xf32>
    "tpu.trace_start"() <{level = 10 : i32, message = "bqd,bkd->bqk"}> : () -> ()
    %cst_24 = arith.constant dense<0.000000e+00> : vector<2x8x8xf32>
    %97 = tpu.matmul %94, %95, %cst_24 {dimension_numbers = #tpu.dot_dimension_numbers<[2], [2], [1], [1], [0, 0, 0, 1, 1, 1], [0], [0]>} : vector<2x8x8xf32>, vector<2x8x8xf32>, vector<2x8x8xf32> -> vector<2x8x8xf32>
    "tpu.trace_stop"() : () -> ()
    %cst_25 = arith.constant dense<0xFF800000> : vector<2x8xf32>
    %98 = vector.multi_reduction <maximumf>, %97, %cst_25 [2] : vector<2x8x8xf32> to vector<2x8xf32>
    %99 = vector.shape_cast %98 : vector<2x8xf32> to vector<2x8x1xf32>
    %100 = vector.broadcast %99 : vector<2x8x1xf32> to vector<2x8x8xf32>
    %101 = arith.subf %97, %100 : vector<2x8x8xf32>
    %102 = math.exp %101 : vector<2x8x8xf32>
    %cst_26 = arith.constant dense<0.000000e+00> : vector<2x8xf32>
    %103 = vector.multi_reduction <add>, %102, %cst_26 [2] : vector<2x8x8xf32> to vector<2x8xf32>
    %104 = vector.shape_cast %103 : vector<2x8xf32> to vector<2x8x1xf32>
    %105 = tpu.reciprocal %104 : vector<2x8x1xf32> -> vector<2x8x1xf32>
    %106 = vector.broadcast %105 : vector<2x8x1xf32> to vector<2x8x8xf32>
    %107 = arith.mulf %102, %106 : vector<2x8x8xf32>
    "tpu.trace_start"() <{level = 10 : i32, message = "bqk,bkd->bqd"}> : () -> ()
    %cst_27 = arith.constant dense<0.000000e+00> : vector<2x8x8xf32>
    %108 = tpu.matmul %107, %96, %cst_27 {dimension_numbers = #tpu.dot_dimension_numbers<[2], [1], [1], [2], [0, 0, 0, 1, 1, 2], [0], [0]>} : vector<2x8x8xf32>, vector<2x8x8xf32>, vector<2x8x8xf32> -> vector<2x8x8xf32>
    "tpu.trace_stop"() : () -> ()
    %109 = vector.extract_strided_slice %59 {offsets = [0, 0, 24], sizes = [2, 8, 8], strides = [1, 1, 1]} : vector<2x8x32xf32> to vector<2x8x8xf32>
    %110 = vector.extract_strided_slice %61 {offsets = [0, 0, 24], sizes = [2, 8, 8], strides = [1, 1, 1]} : vector<2x8x32xf32> to vector<2x8x8xf32>
    %111 = vector.extract_strided_slice %63 {offsets = [0, 0, 24], sizes = [2, 8, 8], strides = [1, 1, 1]} : vector<2x8x32xf32> to vector<2x8x8xf32>
    "tpu.trace_start"() <{level = 10 : i32, message = "bqd,bkd->bqk"}> : () -> ()
    %cst_28 = arith.constant dense<0.000000e+00> : vector<2x8x8xf32>
    %112 = tpu.matmul %109, %110, %cst_28 {dimension_numbers = #tpu.dot_dimension_numbers<[2], [2], [1], [1], [0, 0, 0, 1, 1, 1], [0], [0]>} : vector<2x8x8xf32>, vector<2x8x8xf32>, vector<2x8x8xf32> -> vector<2x8x8xf32>
    "tpu.trace_stop"() : () -> ()
    %cst_29 = arith.constant dense<0xFF800000> : vector<2x8xf32>
    %113 = vector.multi_reduction <maximumf>, %112, %cst_29 [2] : vector<2x8x8xf32> to vector<2x8xf32>
    %114 = vector.shape_cast %113 : vector<2x8xf32> to vector<2x8x1xf32>
    %115 = vector.broadcast %114 : vector<2x8x1xf32> to vector<2x8x8xf32>
    %116 = arith.subf %112, %115 : vector<2x8x8xf32>
    %117 = math.exp %116 : vector<2x8x8xf32>
    %cst_30 = arith.constant dense<0.000000e+00> : vector<2x8xf32>
    %118 = vector.multi_reduction <add>, %117, %cst_30 [2] : vector<2x8x8xf32> to vector<2x8xf32>
    %119 = vector.shape_cast %118 : vector<2x8xf32> to vector<2x8x1xf32>
    %120 = tpu.reciprocal %119 : vector<2x8x1xf32> -> vector<2x8x1xf32>
    %121 = vector.broadcast %120 : vector<2x8x1xf32> to vector<2x8x8xf32>
    %122 = arith.mulf %117, %121 : vector<2x8x8xf32>
    "tpu.trace_start"() <{level = 10 : i32, message = "bqk,bkd->bqd"}> : () -> ()
    %cst_31 = arith.constant dense<0.000000e+00> : vector<2x8x8xf32>
    %123 = tpu.matmul %122, %111, %cst_31 {dimension_numbers = #tpu.dot_dimension_numbers<[2], [1], [1], [2], [0, 0, 0, 1, 1, 2], [0], [0]>} : vector<2x8x8xf32>, vector<2x8x8xf32>, vector<2x8x8xf32> -> vector<2x8x8xf32>
    "tpu.trace_stop"() : () -> ()
    %124 = tpu.concatenate %78, %93, %108, %123 in 2 : vector<2x8x8xf32>, vector<2x8x8xf32>, vector<2x8x8xf32>, vector<2x8x8xf32> -> vector<2x8x32xf32>
    %125 = vector.shape_cast %124 : vector<2x8x32xf32> to vector<16x32xf32>
    %cst_32 = arith.constant dense<0.000000e+00> : vector<16x32xf32>
    %126 = tpu.matmul %125, %29, %cst_32 {dimension_numbers = #tpu.dot_dimension_numbers<[1], [0], [0], [1], [0, 0, 1, 1], [], []>} : vector<16x32xf32>, vector<32x32xf32>, vector<16x32xf32> -> vector<16x32xf32>
    %127 = arith.addf %25, %126 : vector<16x32xf32>
    %128 = vector.extract_strided_slice %0 {offsets = [11, 0], sizes = [1, 32], strides = [1, 1]} : vector<24x128xf32> to vector<1x32xf32>
    %129 = vector.broadcast %128 : vector<1x32xf32> to vector<16x32xf32>
    %130 = arith.addf %127, %129 : vector<16x32xf32>
    %131 = vector.extract_strided_slice %0 {offsets = [12, 0], sizes = [1, 32], strides = [1, 1]} : vector<24x128xf32> to vector<1x32xf32>
    %132 = vector.extract_strided_slice %0 {offsets = [13, 0], sizes = [1, 32], strides = [1, 1]} : vector<24x128xf32> to vector<1x32xf32>
    %cst_33 = arith.constant dense<0.000000e+00> : vector<16xf32>
    %133 = vector.multi_reduction <add>, %130, %cst_33 [1] : vector<16x32xf32> to vector<16xf32>
    %134 = vector.shape_cast %133 : vector<16xf32> to vector<16x1xf32>
    %cst_34 = arith.constant 3.200000e+01 : f32
    %135 = vector.broadcast %cst_34 : f32 to vector<16x1xf32>
    %136 = arith.divf %134, %135 : vector<16x1xf32>
    %137 = vector.broadcast %136 : vector<16x1xf32> to vector<16x32xf32>
    %138 = arith.subf %130, %137 : vector<16x32xf32>
    %139 = arith.mulf %138, %138 : vector<16x32xf32>
    %cst_35 = arith.constant dense<0.000000e+00> : vector<16xf32>
    %140 = vector.multi_reduction <add>, %139, %cst_35 [1] : vector<16x32xf32> to vector<16xf32>
    %141 = vector.shape_cast %140 : vector<16xf32> to vector<16x1xf32>
    %cst_36 = arith.constant 3.200000e+01 : f32
    %142 = vector.broadcast %cst_36 : f32 to vector<16x1xf32>
    %143 = arith.divf %141, %142 : vector<16x1xf32>
    %144 = vector.broadcast %136 : vector<16x1xf32> to vector<16x32xf32>
    %145 = arith.subf %130, %144 : vector<16x32xf32>
    %cst_37 = arith.constant 9.99999996E-13 : f32
    %146 = vector.broadcast %cst_37 : f32 to vector<16x1xf32>
    %147 = arith.addf %143, %146 : vector<16x1xf32>
    %148 = math.rsqrt %147 : vector<16x1xf32>
    %149 = vector.broadcast %148 : vector<16x1xf32> to vector<16x32xf32>
    %150 = arith.mulf %145, %149 : vector<16x32xf32>
    %151 = vector.broadcast %131 : vector<1x32xf32> to vector<16x32xf32>
    %152 = arith.mulf %150, %151 : vector<16x32xf32>
    %153 = vector.broadcast %132 : vector<1x32xf32> to vector<16x32xf32>
    %154 = arith.addf %152, %153 : vector<16x32xf32>
    %c0_38 = arith.constant 0 : index
    %c0_39 = arith.constant 0 : index
    %c0_40 = arith.constant 0 : index
    %155 = vector.load %arg4[%c0_38, %c0_39, %c0_40] : memref<2x32x64xf32, #tpu.memory_space<vmem>>, vector<1x32x64xf32>
    %156 = vector.shape_cast %155 : vector<1x32x64xf32> to vector<32x64xf32>
    %cst_41 = arith.constant dense<0.000000e+00> : vector<16x64xf32>
    %157 = tpu.matmul %154, %156, %cst_41 {dimension_numbers = #tpu.dot_dimension_numbers<[1], [0], [0], [1], [0, 0, 1, 1], [], []>} : vector<16x32xf32>, vector<32x64xf32>, vector<16x64xf32> -> vector<16x64xf32>
    %158 = vector.extract_strided_slice %0 {offsets = [14, 0], sizes = [1, 64], strides = [1, 1]} : vector<24x128xf32> to vector<1x64xf32>
    %159 = vector.broadcast %158 : vector<1x64xf32> to vector<16x64xf32>
    %160 = arith.addf %157, %159 : vector<16x64xf32>
    %cst_42 = arith.constant 5.000000e-01 : f32
    %161 = vector.broadcast %cst_42 : f32 to vector<16x64xf32>
    %162 = arith.mulf %161, %160 : vector<16x64xf32>
    %cst_43 = arith.constant 0.707106769 : f32
    %163 = vector.broadcast %cst_43 : f32 to vector<16x64xf32>
    %164 = arith.mulf %160, %163 : vector<16x64xf32>
    %165 = math.erf %164 : vector<16x64xf32>
    %cst_44 = arith.constant 1.000000e+00 : f32
    %166 = vector.broadcast %cst_44 : f32 to vector<16x64xf32>
    %167 = arith.addf %166, %165 : vector<16x64xf32>
    %168 = arith.mulf %162, %167 : vector<16x64xf32>
    %c0_45 = arith.constant 0 : index
    %c0_46 = arith.constant 0 : index
    %c0_47 = arith.constant 0 : index
    %169 = vector.load %arg5[%c0_45, %c0_46, %c0_47] : memref<2x64x32xf32, #tpu.memory_space<vmem>>, vector<1x64x32xf32>
    %170 = vector.shape_cast %169 : vector<1x64x32xf32> to vector<64x32xf32>
    %cst_48 = arith.constant dense<0.000000e+00> : vector<16x32xf32>
    %171 = tpu.matmul %168, %170, %cst_48 {dimension_numbers = #tpu.dot_dimension_numbers<[1], [0], [0], [1], [0, 0, 1, 1], [], []>} : vector<16x64xf32>, vector<64x32xf32>, vector<16x32xf32> -> vector<16x32xf32>
    %172 = arith.addf %130, %171 : vector<16x32xf32>
    %173 = vector.extract_strided_slice %0 {offsets = [15, 0], sizes = [1, 32], strides = [1, 1]} : vector<24x128xf32> to vector<1x32xf32>
    %174 = vector.broadcast %173 : vector<1x32xf32> to vector<16x32xf32>
    %175 = arith.addf %172, %174 : vector<16x32xf32>
    %c1 = arith.constant 1 : index
    %c0_49 = arith.constant 0 : index
    %c0_50 = arith.constant 0 : index
    %176 = vector.load %arg3[%c1, %c0_49, %c0_50] : memref<2x32x128xf32, #tpu.memory_space<vmem>>, vector<1x32x128xf32>
    %177 = vector.shape_cast %176 : vector<1x32x128xf32> to vector<32x128xf32>
    %178 = vector.extract_strided_slice %177 {offsets = [0, 0], sizes = [32, 96], strides = [1, 1]} : vector<32x128xf32> to vector<32x96xf32>
    %179 = vector.extract_strided_slice %177 {offsets = [0, 96], sizes = [32, 32], strides = [1, 1]} : vector<32x128xf32> to vector<32x32xf32>
    %180 = vector.extract_strided_slice %0 {offsets = [16, 0], sizes = [1, 32], strides = [1, 1]} : vector<24x128xf32> to vector<1x32xf32>
    %181 = vector.extract_strided_slice %0 {offsets = [17, 0], sizes = [1, 32], strides = [1, 1]} : vector<24x128xf32> to vector<1x32xf32>
    %cst_51 = arith.constant dense<0.000000e+00> : vector<16xf32>
    %182 = vector.multi_reduction <add>, %175, %cst_51 [1] : vector<16x32xf32> to vector<16xf32>
    %183 = vector.shape_cast %182 : vector<16xf32> to vector<16x1xf32>
    %cst_52 = arith.constant 3.200000e+01 : f32
    %184 = vector.broadcast %cst_52 : f32 to vector<16x1xf32>
    %185 = arith.divf %183, %184 : vector<16x1xf32>
    %186 = vector.broadcast %185 : vector<16x1xf32> to vector<16x32xf32>
    %187 = arith.subf %175, %186 : vector<16x32xf32>
    %188 = arith.mulf %187, %187 : vector<16x32xf32>
    %cst_53 = arith.constant dense<0.000000e+00> : vector<16xf32>
    %189 = vector.multi_reduction <add>, %188, %cst_53 [1] : vector<16x32xf32> to vector<16xf32>
    %190 = vector.shape_cast %189 : vector<16xf32> to vector<16x1xf32>
    %cst_54 = arith.constant 3.200000e+01 : f32
    %191 = vector.broadcast %cst_54 : f32 to vector<16x1xf32>
    %192 = arith.divf %190, %191 : vector<16x1xf32>
    %193 = vector.broadcast %185 : vector<16x1xf32> to vector<16x32xf32>
    %194 = arith.subf %175, %193 : vector<16x32xf32>
    %cst_55 = arith.constant 9.99999996E-13 : f32
    %195 = vector.broadcast %cst_55 : f32 to vector<16x1xf32>
    %196 = arith.addf %192, %195 : vector<16x1xf32>
    %197 = math.rsqrt %196 : vector<16x1xf32>
    %198 = vector.broadcast %197 : vector<16x1xf32> to vector<16x32xf32>
    %199 = arith.mulf %194, %198 : vector<16x32xf32>
    %200 = vector.broadcast %180 : vector<1x32xf32> to vector<16x32xf32>
    %201 = arith.mulf %199, %200 : vector<16x32xf32>
    %202 = vector.broadcast %181 : vector<1x32xf32> to vector<16x32xf32>
    %203 = arith.addf %201, %202 : vector<16x32xf32>
    %cst_56 = arith.constant dense<0.000000e+00> : vector<16x96xf32>
    %204 = tpu.matmul %203, %178, %cst_56 {dimension_numbers = #tpu.dot_dimension_numbers<[1], [0], [0], [1], [0, 0, 1, 1], [], []>} : vector<16x32xf32>, vector<32x96xf32>, vector<16x96xf32> -> vector<16x96xf32>
    %205 = vector.extract_strided_slice %0 {offsets = [18, 0], sizes = [1, 96], strides = [1, 1]} : vector<24x128xf32> to vector<1x96xf32>
    %206 = vector.broadcast %205 : vector<1x96xf32> to vector<16x96xf32>
    %207 = arith.addf %204, %206 : vector<16x96xf32>
    %208 = vector.extract_strided_slice %207 {offsets = [0, 0], sizes = [16, 32], strides = [1, 1]} : vector<16x96xf32> to vector<16x32xf32>
    %209 = vector.shape_cast %208 : vector<16x32xf32> to vector<2x8x32xf32>
    %210 = vector.extract_strided_slice %207 {offsets = [0, 32], sizes = [16, 32], strides = [1, 1]} : vector<16x96xf32> to vector<16x32xf32>
    %211 = vector.shape_cast %210 : vector<16x32xf32> to vector<2x8x32xf32>
    %212 = vector.extract_strided_slice %207 {offsets = [0, 64], sizes = [16, 32], strides = [1, 1]} : vector<16x96xf32> to vector<16x32xf32>
    %213 = vector.shape_cast %212 : vector<16x32xf32> to vector<2x8x32xf32>
    %214 = vector.extract_strided_slice %209 {offsets = [0, 0, 0], sizes = [2, 8, 8], strides = [1, 1, 1]} : vector<2x8x32xf32> to vector<2x8x8xf32>
    %215 = vector.extract_strided_slice %211 {offsets = [0, 0, 0], sizes = [2, 8, 8], strides = [1, 1, 1]} : vector<2x8x32xf32> to vector<2x8x8xf32>
    %216 = vector.extract_strided_slice %213 {offsets = [0, 0, 0], sizes = [2, 8, 8], strides = [1, 1, 1]} : vector<2x8x32xf32> to vector<2x8x8xf32>
    "tpu.trace_start"() <{level = 10 : i32, message = "bqd,bkd->bqk"}> : () -> ()
    %cst_57 = arith.constant dense<0.000000e+00> : vector<2x8x8xf32>
    %217 = tpu.matmul %214, %215, %cst_57 {dimension_numbers = #tpu.dot_dimension_numbers<[2], [2], [1], [1], [0, 0, 0, 1, 1, 1], [0], [0]>} : vector<2x8x8xf32>, vector<2x8x8xf32>, vector<2x8x8xf32> -> vector<2x8x8xf32>
    "tpu.trace_stop"() : () -> ()
    %cst_58 = arith.constant dense<0xFF800000> : vector<2x8xf32>
    %218 = vector.multi_reduction <maximumf>, %217, %cst_58 [2] : vector<2x8x8xf32> to vector<2x8xf32>
    %219 = vector.shape_cast %218 : vector<2x8xf32> to vector<2x8x1xf32>
    %220 = vector.broadcast %219 : vector<2x8x1xf32> to vector<2x8x8xf32>
    %221 = arith.subf %217, %220 : vector<2x8x8xf32>
    %222 = math.exp %221 : vector<2x8x8xf32>
    %cst_59 = arith.constant dense<0.000000e+00> : vector<2x8xf32>
    %223 = vector.multi_reduction <add>, %222, %cst_59 [2] : vector<2x8x8xf32> to vector<2x8xf32>
    %224 = vector.shape_cast %223 : vector<2x8xf32> to vector<2x8x1xf32>
    %225 = tpu.reciprocal %224 : vector<2x8x1xf32> -> vector<2x8x1xf32>
    %226 = vector.broadcast %225 : vector<2x8x1xf32> to vector<2x8x8xf32>
    %227 = arith.mulf %222, %226 : vector<2x8x8xf32>
    "tpu.trace_start"() <{level = 10 : i32, message = "bqk,bkd->bqd"}> : () -> ()
    %cst_60 = arith.constant dense<0.000000e+00> : vector<2x8x8xf32>
    %228 = tpu.matmul %227, %216, %cst_60 {dimension_numbers = #tpu.dot_dimension_numbers<[2], [1], [1], [2], [0, 0, 0, 1, 1, 2], [0], [0]>} : vector<2x8x8xf32>, vector<2x8x8xf32>, vector<2x8x8xf32> -> vector<2x8x8xf32>
    "tpu.trace_stop"() : () -> ()
    %229 = vector.extract_strided_slice %209 {offsets = [0, 0, 8], sizes = [2, 8, 8], strides = [1, 1, 1]} : vector<2x8x32xf32> to vector<2x8x8xf32>
    %230 = vector.extract_strided_slice %211 {offsets = [0, 0, 8], sizes = [2, 8, 8], strides = [1, 1, 1]} : vector<2x8x32xf32> to vector<2x8x8xf32>
    %231 = vector.extract_strided_slice %213 {offsets = [0, 0, 8], sizes = [2, 8, 8], strides = [1, 1, 1]} : vector<2x8x32xf32> to vector<2x8x8xf32>
    "tpu.trace_start"() <{level = 10 : i32, message = "bqd,bkd->bqk"}> : () -> ()
    %cst_61 = arith.constant dense<0.000000e+00> : vector<2x8x8xf32>
    %232 = tpu.matmul %229, %230, %cst_61 {dimension_numbers = #tpu.dot_dimension_numbers<[2], [2], [1], [1], [0, 0, 0, 1, 1, 1], [0], [0]>} : vector<2x8x8xf32>, vector<2x8x8xf32>, vector<2x8x8xf32> -> vector<2x8x8xf32>
    "tpu.trace_stop"() : () -> ()
    %cst_62 = arith.constant dense<0xFF800000> : vector<2x8xf32>
    %233 = vector.multi_reduction <maximumf>, %232, %cst_62 [2] : vector<2x8x8xf32> to vector<2x8xf32>
    %234 = vector.shape_cast %233 : vector<2x8xf32> to vector<2x8x1xf32>
    %235 = vector.broadcast %234 : vector<2x8x1xf32> to vector<2x8x8xf32>
    %236 = arith.subf %232, %235 : vector<2x8x8xf32>
    %237 = math.exp %236 : vector<2x8x8xf32>
    %cst_63 = arith.constant dense<0.000000e+00> : vector<2x8xf32>
    %238 = vector.multi_reduction <add>, %237, %cst_63 [2] : vector<2x8x8xf32> to vector<2x8xf32>
    %239 = vector.shape_cast %238 : vector<2x8xf32> to vector<2x8x1xf32>
    %240 = tpu.reciprocal %239 : vector<2x8x1xf32> -> vector<2x8x1xf32>
    %241 = vector.broadcast %240 : vector<2x8x1xf32> to vector<2x8x8xf32>
    %242 = arith.mulf %237, %241 : vector<2x8x8xf32>
    "tpu.trace_start"() <{level = 10 : i32, message = "bqk,bkd->bqd"}> : () -> ()
    %cst_64 = arith.constant dense<0.000000e+00> : vector<2x8x8xf32>
    %243 = tpu.matmul %242, %231, %cst_64 {dimension_numbers = #tpu.dot_dimension_numbers<[2], [1], [1], [2], [0, 0, 0, 1, 1, 2], [0], [0]>} : vector<2x8x8xf32>, vector<2x8x8xf32>, vector<2x8x8xf32> -> vector<2x8x8xf32>
    "tpu.trace_stop"() : () -> ()
    %244 = vector.extract_strided_slice %209 {offsets = [0, 0, 16], sizes = [2, 8, 8], strides = [1, 1, 1]} : vector<2x8x32xf32> to vector<2x8x8xf32>
    %245 = vector.extract_strided_slice %211 {offsets = [0, 0, 16], sizes = [2, 8, 8], strides = [1, 1, 1]} : vector<2x8x32xf32> to vector<2x8x8xf32>
    %246 = vector.extract_strided_slice %213 {offsets = [0, 0, 16], sizes = [2, 8, 8], strides = [1, 1, 1]} : vector<2x8x32xf32> to vector<2x8x8xf32>
    "tpu.trace_start"() <{level = 10 : i32, message = "bqd,bkd->bqk"}> : () -> ()
    %cst_65 = arith.constant dense<0.000000e+00> : vector<2x8x8xf32>
    %247 = tpu.matmul %244, %245, %cst_65 {dimension_numbers = #tpu.dot_dimension_numbers<[2], [2], [1], [1], [0, 0, 0, 1, 1, 1], [0], [0]>} : vector<2x8x8xf32>, vector<2x8x8xf32>, vector<2x8x8xf32> -> vector<2x8x8xf32>
    "tpu.trace_stop"() : () -> ()
    %cst_66 = arith.constant dense<0xFF800000> : vector<2x8xf32>
    %248 = vector.multi_reduction <maximumf>, %247, %cst_66 [2] : vector<2x8x8xf32> to vector<2x8xf32>
    %249 = vector.shape_cast %248 : vector<2x8xf32> to vector<2x8x1xf32>
    %250 = vector.broadcast %249 : vector<2x8x1xf32> to vector<2x8x8xf32>
    %251 = arith.subf %247, %250 : vector<2x8x8xf32>
    %252 = math.exp %251 : vector<2x8x8xf32>
    %cst_67 = arith.constant dense<0.000000e+00> : vector<2x8xf32>
    %253 = vector.multi_reduction <add>, %252, %cst_67 [2] : vector<2x8x8xf32> to vector<2x8xf32>
    %254 = vector.shape_cast %253 : vector<2x8xf32> to vector<2x8x1xf32>
    %255 = tpu.reciprocal %254 : vector<2x8x1xf32> -> vector<2x8x1xf32>
    %256 = vector.broadcast %255 : vector<2x8x1xf32> to vector<2x8x8xf32>
    %257 = arith.mulf %252, %256 : vector<2x8x8xf32>
    "tpu.trace_start"() <{level = 10 : i32, message = "bqk,bkd->bqd"}> : () -> ()
    %cst_68 = arith.constant dense<0.000000e+00> : vector<2x8x8xf32>
    %258 = tpu.matmul %257, %246, %cst_68 {dimension_numbers = #tpu.dot_dimension_numbers<[2], [1], [1], [2], [0, 0, 0, 1, 1, 2], [0], [0]>} : vector<2x8x8xf32>, vector<2x8x8xf32>, vector<2x8x8xf32> -> vector<2x8x8xf32>
    "tpu.trace_stop"() : () -> ()
    %259 = vector.extract_strided_slice %209 {offsets = [0, 0, 24], sizes = [2, 8, 8], strides = [1, 1, 1]} : vector<2x8x32xf32> to vector<2x8x8xf32>
    %260 = vector.extract_strided_slice %211 {offsets = [0, 0, 24], sizes = [2, 8, 8], strides = [1, 1, 1]} : vector<2x8x32xf32> to vector<2x8x8xf32>
    %261 = vector.extract_strided_slice %213 {offsets = [0, 0, 24], sizes = [2, 8, 8], strides = [1, 1, 1]} : vector<2x8x32xf32> to vector<2x8x8xf32>
    "tpu.trace_start"() <{level = 10 : i32, message = "bqd,bkd->bqk"}> : () -> ()
    %cst_69 = arith.constant dense<0.000000e+00> : vector<2x8x8xf32>
    %262 = tpu.matmul %259, %260, %cst_69 {dimension_numbers = #tpu.dot_dimension_numbers<[2], [2], [1], [1], [0, 0, 0, 1, 1, 1], [0], [0]>} : vector<2x8x8xf32>, vector<2x8x8xf32>, vector<2x8x8xf32> -> vector<2x8x8xf32>
    "tpu.trace_stop"() : () -> ()
    %cst_70 = arith.constant dense<0xFF800000> : vector<2x8xf32>
    %263 = vector.multi_reduction <maximumf>, %262, %cst_70 [2] : vector<2x8x8xf32> to vector<2x8xf32>
    %264 = vector.shape_cast %263 : vector<2x8xf32> to vector<2x8x1xf32>
    %265 = vector.broadcast %264 : vector<2x8x1xf32> to vector<2x8x8xf32>
    %266 = arith.subf %262, %265 : vector<2x8x8xf32>
    %267 = math.exp %266 : vector<2x8x8xf32>
    %cst_71 = arith.constant dense<0.000000e+00> : vector<2x8xf32>
    %268 = vector.multi_reduction <add>, %267, %cst_71 [2] : vector<2x8x8xf32> to vector<2x8xf32>
    %269 = vector.shape_cast %268 : vector<2x8xf32> to vector<2x8x1xf32>
    %270 = tpu.reciprocal %269 : vector<2x8x1xf32> -> vector<2x8x1xf32>
    %271 = vector.broadcast %270 : vector<2x8x1xf32> to vector<2x8x8xf32>
    %272 = arith.mulf %267, %271 : vector<2x8x8xf32>
    "tpu.trace_start"() <{level = 10 : i32, message = "bqk,bkd->bqd"}> : () -> ()
    %cst_72 = arith.constant dense<0.000000e+00> : vector<2x8x8xf32>
    %273 = tpu.matmul %272, %261, %cst_72 {dimension_numbers = #tpu.dot_dimension_numbers<[2], [1], [1], [2], [0, 0, 0, 1, 1, 2], [0], [0]>} : vector<2x8x8xf32>, vector<2x8x8xf32>, vector<2x8x8xf32> -> vector<2x8x8xf32>
    "tpu.trace_stop"() : () -> ()
    %274 = tpu.concatenate %228, %243, %258, %273 in 2 : vector<2x8x8xf32>, vector<2x8x8xf32>, vector<2x8x8xf32>, vector<2x8x8xf32> -> vector<2x8x32xf32>
    %275 = vector.shape_cast %274 : vector<2x8x32xf32> to vector<16x32xf32>
    %cst_73 = arith.constant dense<0.000000e+00> : vector<16x32xf32>
    %276 = tpu.matmul %275, %179, %cst_73 {dimension_numbers = #tpu.dot_dimension_numbers<[1], [0], [0], [1], [0, 0, 1, 1], [], []>} : vector<16x32xf32>, vector<32x32xf32>, vector<16x32xf32> -> vector<16x32xf32>
    %277 = arith.addf %175, %276 : vector<16x32xf32>
    %278 = vector.extract_strided_slice %0 {offsets = [19, 0], sizes = [1, 32], strides = [1, 1]} : vector<24x128xf32> to vector<1x32xf32>
    %279 = vector.broadcast %278 : vector<1x32xf32> to vector<16x32xf32>
    %280 = arith.addf %277, %279 : vector<16x32xf32>
    %281 = vector.extract_strided_slice %0 {offsets = [20, 0], sizes = [1, 32], strides = [1, 1]} : vector<24x128xf32> to vector<1x32xf32>
    %282 = vector.extract_strided_slice %0 {offsets = [21, 0], sizes = [1, 32], strides = [1, 1]} : vector<24x128xf32> to vector<1x32xf32>
    %cst_74 = arith.constant dense<0.000000e+00> : vector<16xf32>
    %283 = vector.multi_reduction <add>, %280, %cst_74 [1] : vector<16x32xf32> to vector<16xf32>
    %284 = vector.shape_cast %283 : vector<16xf32> to vector<16x1xf32>
    %cst_75 = arith.constant 3.200000e+01 : f32
    %285 = vector.broadcast %cst_75 : f32 to vector<16x1xf32>
    %286 = arith.divf %284, %285 : vector<16x1xf32>
    %287 = vector.broadcast %286 : vector<16x1xf32> to vector<16x32xf32>
    %288 = arith.subf %280, %287 : vector<16x32xf32>
    %289 = arith.mulf %288, %288 : vector<16x32xf32>
    %cst_76 = arith.constant dense<0.000000e+00> : vector<16xf32>
    %290 = vector.multi_reduction <add>, %289, %cst_76 [1] : vector<16x32xf32> to vector<16xf32>
    %291 = vector.shape_cast %290 : vector<16xf32> to vector<16x1xf32>
    %cst_77 = arith.constant 3.200000e+01 : f32
    %292 = vector.broadcast %cst_77 : f32 to vector<16x1xf32>
    %293 = arith.divf %291, %292 : vector<16x1xf32>
    %294 = vector.broadcast %286 : vector<16x1xf32> to vector<16x32xf32>
    %295 = arith.subf %280, %294 : vector<16x32xf32>
    %cst_78 = arith.constant 9.99999996E-13 : f32
    %296 = vector.broadcast %cst_78 : f32 to vector<16x1xf32>
    %297 = arith.addf %293, %296 : vector<16x1xf32>
    %298 = math.rsqrt %297 : vector<16x1xf32>
    %299 = vector.broadcast %298 : vector<16x1xf32> to vector<16x32xf32>
    %300 = arith.mulf %295, %299 : vector<16x32xf32>
    %301 = vector.broadcast %281 : vector<1x32xf32> to vector<16x32xf32>
    %302 = arith.mulf %300, %301 : vector<16x32xf32>
    %303 = vector.broadcast %282 : vector<1x32xf32> to vector<16x32xf32>
    %304 = arith.addf %302, %303 : vector<16x32xf32>
    %c1_79 = arith.constant 1 : index
    %c0_80 = arith.constant 0 : index
    %c0_81 = arith.constant 0 : index
    %305 = vector.load %arg4[%c1_79, %c0_80, %c0_81] : memref<2x32x64xf32, #tpu.memory_space<vmem>>, vector<1x32x64xf32>
    %306 = vector.shape_cast %305 : vector<1x32x64xf32> to vector<32x64xf32>
    %cst_82 = arith.constant dense<0.000000e+00> : vector<16x64xf32>
    %307 = tpu.matmul %304, %306, %cst_82 {dimension_numbers = #tpu.dot_dimension_numbers<[1], [0], [0], [1], [0, 0, 1, 1], [], []>} : vector<16x32xf32>, vector<32x64xf32>, vector<16x64xf32> -> vector<16x64xf32>
    %308 = vector.extract_strided_slice %0 {offsets = [22, 0], sizes = [1, 64], strides = [1, 1]} : vector<24x128xf32> to vector<1x64xf32>
    %309 = vector.broadcast %308 : vector<1x64xf32> to vector<16x64xf32>
    %310 = arith.addf %307, %309 : vector<16x64xf32>
    %cst_83 = arith.constant 5.000000e-01 : f32
    %311 = vector.broadcast %cst_83 : f32 to vector<16x64xf32>
    %312 = arith.mulf %311, %310 : vector<16x64xf32>
    %cst_84 = arith.constant 0.707106769 : f32
    %313 = vector.broadcast %cst_84 : f32 to vector<16x64xf32>
    %314 = arith.mulf %310, %313 : vector<16x64xf32>
    %315 = math.erf %314 : vector<16x64xf32>
    %cst_85 = arith.constant 1.000000e+00 : f32
    %316 = vector.broadcast %cst_85 : f32 to vector<16x64xf32>
    %317 = arith.addf %316, %315 : vector<16x64xf32>
    %318 = arith.mulf %312, %317 : vector<16x64xf32>
    %c1_86 = arith.constant 1 : index
    %c0_87 = arith.constant 0 : index
    %c0_88 = arith.constant 0 : index
    %319 = vector.load %arg5[%c1_86, %c0_87, %c0_88] : memref<2x64x32xf32, #tpu.memory_space<vmem>>, vector<1x64x32xf32>
    %320 = vector.shape_cast %319 : vector<1x64x32xf32> to vector<64x32xf32>
    %cst_89 = arith.constant dense<0.000000e+00> : vector<16x32xf32>
    %321 = tpu.matmul %318, %320, %cst_89 {dimension_numbers = #tpu.dot_dimension_numbers<[1], [0], [0], [1], [0, 0, 1, 1], [], []>} : vector<16x64xf32>, vector<64x32xf32>, vector<16x32xf32> -> vector<16x32xf32>
    %322 = arith.addf %280, %321 : vector<16x32xf32>
    %323 = vector.extract_strided_slice %0 {offsets = [23, 0], sizes = [1, 32], strides = [1, 1]} : vector<24x128xf32> to vector<1x32xf32>
    %324 = vector.broadcast %323 : vector<1x32xf32> to vector<16x32xf32>
    %325 = arith.addf %322, %324 : vector<16x32xf32>
    %326 = vector.extract_strided_slice %0 {offsets = [2, 0], sizes = [1, 32], strides = [1, 1]} : vector<24x128xf32> to vector<1x32xf32>
    %327 = vector.extract_strided_slice %0 {offsets = [3, 0], sizes = [1, 32], strides = [1, 1]} : vector<24x128xf32> to vector<1x32xf32>
    %cst_90 = arith.constant dense<0.000000e+00> : vector<16xf32>
    %328 = vector.multi_reduction <add>, %325, %cst_90 [1] : vector<16x32xf32> to vector<16xf32>
    %329 = vector.shape_cast %328 : vector<16xf32> to vector<16x1xf32>
    %cst_91 = arith.constant 3.200000e+01 : f32
    %330 = vector.broadcast %cst_91 : f32 to vector<16x1xf32>
    %331 = arith.divf %329, %330 : vector<16x1xf32>
    %332 = vector.broadcast %331 : vector<16x1xf32> to vector<16x32xf32>
    %333 = arith.subf %325, %332 : vector<16x32xf32>
    %334 = arith.mulf %333, %333 : vector<16x32xf32>
    %cst_92 = arith.constant dense<0.000000e+00> : vector<16xf32>
    %335 = vector.multi_reduction <add>, %334, %cst_92 [1] : vector<16x32xf32> to vector<16xf32>
    %336 = vector.shape_cast %335 : vector<16xf32> to vector<16x1xf32>
    %cst_93 = arith.constant 3.200000e+01 : f32
    %337 = vector.broadcast %cst_93 : f32 to vector<16x1xf32>
    %338 = arith.divf %336, %337 : vector<16x1xf32>
    %339 = vector.broadcast %331 : vector<16x1xf32> to vector<16x32xf32>
    %340 = arith.subf %325, %339 : vector<16x32xf32>
    %cst_94 = arith.constant 9.99999996E-13 : f32
    %341 = vector.broadcast %cst_94 : f32 to vector<16x1xf32>
    %342 = arith.addf %338, %341 : vector<16x1xf32>
    %343 = math.rsqrt %342 : vector<16x1xf32>
    %344 = vector.broadcast %343 : vector<16x1xf32> to vector<16x32xf32>
    %345 = arith.mulf %340, %344 : vector<16x32xf32>
    %346 = vector.broadcast %326 : vector<1x32xf32> to vector<16x32xf32>
    %347 = arith.mulf %345, %346 : vector<16x32xf32>
    %348 = vector.broadcast %327 : vector<1x32xf32> to vector<16x32xf32>
    %349 = arith.addf %347, %348 : vector<16x32xf32>
    %c0_95 = arith.constant 0 : index
    %c0_96 = arith.constant 0 : index
    %350 = vector.load %arg6[%c0_95, %c0_96] : memref<32x32xf32, #tpu.memory_space<vmem>>, vector<32x32xf32>
    %cst_97 = arith.constant dense<0.000000e+00> : vector<16x32xf32>
    %351 = tpu.matmul %349, %350, %cst_97 {dimension_numbers = #tpu.dot_dimension_numbers<[1], [0], [0], [1], [0, 0, 1, 1], [], []>} : vector<16x32xf32>, vector<32x32xf32>, vector<16x32xf32> -> vector<16x32xf32>
    %352 = vector.extract_strided_slice %0 {offsets = [4, 0], sizes = [1, 32], strides = [1, 1]} : vector<24x128xf32> to vector<1x32xf32>
    %353 = vector.broadcast %352 : vector<1x32xf32> to vector<16x32xf32>
    %354 = arith.addf %351, %353 : vector<16x32xf32>
    %cst_98 = arith.constant 5.000000e-01 : f32
    %355 = vector.broadcast %cst_98 : f32 to vector<16x32xf32>
    %356 = arith.mulf %355, %354 : vector<16x32xf32>
    %cst_99 = arith.constant 0.707106769 : f32
    %357 = vector.broadcast %cst_99 : f32 to vector<16x32xf32>
    %358 = arith.mulf %354, %357 : vector<16x32xf32>
    %359 = math.erf %358 : vector<16x32xf32>
    %cst_100 = arith.constant 1.000000e+00 : f32
    %360 = vector.broadcast %cst_100 : f32 to vector<16x32xf32>
    %361 = arith.addf %360, %359 : vector<16x32xf32>
    %362 = arith.mulf %356, %361 : vector<16x32xf32>
    %363 = vector.extract_strided_slice %0 {offsets = [5, 0], sizes = [1, 32], strides = [1, 1]} : vector<24x128xf32> to vector<1x32xf32>
    %364 = vector.extract_strided_slice %0 {offsets = [6, 0], sizes = [1, 32], strides = [1, 1]} : vector<24x128xf32> to vector<1x32xf32>
    %cst_101 = arith.constant dense<0.000000e+00> : vector<16xf32>
    %365 = vector.multi_reduction <add>, %362, %cst_101 [1] : vector<16x32xf32> to vector<16xf32>
    %366 = vector.shape_cast %365 : vector<16xf32> to vector<16x1xf32>
    %cst_102 = arith.constant 3.200000e+01 : f32
    %367 = vector.broadcast %cst_102 : f32 to vector<16x1xf32>
    %368 = arith.divf %366, %367 : vector<16x1xf32>
    %369 = vector.broadcast %368 : vector<16x1xf32> to vector<16x32xf32>
    %370 = arith.subf %362, %369 : vector<16x32xf32>
    %371 = arith.mulf %370, %370 : vector<16x32xf32>
    %cst_103 = arith.constant dense<0.000000e+00> : vector<16xf32>
    %372 = vector.multi_reduction <add>, %371, %cst_103 [1] : vector<16x32xf32> to vector<16xf32>
    %373 = vector.shape_cast %372 : vector<16xf32> to vector<16x1xf32>
    %cst_104 = arith.constant 3.200000e+01 : f32
    %374 = vector.broadcast %cst_104 : f32 to vector<16x1xf32>
    %375 = arith.divf %373, %374 : vector<16x1xf32>
    %376 = vector.broadcast %368 : vector<16x1xf32> to vector<16x32xf32>
    %377 = arith.subf %362, %376 : vector<16x32xf32>
    %cst_105 = arith.constant 9.99999996E-13 : f32
    %378 = vector.broadcast %cst_105 : f32 to vector<16x1xf32>
    %379 = arith.addf %375, %378 : vector<16x1xf32>
    %380 = math.rsqrt %379 : vector<16x1xf32>
    %381 = vector.broadcast %380 : vector<16x1xf32> to vector<16x32xf32>
    %382 = arith.mulf %377, %381 : vector<16x32xf32>
    %383 = vector.broadcast %363 : vector<1x32xf32> to vector<16x32xf32>
    %384 = arith.mulf %382, %383 : vector<16x32xf32>
    %385 = vector.broadcast %364 : vector<1x32xf32> to vector<16x32xf32>
    %386 = arith.addf %384, %385 : vector<16x32xf32>
    %c0_106 = arith.constant 0 : index
    %c0_107 = arith.constant 0 : index
    %387 = vector.load %arg7[%c0_106, %c0_107] : memref<32x128xf32, #tpu.memory_space<vmem>>, vector<32x128xf32>
    %cst_108 = arith.constant dense<0.000000e+00> : vector<16x128xf32>
    %388 = tpu.matmul %386, %387, %cst_108 {dimension_numbers = #tpu.dot_dimension_numbers<[1], [0], [0], [1], [0, 0, 1, 1], [], []>} : vector<16x32xf32>, vector<32x128xf32>, vector<16x128xf32> -> vector<16x128xf32>
    %389 = vector.extract_strided_slice %0 {offsets = [7, 0], sizes = [1, 128], strides = [1, 1]} : vector<24x128xf32> to vector<1x128xf32>
    %390 = vector.broadcast %389 : vector<1x128xf32> to vector<16x128xf32>
    %391 = arith.addf %388, %390 : vector<16x128xf32>
    %c0_109 = arith.constant 0 : index
    %c0_110 = arith.constant 0 : index
    %392 = vector.load %arg8[%c0_109, %c0_110] : memref<16x128xf32, #tpu.memory_space<vmem>>, vector<16x128xf32>
    tpu.vector_store %arg8[%c0_109, %c0_110], %391 {strides = array<i32>} : memref<16x128xf32, #tpu.memory_space<vmem>>, vector<16x128xf32>,
    return
  }
  func.func @transform_0(%arg0: i32) -> (i32, i32) {
    %c0_i32 = arith.constant 0 : i32
    %c0_i32_0 = arith.constant 0 : i32
    return %arg0, %c0_i32 : i32, i32
  }
  func.func @transform_1(%arg0: i32) -> (i32, i32) {
    %c0_i32 = arith.constant 0 : i32
    %c0_i32_0 = arith.constant 0 : i32
    %c0_i32_1 = arith.constant 0 : i32
    return %c0_i32, %c0_i32_0 : i32, i32
  }
  func.func @transform_2(%arg0: i32) -> (i32, i32, i32) {
    %c0_i32 = arith.constant 0 : i32
    %c0_i32_0 = arith.constant 0 : i32
    %c0_i32_1 = arith.constant 0 : i32
    %c0_i32_2 = arith.constant 0 : i32
    return %c0_i32, %c0_i32_0, %c0_i32_1 : i32, i32, i32
  }
  func.func @transform_3(%arg0: i32) -> (i32, i32, i32) {
    %c0_i32 = arith.constant 0 : i32
    %c0_i32_0 = arith.constant 0 : i32
    %c0_i32_1 = arith.constant 0 : i32
    %c0_i32_2 = arith.constant 0 : i32
    return %c0_i32, %c0_i32_0, %c0_i32_1 : i32, i32, i32
  }
  func.func @transform_4(%arg0: i32) -> (i32, i32, i32) {
    %c0_i32 = arith.constant 0 : i32
    %c0_i32_0 = arith.constant 0 : i32
    %c0_i32_1 = arith.constant 0 : i32
    %c0_i32_2 = arith.constant 0 : i32
    return %c0_i32, %c0_i32_0, %c0_i32_1 : i32, i32, i32
  }
  func.func @transform_5(%arg0: i32) -> (i32, i32) {
    %c0_i32 = arith.constant 0 : i32
    %c0_i32_0 = arith.constant 0 : i32
    %c0_i32_1 = arith.constant 0 : i32
    return %c0_i32, %c0_i32_0 : i32, i32
  }
  func.func @transform_6(%arg0: i32) -> (i32, i32) {
    %c0_i32 = arith.constant 0 : i32
    %c0_i32_0 = arith.constant 0 : i32
    %c0_i32_1 = arith.constant 0 : i32
    return %c0_i32, %c0_i32_0 : i32, i32
  }
  func.func @transform_7(%arg0: i32) -> (i32, i32) {
    %c0_i32 = arith.constant 0 : i32
    %c0_i32_0 = arith.constant 0 : i32
    return %arg0, %c0_i32 : i32, i32
  }
}

</mosaic_0001>

<llo_original>
// kernel: roberta_prelayernorm_mlm.1
$region0: #{roberta_prelayernorm_mlm.1}
  #allocation0 [shape = 'u32[]', space=smem, size = 0x4, offset = 0x4, fixed_abs, tag = 'smem constant byte address 0x4 - core index']
  #allocation1 [shape = 'u32[144,128]{1,0:T(1,128)}', space=vmem, size = 0x12000, scoped, tag = 'internal scratch']
  %s0 = inlined_call_operand.vmem [shape: f32[32,32], index: 0, kind: input, shape index: {}]
  %s1 = inlined_call_operand.vmem [shape: f32[24,128], index: 1, kind: input, shape index: {}]
  %s2 = inlined_call_operand.vmem [shape: f32[2,32,128], index: 2, kind: input, shape index: {}]
  %s3 = inlined_call_operand.vmem [shape: f32[2,32,64], index: 3, kind: input, shape index: {}]
  %s4 = inlined_call_operand.vmem [shape: f32[2,64,32], index: 4, kind: input, shape index: {}]
  %s5 = inlined_call_operand.vmem [shape: f32[32,32], index: 5, kind: input, shape index: {}]
  %s6 = inlined_call_operand.vmem [shape: f32[32,128], index: 6, kind: input, shape index: {}]
  %s7 = inlined_call_operand.hbm [shape: f32[32,128], index: 7, kind: output, shape index: {}]
  %s8 = sld [smem:[#allocation0]]
  $region61: #{roberta_prelayernorm_mlm.1} parent=0
    _
  %s10 = ssub.s32 1, %s8
  %s11 = scalar_select 0, %s10, %s8
  $region1: #{roberta_prelayernorm_mlm.1} parent=0
    #allocation2 [shape = 'u8[16384]{0}', space=vmem, size = 0x4000, scoped, tag = 'output window, operand 0']
    #allocation3 [shape = 's32[2]{0}', space=sflag, size = 0x8, scoped, tag = 'scoped memory for roberta_prelayernorm_mlm.1']
    %12 = vsyncpa [#allocation3], 0
    %s13 = scalar_lea.sflag [#allocation3], 1
    %14 = vsyncpa %s13, 0
    loop: start=0, step=1, limit=4
    $region2: #{roberta_prelayernorm_mlm.1} parent=1 // loop_pre_header
      _
    $region3: #{roberta_prelayernorm_mlm.1} parent=1 // loop_header
      %s16 = sphi 0, %s20
      %p17 = scmp.ge.s32.totalorder %s16, 4
      %s26 = sphi 0, %s28
      %s29 = sphi 0, %s26
      %s30 = sphi 0, %s29
      %s46 = sphi 0, %s30
      %s50 = sphi 0, %s50
      %s52 = sphi 0, %s50
      %s53 = sphi 0, %s52
      %s67 = sphi 0, %s53
      %s71 = sphi 0, %s71
      %s73 = sphi 0, %s71
      %s74 = sphi 0, %s73
      %s88 = sphi 0, %s74
      %s92 = sphi 0, %s92
      %s94 = sphi 0, %s92
      %s95 = sphi 0, %s94
      %s109 = sphi 0, %s95
      %s113 = sphi 0, %s113
      %s115 = sphi 0, %s113
      %s116 = sphi 0, %s115
      %s130 = sphi 0, %s116
      %s134 = sphi 0, %s134
      %s136 = sphi 0, %s134
      %s137 = sphi 0, %s136
      %s151 = sphi 0, %s137
      %s155 = sphi 0, %s155
      %s157 = sphi 0, %s155
      %s158 = sphi 0, %s157
      %s172 = sphi 0, %s158
      %s178 = sphi 0, %s180
      %s181 = sphi 0, %s178
      %s182 = sphi 0, %s181
      %s198 = sphi 0, %s182
    $region4: #{roberta_prelayernorm_mlm.1} parent=1 // loop_header_branch
      %19 = sbr.rel (%p17) target = $region8
    $region5: #{roberta_prelayernorm_mlm.1} parent=1 // loop_body
      %s21 = ssub.s32 %s16, 1
      %s22 = ssub.s32 %s16, 2
      %s23 = sadd.s32 %s16, 1
      %s24 = ssub.s32 %s16, %s23
      %p25 = scmp.eq.s32.totalorder %s24, 0
      %s27 = sadd.s32 %s26, 1
      %s28 = scalar_select %p25, %s26, %s27
      %p31 = pneg %p25
      %p32 = scmp.eq.s32.totalorder %s16, 1
      %p33 = por %p31, %p32
      %p34 = scmp.ne.s32.totalorder %s26, %s29
      %p35 = scmp.eq.s32.totalorder %s16, 0
      %p36 = por %p34, %p35
      %p37 = scmp.ne.s32.totalorder %s26, %s29
      %p38 = scmp.eq.s32.totalorder %s21, 1
      %p39 = por %p37, %p38
      %p40 = scmp.ne.s32.totalorder %s29, %s30
      %p41 = scmp.eq.s32.totalorder %s21, 0
      %p42 = por %p40, %p41
      %p43 = scmp.ne.s32.totalorder %s29, %s30
      %p44 = scmp.eq.s32.totalorder %s22, 1
      %p45 = por %p43, %p44
      %p47 = scmp.ne.s32.totalorder %s30, %s46
      %p48 = scmp.eq.s32.totalorder %s22, 0
      %p49 = por %p47, %p48
      %s51 = sadd.s32 %s50, 1
      %p54 = scmp.eq.s32.totalorder %s16, 1
      %p55 = scmp.ne.s32.totalorder %s50, %s52
      %p56 = scmp.eq.s32.totalorder %s16, 0
      %p57 = por %p55, %p56
      %p58 = scmp.ne.s32.totalorder %s50, %s52
      %p59 = scmp.eq.s32.totalorder %s21, 1
      %p60 = por %p58, %p59
      %p61 = scmp.ne.s32.totalorder %s52, %s53
      %p62 = scmp.eq.s32.totalorder %s21, 0
      %p63 = por %p61, %p62
      %p64 = scmp.ne.s32.totalorder %s52, %s53
      %p65 = scmp.eq.s32.totalorder %s22, 1
      %p66 = por %p64, %p65
      %p68 = scmp.ne.s32.totalorder %s53, %s67
      %p69 = scmp.eq.s32.totalorder %s22, 0
      %p70 = por %p68, %p69
      %s72 = sadd.s32 %s71, 1
      %p75 = scmp.eq.s32.totalorder %s16, 1
      %p76 = scmp.ne.s32.totalorder %s71, %s73
      %p77 = scmp.eq.s32.totalorder %s16, 0
      %p78 = por %p76, %p77
      %p79 = scmp.ne.s32.totalorder %s71, %s73
      %p80 = scmp.eq.s32.totalorder %s21, 1
      %p81 = por %p79, %p80
      %p82 = scmp.ne.s32.totalorder %s73, %s74
      %p83 = scmp.eq.s32.totalorder %s21, 0
      %p84 = por %p82, %p83
      %p85 = scmp.ne.s32.totalorder %s73, %s74
      %p86 = scmp.eq.s32.totalorder %s22, 1
      %p87 = por %p85, %p86
      %p89 = scmp.ne.s32.totalorder %s74, %s88
      %p90 = scmp.eq.s32.totalorder %s22, 0
      %p91 = por %p89, %p90
      %s93 = sadd.s32 %s92, 1
      %p96 = scmp.eq.s32.totalorder %s16, 1
      %p97 = scmp.ne.s32.totalorder %s92, %s94
      %p98 = scmp.eq.s32.totalorder %s16, 0
      %p99 = por %p97, %p98
      %p100 = scmp.ne.s32.totalorder %s92, %s94
      %p101 = scmp.eq.s32.totalorder %s21, 1
      %p102 = por %p100, %p101
      %p103 = scmp.ne.s32.totalorder %s94, %s95
      %p104 = scmp.eq.s32.totalorder %s21, 0
      %p105 = por %p103, %p104
      %p106 = scmp.ne.s32.totalorder %s94, %s95
      %p107 = scmp.eq.s32.totalorder %s22, 1
      %p108 = por %p106, %p107
      %p110 = scmp.ne.s32.totalorder %s95, %s109
      %p111 = scmp.eq.s32.totalorder %s22, 0
      %p112 = por %p110, %p111
      %s114 = sadd.s32 %s113, 1
      %p117 = scmp.eq.s32.totalorder %s16, 1
      %p118 = scmp.ne.s32.totalorder %s113, %s115
      %p119 = scmp.eq.s32.totalorder %s16, 0
      %p120 = por %p118, %p119
      %p121 = scmp.ne.s32.totalorder %s113, %s115
      %p122 = scmp.eq.s32.totalorder %s21, 1
      %p123 = por %p121, %p122
      %p124 = scmp.ne.s32.totalorder %s115, %s116
      %p125 = scmp.eq.s32.totalorder %s21, 0
      %p126 = por %p124, %p125
      %p127 = scmp.ne.s32.totalorder %s115, %s116
      %p128 = scmp.eq.s32.totalorder %s22, 1
      %p129 = por %p127, %p128
      %p131 = scmp.ne.s32.totalorder %s116, %s130
      %p132 = scmp.eq.s32.totalorder %s22, 0
      %p133 = por %p131, %p132
      %s135 = sadd.s32 %s134, 1
      %p138 = scmp.eq.s32.totalorder %s16, 1
      %p139 = scmp.ne.s32.totalorder %s134, %s136
      %p140 = scmp.eq.s32.totalorder %s16, 0
      %p141 = por %p139, %p140
      %p142 = scmp.ne.s32.totalorder %s134, %s136
      %p143 = scmp.eq.s32.totalorder %s21, 1
      %p144 = por %p142, %p143
      %p145 = scmp.ne.s32.totalorder %s136, %s137
      %p146 = scmp.eq.s32.totalorder %s21, 0
      %p147 = por %p145, %p146
      %p148 = scmp.ne.s32.totalorder %s136, %s137
      %p149 = scmp.eq.s32.totalorder %s22, 1
      %p150 = por %p148, %p149
      %p152 = scmp.ne.s32.totalorder %s137, %s151
      %p153 = scmp.eq.s32.totalorder %s22, 0
      %p154 = por %p152, %p153
      %s156 = sadd.s32 %s155, 1
      %p159 = scmp.eq.s32.totalorder %s16, 1
      %p160 = scmp.ne.s32.totalorder %s155, %s157
      %p161 = scmp.eq.s32.totalorder %s16, 0
      %p162 = por %p160, %p161
      %p163 = scmp.ne.s32.totalorder %s155, %s157
      %p164 = scmp.eq.s32.totalorder %s21, 1
      %p165 = por %p163, %p164
      %p166 = scmp.ne.s32.totalorder %s157, %s158
      %p167 = scmp.eq.s32.totalorder %s21, 0
      %p168 = por %p166, %p167
      %p169 = scmp.ne.s32.totalorder %s157, %s158
      %p170 = scmp.eq.s32.totalorder %s22, 1
      %p171 = por %p169, %p170
      %p173 = scmp.ne.s32.totalorder %s158, %s172
      %p174 = scmp.eq.s32.totalorder %s22, 0
      %p175 = por %p173, %p174
      %s176 = ssub.s32 %s16, %s23
      %p177 = scmp.eq.s32.totalorder %s176, 0
      %s179 = sadd.s32 %s178, 1
      %s180 = scalar_select %p177, %s178, %s179
      %p183 = pneg %p177
      %p184 = scmp.eq.s32.totalorder %s16, 1
      %p185 = por %p183, %p184
      %p186 = scmp.ne.s32.totalorder %s178, %s181
      %p187 = scmp.eq.s32.totalorder %s16, 0
      %p188 = por %p186, %p187
      %p189 = scmp.ne.s32.totalorder %s178, %s181
      %p190 = scmp.eq.s32.totalorder %s21, 1
      %p191 = por %p189, %p190
      %p192 = scmp.ne.s32.totalorder %s181, %s182
      %p193 = scmp.eq.s32.totalorder %s21, 0
      %p194 = por %p192, %p193
      %p195 = scmp.ne.s32.totalorder %s181, %s182
      %p196 = scmp.eq.s32.totalorder %s22, 1
      %p197 = por %p195, %p196
      %p199 = scmp.ne.s32.totalorder %s182, %s198
      %p200 = scmp.eq.s32.totalorder %s22, 0
      %p201 = por %p199, %p200
      %p202 = scmp.le.s32.totalorder 1, %s16
      %p203 = scmp.lt.s32.totalorder %s16, 3
      %p204 = pnand %p202, %p203
      %p205 = pneg %p204
      // Predicated region
      $region9: #{roberta_prelayernorm_mlm.1} parent=5 // pred_check
        _
      $region10: #{roberta_prelayernorm_mlm.1} parent=5 // pred_check_branch
        %207 = sbr.rel (%p204) target = $region12
      $region11: #{roberta_prelayernorm_mlm.1} parent=5 // pred_region
        %s208 = ssub.s32 %s16, 1
        // Predicated region
        $region13: #{roberta_prelayernorm_mlm.1} parent=11 // pred_check
          %p209 = pneg %p63
        $region14: #{roberta_prelayernorm_mlm.1} parent=11 // pred_check_branch
          %211 = sbr.rel (%p209) target = $region16
        $region15: #{roberta_prelayernorm_mlm.1} parent=11 // pred_region
          _
        $region16: #{roberta_prelayernorm_mlm.1} parent=11 // pred_fallthru
          _
        // Predicated region
        $region17: #{roberta_prelayernorm_mlm.1} parent=11 // pred_check
          %p212 = pneg %p84
        $region18: #{roberta_prelayernorm_mlm.1} parent=11 // pred_check_branch
          %214 = sbr.rel (%p212) target = $region20
        $region19: #{roberta_prelayernorm_mlm.1} parent=11 // pred_region
          _
        $region20: #{roberta_prelayernorm_mlm.1} parent=11 // pred_fallthru
          _
        // Predicated region
        $region21: #{roberta_prelayernorm_mlm.1} parent=11 // pred_check
          %p215 = pneg %p105
        $region22: #{roberta_prelayernorm_mlm.1} parent=11 // pred_check_branch
          %217 = sbr.rel (%p215) target = $region24
        $region23: #{roberta_prelayernorm_mlm.1} parent=11 // pred_region
          _
        $region24: #{roberta_prelayernorm_mlm.1} parent=11 // pred_fallthru
          _
        // Predicated region
        $region25: #{roberta_prelayernorm_mlm.1} parent=11 // pred_check
          %p218 = pneg %p126
        $region26: #{roberta_prelayernorm_mlm.1} parent=11 // pred_check_branch
          %220 = sbr.rel (%p218) target = $region28
        $region27: #{roberta_prelayernorm_mlm.1} parent=11 // pred_region
          _
        $region28: #{roberta_prelayernorm_mlm.1} parent=11 // pred_fallthru
          _
        // Predicated region
        $region29: #{roberta_prelayernorm_mlm.1} parent=11 // pred_check
          %p221 = pneg %p147
        $region30: #{roberta_prelayernorm_mlm.1} parent=11 // pred_check_branch
          %223 = sbr.rel (%p221) target = $region32
        $region31: #{roberta_prelayernorm_mlm.1} parent=11 // pred_region
          _
        $region32: #{roberta_prelayernorm_mlm.1} parent=11 // pred_fallthru
          _
        // Predicated region
        $region33: #{roberta_prelayernorm_mlm.1} parent=11 // pred_check
          %p224 = pneg %p168
        $region34: #{roberta_prelayernorm_mlm.1} parent=11 // pred_check_branch
          %226 = sbr.rel (%p224) target = $region36
        $region35: #{roberta_prelayernorm_mlm.1} parent=11 // pred_region
          _
        $region36: #{roberta_prelayernorm_mlm.1} parent=11 // pred_fallthru
          _
      $region12: #{roberta_prelayernorm_mlm.1} parent=5 // pred_fallthru
        _
      %p227 = scmp.lt.s32.totalorder %s16, 2
      // Predicated region
      $region37: #{roberta_prelayernorm_mlm.1} parent=5 // pred_check
        %p228 = pneg %p227
      $region38: #{roberta_prelayernorm_mlm.1} parent=5 // pred_check_branch
        %230 = sbr.rel (%p228) target = $region40
      $region39: #{roberta_prelayernorm_mlm.1} parent=5 // pred_region
        // Predicated region
        $region41: #{roberta_prelayernorm_mlm.1} parent=39 // pred_check
          %p231 = pneg %p36
        $region42: #{roberta_prelayernorm_mlm.1} parent=39 // pred_check_branch
          %233 = sbr.rel (%p231) target = $region44
        $region43: #{roberta_prelayernorm_mlm.1} parent=39 // pred_region
          %s234 = smul.u32 2, %s16
          %p235 = scmp.lt.s32.totalorder %s234, 3
          %s236 = scalar_select %p235, %s234, 3
          %s237 = smul.addr %s236, 8
          %s238 = scalar_lea.vmem %s0, %s237
          %s239 = smul.u32 2, %s16
        $region44: #{roberta_prelayernorm_mlm.1} parent=39 // pred_fallthru
          _
      $region40: #{roberta_prelayernorm_mlm.1} parent=5 // pred_fallthru
        _
      %p240 = scmp.le.s32.totalorder 1, %s16
      %p241 = scmp.lt.s32.totalorder %s16, 3
      %p242 = pnand %p240, %p241
      %p243 = pneg %p242
      // Predicated region
      $region45: #{roberta_prelayernorm_mlm.1} parent=5 // pred_check
        _
      $region46: #{roberta_prelayernorm_mlm.1} parent=5 // pred_check_branch
        %245 = sbr.rel (%p242) target = $region48
      $region47: #{roberta_prelayernorm_mlm.1} parent=5 // pred_region
        %s246 = ssub.s32 %s16, 1
        %s247 = smul.u32 2, %s21
        %p248 = scmp.lt.s32.totalorder %s247, 3
        %s249 = scalar_select %p248, %s247, 3
        %s250 = smul.addr %s249, 8
        %s251 = scalar_lea.vmem %s0, %s250
        %p252 = pneg %p42
        %p253 = pneg %p39
        %p254 = pneg %p63
        %p255 = pneg %p60
        %p256 = pneg %p84
        %p257 = pneg %p81
        %p258 = pneg %p105
        %p259 = pneg %p102
        %p260 = pneg %p126
        %p261 = pneg %p123
        %p262 = pneg %p147
        %p263 = pneg %p144
        %p264 = pneg %p168
        %p265 = pneg %p165
        %p266 = pneg %p194
        %p267 = pneg %p191
        %s268 = sand.u32 %s181, 1
        %s269 = scalar_lea.sflag [#allocation3], %s268
        %s270 = sand.u32 %s181, 1
        %s271 = smul.addr %s270, 16
        %s272 = scalar_lea.vmem [#allocation2], %s271
        %s273 = smul.u32 2, %s21
        %p274 = scmp.lt.s32.totalorder %s273, 3
        %s275 = scalar_select %p274, %s273, 3
        %s276 = smul.addr %s275, 8
        %s277 = scalar_lea.vmem %s0, %s276
        %s278 = smul.u32 2, %s21
        %s279 = smul.u32 2, %s21
        %v280 = vld [vmem:[%s1] sm:$0xff]
        %v281 = vld [vmem:[%s1 + $0x8] sm:$0xff]
        %v282 = vld [vmem:[%s1 + $0x10] sm:$0xff]
        %v283 = vld [vmem:[%s277] sm:$0xff]
        %v284 = vld [vmem:[%s277 + $0x8] sm:$0xff]
        %vm285 = vcmask 261120
        %v286 = vsel %vm285, %v283, 0.0
        %287 = vadd.xlane.f32.xlu0 %v286
        %v288 = vpop.xlane.xlu0 %287
        %v289 = vsel %vm285, %v284, 0.0
        %290 = vadd.xlane.f32.xlu0 %v289
        %v291 = vpop.xlane.xlu0 %290
        %v292 = vrcp.pop 32.0
        %v293 = vmul.f32 %v288, %v292
        %v294 = vmul.f32 %v291, %v292
        %v295 = vsub.f32 %v283, %v293
        %v296 = vsub.f32 %v284, %v294
        %v297 = vmul.f32 %v295, %v295
        %v298 = vmul.f32 %v296, %v296
        %v299 = vsel %vm285, %v297, 0.0
        %300 = vadd.xlane.f32.xlu0 %v299
        %v301 = vpop.xlane.xlu0 %300
        %v302 = vsel %vm285, %v298, 0.0
        %303 = vadd.xlane.f32.xlu0 %v302
        %v304 = vpop.xlane.xlu0 %303
        %v305 = vmul.f32 %v301, %v292
        %v306 = vmul.f32 %v304, %v292
        %v307 = vadd.f32 %v305, 1e-12
        %v308 = vadd.f32 %v306, 1e-12
        %v309 = vrsqrt.pop %v307
        %v310 = vrsqrt.pop %v308
        %v311 = vmul.f32 %v295, %v309
        %v312 = vmul.f32 %v296, %v310
        %v313 = vlaneseq
        %v314 = vshrl.u32 %v313, 7
        %v315 = vsub.s32 0, %v314
        %v316 = vrot.slane %v280, %v315
        %v317 = vmul.f32 %v311, %v316
        %v318 = vmul.f32 %v312, %v316
        %v319 = vlaneseq
        %v320 = vshrl.u32 %v319, 7
        %v321 = vsub.s32 1, %v320
        %v322 = vrot.slane %v280, %v321
        %v323 = vadd.f32 %v317, %v322
        %v324 = vadd.f32 %v318, %v322
        %v325 = vld [vmem:[%s2] sm:$0xff]
        %v326 = vld [vmem:[%s2 + $0x8] sm:$0xff]
        %v327 = vld [vmem:[%s2 + $0x10] sm:$0xff]
        %v328 = vld [vmem:[%s2 + $0x18] sm:$0xff]
        %v329 = vsel %vm285, %v323, 0.0
        %330 = vadd.xlane.f32.xlu0 %v329
        %v331 = vpop.xlane.xlu0 %330
        %v332 = vsel %vm285, %v324, 0.0
        %333 = vadd.xlane.f32.xlu0 %v332
        %v334 = vpop.xlane.xlu0 %333
        %v335 = vmul.f32 %v331, %v292
        %v336 = vmul.f32 %v334, %v292
        %v337 = vsub.f32 %v323, %v335
        %v338 = vsub.f32 %v324, %v336
        %v339 = vmul.f32 %v337, %v337
        %v340 = vmul.f32 %v338, %v338
        %v341 = vsel %vm285, %v339, 0.0
        %342 = vadd.xlane.f32.xlu0 %v341
        %v343 = vpop.xlane.xlu0 %342
        %v344 = vsel %vm285, %v340, 0.0
        %345 = vadd.xlane.f32.xlu0 %v344
        %v346 = vpop.xlane.xlu0 %345
        %v347 = vmul.f32 %v343, %v292
        %v348 = vmul.f32 %v346, %v292
        %v349 = vadd.f32 %v347, 1e-12
        %v350 = vadd.f32 %v348, 1e-12
        %v351 = vrsqrt.pop %v349
        %v352 = vrsqrt.pop %v350
        %v353 = vmul.f32 %v337, %v351
        %v354 = vmul.f32 %v338, %v352
        %v355 = vlaneseq
        %v356 = vshrl.u32 %v355, 7
        %v357 = vsub.s32 0, %v356
        %v358 = vrot.slane %v281, %v357
        %v359 = vmul.f32 %v353, %v358
        %v360 = vmul.f32 %v354, %v358
        %v361 = vlaneseq
        %v362 = vshrl.u32 %v361, 7
        %v363 = vsub.s32 1, %v362
        %v364 = vrot.slane %v281, %v363
        %v365 = vadd.f32 %v359, %v364
        %v366 = vadd.f32 %v360, %v364
        %v367 = vlaneseq
        %v368 = vshrl.u32 %v367, 7
        %v369 = vsub.s32 2, %v368
        %v370 = vrot.slane %v281, %v369
        %v372 = vsel %vm285, %v365, 0
        %v375 = vsel %vm285, %v366, 0
        %377 = vmatprep.subr.mxu0 0.0
        %378 = vmatpush1.msra.mxu0 %v325
        %379 = vmatprep.subr.mxu0 0.0
        %380 = vmatpush1.msra.mxu0 %v326
        %381 = vmatprep.subr.mxu0 0.0
        %382 = vmatpush1.msra.mxu0 %v327
        %383 = vmatprep.subr.mxu0 0.0
        %384 = vmatpush1.msra.mxu0 %v328
        %385 = vmatprep.subr.mxu0 0.0
        %386 = vmatpush1.msra.mxu0 0.0
        %387 = vmatprep.subr.mxu0 0.0
        %388 = vmatpush1.msra.mxu0 0.0
        %389 = vmatprep.subr.mxu0 0.0
        %390 = vmatpush1.msra.mxu0 0.0
        %391 = vmatprep.subr.mxu0 0.0
        %392 = vmatpush1.msra.mxu0 0.0
        %393 = vmatprep.subr.mxu0 0.0
        %394 = vmatpush1.msra.mxu0 0.0
        %395 = vmatprep.subr.mxu0 0.0
        %396 = vmatpush1.msra.mxu0 0.0
        %397 = vmatprep.subr.mxu0 0.0
        %398 = vmatpush1.msra.mxu0 0.0
        %399 = vmatprep.subr.mxu0 0.0
        %400 = vmatpush1.msra.mxu0 0.0
        %401 = vmatprep.subr.mxu0 0.0
        %402 = vmatpush1.msra.mxu0 0.0
        %403 = vmatprep.subr.mxu0 0.0
        %404 = vmatpush1.msra.mxu0 0.0
        %405 = vmatprep.subr.mxu0 0.0
        %406 = vmatpush1.msra.mxu0 0.0
        %407 = vmatprep.subr.mxu0 0.0
        %408 = vmatpush1.msra.mxu0 0.0
        %409 = vmatprep.subr.mxu0 0.0
        %410 = vmatpush1.msra.mxu0 0.0
        %411 = vmatprep.subr.mxu0 0.0
        %412 = vmatpush1.msra.mxu0 0.0
        %413 = vmatprep.subr.mxu0 0.0
        %414 = vmatpush1.msra.mxu0 0.0
        %415 = vmatprep.subr.mxu0 0.0
        %416 = vmatpush1.msra.mxu0 0.0
        %417 = vmatprep.subr.mxu0 0.0
        %418 = vmatpush1.msra.mxu0 0.0
        %419 = vmatprep.subr.mxu0 0.0
        %420 = vmatpush1.msra.mxu0 0.0
        %421 = vmatprep.subr.mxu0 0.0
        %422 = vmatpush1.msra.mxu0 0.0
        %423 = vmatprep.subr.mxu0 0.0
        %424 = vmatpush1.msra.mxu0 0.0
        %425 = vmatprep.subr.mxu0 0.0
        %426 = vmatpush1.msra.mxu0 0.0
        %427 = vmatprep.subr.mxu0 0.0
        %428 = vmatpush1.msra.mxu0 0.0
        %429 = vmatprep.subr.mxu0 0.0
        %430 = vmatpush1.msra.mxu0 0.0
        %431 = vmatprep.subr.mxu0 0.0
        %432 = vmatpush1.msra.mxu0 0.0
        %433 = vmatprep.subr.mxu0 0.0
        %434 = vmatpush1.msra.mxu0 0.0
        %435 = vmatprep.subr.mxu0 0.0
        %436 = vmatpush1.msra.mxu0 0.0
        %437 = vmatprep.subr.mxu0 0.0
        %438 = vmatpush1.msra.mxu0 0.0
        %439 = vmatprep.subr.mxu0 0.0
        %440 = vmatpush1.msra.mxu0 0.0
        %441 = vmatprep.mubr.f32.mxu0 0.0
        %442 = vmatmul.mubr.f32.gmra.mrb[0].mxu0 %v372
        %v443 = vpop.f32.mrb[0].mxu0
        %v444 = vadd.f32 %v370, %v443
        %v445 = vpop.f32.mrb[0].mxu0
        %446 = vmatprep.mubr.f32.mxu0 0.0
        %447 = vmatmul.mubr.f32.gmra.mrb[0].mxu0 %v375
        %v448 = vpop.f32.mrb[0].mxu0
        %v449 = vadd.f32 %v370, %v448
        %v450 = vpop.f32.mrb[0].mxu0
        %451 = vdwg.mxu0
        %453 = vrot.lane.b32.xlu0 %v444, 96
        %v454 = vpop.permute.xlu0 %453
        %vm455 = vcmask 64512
        %v456 = vsel %vm455, %v444, 0
        %v458 = vsel %vm455, %v454, 0
        %460 = vmatprep.subr.mxu0 0.0
        %461 = vmatpush1.xpose.msra.mxu0 %v458
        %462 = vmatprep.subr.mxu0 0.0
        %463 = vmatpush1.xpose.msra.mxu0 0.0
        %464 = vmatprep.subr.mxu0 0.0
        %465 = vmatpush1.xpose.msra.mxu0 0.0
        %466 = vmatprep.subr.mxu0 0.0
        %467 = vmatpush1.xpose.msra.mxu0 0.0
        %468 = vmatprep.subr.mxu0 0.0
        %469 = vmatpush1.xpose.msra.mxu0 0.0
        %470 = vmatprep.subr.mxu0 0.0
        %471 = vmatpush1.xpose.msra.mxu0 0.0
        %472 = vmatprep.subr.mxu0 0.0
        %473 = vmatpush1.xpose.msra.mxu0 0.0
        %474 = vmatprep.subr.mxu0 0.0
        %475 = vmatpush1.xpose.msra.mxu0 0.0
        %476 = vmatprep.subr.mxu0 0.0
        %477 = vmatpush1.xpose.msra.mxu0 0.0
        %478 = vmatprep.subr.mxu0 0.0
        %479 = vmatpush1.xpose.msra.mxu0 0.0
        %480 = vmatprep.subr.mxu0 0.0
        %481 = vmatpush1.xpose.msra.mxu0 0.0
        %482 = vmatprep.subr.mxu0 0.0
        %483 = vmatpush1.xpose.msra.mxu0 0.0
        %484 = vmatprep.subr.mxu0 0.0
        %485 = vmatpush1.xpose.msra.mxu0 0.0
        %486 = vmatprep.subr.mxu0 0.0
        %487 = vmatpush1.xpose.msra.mxu0 0.0
        %488 = vmatprep.subr.mxu0 0.0
        %489 = vmatpush1.xpose.msra.mxu0 0.0
        %490 = vmatprep.subr.mxu0 0.0
        %491 = vmatpush1.xpose.msra.mxu0 0.0
        %492 = vmatprep.subr.mxu0 0.0
        %493 = vmatpush1.xpose.msra.mxu0 0.0
        %494 = vmatprep.subr.mxu0 0.0
        %495 = vmatpush1.xpose.msra.mxu0 0.0
        %496 = vmatprep.subr.mxu0 0.0
        %497 = vmatpush1.xpose.msra.mxu0 0.0
        %498 = vmatprep.subr.mxu0 0.0
        %499 = vmatpush1.xpose.msra.mxu0 0.0
        %500 = vmatprep.subr.mxu0 0.0
        %501 = vmatpush1.xpose.msra.mxu0 0.0
        %502 = vmatprep.subr.mxu0 0.0
        %503 = vmatpush1.xpose.msra.mxu0 0.0
        %504 = vmatprep.subr.mxu0 0.0
        %505 = vmatpush1.xpose.msra.mxu0 0.0
        %506 = vmatprep.subr.mxu0 0.0
        %507 = vmatpush1.xpose.msra.mxu0 0.0
        %508 = vmatprep.subr.mxu0 0.0
        %509 = vmatpush1.xpose.msra.mxu0 0.0
        %510 = vmatprep.subr.mxu0 0.0
        %511 = vmatpush1.xpose.msra.mxu0 0.0
        %512 = vmatprep.subr.mxu0 0.0
        %513 = vmatpush1.xpose.msra.mxu0 0.0
        %514 = vmatprep.subr.mxu0 0.0
        %515 = vmatpush1.xpose.msra.mxu0 0.0
        %516 = vmatprep.subr.mxu0 0.0
        %517 = vmatpush1.xpose.msra.mxu0 0.0
        %518 = vmatprep.subr.mxu0 0.0
        %519 = vmatpush1.xpose.msra.mxu0 0.0
        %520 = vmatprep.subr.mxu0 0.0
        %521 = vmatpush1.xpose.msra.mxu0 0.0
        %522 = vmatprep.subr.mxu0 0.0
        %523 = vmatpush1.xpose.msra.mxu0 0.0
        %524 = vmatprep.mubr.f32.mxu0 0.0
        %525 = vmatmul.mubr.f32.gmra.mrb[0].mxu0 %v456
        %v526 = vpop.f32.mrb[0].mxu0
        %v527 = vadd.f32 0.0, %v526
        %v528 = vpop.f32.mrb[0].mxu0
        %529 = vdwg.mxu0
        %531 = vrot.lane.b32.xlu0 %v449, 96
        %v532 = vpop.permute.xlu0 %531
        %v533 = vsel %vm455, %v449, 0
        %v535 = vsel %vm455, %v532, 0
        %537 = vmatprep.subr.mxu0 0.0
        %538 = vmatpush1.xpose.msra.mxu0 %v535
        %539 = vmatprep.subr.mxu0 0.0
        %540 = vmatpush1.xpose.msra.mxu0 0.0
        %541 = vmatprep.subr.mxu0 0.0
        %542 = vmatpush1.xpose.msra.mxu0 0.0
        %543 = vmatprep.subr.mxu0 0.0
        %544 = vmatpush1.xpose.msra.mxu0 0.0
        %545 = vmatprep.subr.mxu0 0.0
        %546 = vmatpush1.xpose.msra.mxu0 0.0
        %547 = vmatprep.subr.mxu0 0.0
        %548 = vmatpush1.xpose.msra.mxu0 0.0
        %549 = vmatprep.subr.mxu0 0.0
        %550 = vmatpush1.xpose.msra.mxu0 0.0
        %551 = vmatprep.subr.mxu0 0.0
        %552 = vmatpush1.xpose.msra.mxu0 0.0
        %553 = vmatprep.subr.mxu0 0.0
        %554 = vmatpush1.xpose.msra.mxu0 0.0
        %555 = vmatprep.subr.mxu0 0.0
        %556 = vmatpush1.xpose.msra.mxu0 0.0
        %557 = vmatprep.subr.mxu0 0.0
        %558 = vmatpush1.xpose.msra.mxu0 0.0
        %559 = vmatprep.subr.mxu0 0.0
        %560 = vmatpush1.xpose.msra.mxu0 0.0
        %561 = vmatprep.subr.mxu0 0.0
        %562 = vmatpush1.xpose.msra.mxu0 0.0
        %563 = vmatprep.subr.mxu0 0.0
        %564 = vmatpush1.xpose.msra.mxu0 0.0
        %565 = vmatprep.subr.mxu0 0.0
        %566 = vmatpush1.xpose.msra.mxu0 0.0
        %567 = vmatprep.subr.mxu0 0.0
        %568 = vmatpush1.xpose.msra.mxu0 0.0
        %569 = vmatprep.subr.mxu0 0.0
        %570 = vmatpush1.xpose.msra.mxu0 0.0
        %571 = vmatprep.subr.mxu0 0.0
        %572 = vmatpush1.xpose.msra.mxu0 0.0
        %573 = vmatprep.subr.mxu0 0.0
        %574 = vmatpush1.xpose.msra.mxu0 0.0
        %575 = vmatprep.subr.mxu0 0.0
        %576 = vmatpush1.xpose.msra.mxu0 0.0
        %577 = vmatprep.subr.mxu0 0.0
        %578 = vmatpush1.xpose.msra.mxu0 0.0
        %579 = vmatprep.subr.mxu0 0.0
        %580 = vmatpush1.xpose.msra.mxu0 0.0
        %581 = vmatprep.subr.mxu0 0.0
        %582 = vmatpush1.xpose.msra.mxu0 0.0
        %583 = vmatprep.subr.mxu0 0.0
        %584 = vmatpush1.xpose.msra.mxu0 0.0
        %585 = vmatprep.subr.mxu0 0.0
        %586 = vmatpush1.xpose.msra.mxu0 0.0
        %587 = vmatprep.subr.mxu0 0.0
        %588 = vmatpush1.xpose.msra.mxu0 0.0
        %589 = vmatprep.subr.mxu0 0.0
        %590 = vmatpush1.xpose.msra.mxu0 0.0
        %591 = vmatprep.subr.mxu0 0.0
        %592 = vmatpush1.xpose.msra.mxu0 0.0
        %593 = vmatprep.subr.mxu0 0.0
        %594 = vmatpush1.xpose.msra.mxu0 0.0
        %595 = vmatprep.subr.mxu0 0.0
        %596 = vmatpush1.xpose.msra.mxu0 0.0
        %597 = vmatprep.subr.mxu0 0.0
        %598 = vmatpush1.xpose.msra.mxu0 0.0
        %599 = vmatprep.subr.mxu0 0.0
        %600 = vmatpush1.xpose.msra.mxu0 0.0
        %601 = vmatprep.mubr.f32.mxu0 0.0
        %602 = vmatmul.mubr.f32.gmra.mrb[0].mxu0 %v533
        %v603 = vpop.f32.mrb[0].mxu0
        %v604 = vadd.f32 0.0, %v603
        %v605 = vpop.f32.mrb[0].mxu0
        %606 = vdwg.mxu0
        %v607 = vsel %vm455, %v527, -inf
        %608 = vmax.xlane.f32.xlu0 %v607
        %v609 = vpop.xlane.xlu0 %608
        %v610 = vsel %vm455, %v604, -inf
        %611 = vmax.xlane.f32.xlu0 %v610
        %v612 = vpop.xlane.xlu0 %611
        %v613 = vsub.f32 %v527, %v609
        %v614 = vsub.f32 %v604, %v612
        %v615 = vmul.f32 %v613, 1.442695
        %v616 = vpow.pop %v615
        %v617 = vmul.f32 %v614, 1.442695
        %v618 = vpow.pop %v617
        %v619 = vsel %vm455, %v616, 0.0
        %620 = vadd.xlane.f32.xlu0 %v619
        %v621 = vpop.xlane.xlu0 %620
        %v622 = vsel %vm455, %v618, 0.0
        %623 = vadd.xlane.f32.xlu0 %v622
        %v624 = vpop.xlane.xlu0 %623
        %v625 = vrcp.pop %v621
        %v626 = vrcp.pop %v624
        %v627 = vmul.f32 %v616, %v625
        %v628 = vmul.f32 %v618, %v626
        %629 = vrot.lane.b32.xlu0 %v444, 64
        %v630 = vpop.permute.xlu0 %629
        %v633 = vsel %vm455, %v627, 0
        %635 = vmatprep.subr.mxu0 0.0
        %636 = vmatpush1.msra.mxu0 %v630
        %637 = vmatprep.subr.mxu0 0.0
        %638 = vmatpush1.msra.mxu0 0.0
        %639 = vmatprep.subr.mxu0 0.0
        %640 = vmatpush1.msra.mxu0 0.0
        %641 = vmatprep.subr.mxu0 0.0
        %642 = vmatpush1.msra.mxu0 0.0
        %643 = vmatprep.subr.mxu0 0.0
        %644 = vmatpush1.msra.mxu0 0.0
        %645 = vmatprep.subr.mxu0 0.0
        %646 = vmatpush1.msra.mxu0 0.0
        %647 = vmatprep.subr.mxu0 0.0
        %648 = vmatpush1.msra.mxu0 0.0
        %649 = vmatprep.subr.mxu0 0.0
        %650 = vmatpush1.msra.mxu0 0.0
        %651 = vmatprep.subr.mxu0 0.0
        %652 = vmatpush1.msra.mxu0 0.0
        %653 = vmatprep.subr.mxu0 0.0
        %654 = vmatpush1.msra.mxu0 0.0
        %655 = vmatprep.subr.mxu0 0.0
        %656 = vmatpush1.msra.mxu0 0.0
        %657 = vmatprep.subr.mxu0 0.0
        %658 = vmatpush1.msra.mxu0 0.0
        %659 = vmatprep.subr.mxu0 0.0
        %660 = vmatpush1.msra.mxu0 0.0
        %661 = vmatprep.subr.mxu0 0.0
        %662 = vmatpush1.msra.mxu0 0.0
        %663 = vmatprep.subr.mxu0 0.0
        %664 = vmatpush1.msra.mxu0 0.0
        %665 = vmatprep.subr.mxu0 0.0
        %666 = vmatpush1.msra.mxu0 0.0
        %667 = vmatprep.subr.mxu0 0.0
        %668 = vmatpush1.msra.mxu0 0.0
        %669 = vmatprep.subr.mxu0 0.0
        %670 = vmatpush1.msra.mxu0 0.0
        %671 = vmatprep.subr.mxu0 0.0
        %672 = vmatpush1.msra.mxu0 0.0
        %673 = vmatprep.subr.mxu0 0.0
        %674 = vmatpush1.msra.mxu0 0.0
        %675 = vmatprep.subr.mxu0 0.0
        %676 = vmatpush1.msra.mxu0 0.0
        %677 = vmatprep.subr.mxu0 0.0
        %678 = vmatpush1.msra.mxu0 0.0
        %679 = vmatprep.subr.mxu0 0.0
        %680 = vmatpush1.msra.mxu0 0.0
        %681 = vmatprep.subr.mxu0 0.0
        %682 = vmatpush1.msra.mxu0 0.0
        %683 = vmatprep.subr.mxu0 0.0
        %684 = vmatpush1.msra.mxu0 0.0
        %685 = vmatprep.subr.mxu0 0.0
        %686 = vmatpush1.msra.mxu0 0.0
        %687 = vmatprep.subr.mxu0 0.0
        %688 = vmatpush1.msra.mxu0 0.0
        %689 = vmatprep.subr.mxu0 0.0
        %690 = vmatpush1.msra.mxu0 0.0
        %691 = vmatprep.subr.mxu0 0.0
        %692 = vmatpush1.msra.mxu0 0.0
        %693 = vmatprep.subr.mxu0 0.0
        %694 = vmatpush1.msra.mxu0 0.0
        %695 = vmatprep.subr.mxu0 0.0
        %696 = vmatpush1.msra.mxu0 0.0
        %697 = vmatprep.subr.mxu0 0.0
        %698 = vmatpush1.msra.mxu0 0.0
        %699 = vmatprep.mubr.f32.mxu0 0.0
        %700 = vmatmul.mubr.f32.gmra.mrb[0].mxu0 %v633
        %v701 = vpop.f32.mrb[0].mxu0
        %v702 = vadd.f32 0.0, %v701
        %v703 = vpop.f32.mrb[0].mxu0
        %704 = vdwg.mxu0
        %705 = vrot.lane.b32.xlu0 %v449, 64
        %v706 = vpop.permute.xlu0 %705
        %v709 = vsel %vm455, %v628, 0
        %711 = vmatprep.subr.mxu0 0.0
        %712 = vmatpush1.msra.mxu0 %v706
        %713 = vmatprep.subr.mxu0 0.0
        %714 = vmatpush1.msra.mxu0 0.0
        %715 = vmatprep.subr.mxu0 0.0
        %716 = vmatpush1.msra.mxu0 0.0
        %717 = vmatprep.subr.mxu0 0.0
        %718 = vmatpush1.msra.mxu0 0.0
        %719 = vmatprep.subr.mxu0 0.0
        %720 = vmatpush1.msra.mxu0 0.0
        %721 = vmatprep.subr.mxu0 0.0
        %722 = vmatpush1.msra.mxu0 0.0
        %723 = vmatprep.subr.mxu0 0.0
        %724 = vmatpush1.msra.mxu0 0.0
        %725 = vmatprep.subr.mxu0 0.0
        %726 = vmatpush1.msra.mxu0 0.0
        %727 = vmatprep.subr.mxu0 0.0
        %728 = vmatpush1.msra.mxu0 0.0
        %729 = vmatprep.subr.mxu0 0.0
        %730 = vmatpush1.msra.mxu0 0.0
        %731 = vmatprep.subr.mxu0 0.0
        %732 = vmatpush1.msra.mxu0 0.0
        %733 = vmatprep.subr.mxu0 0.0
        %734 = vmatpush1.msra.mxu0 0.0
        %735 = vmatprep.subr.mxu0 0.0
        %736 = vmatpush1.msra.mxu0 0.0
        %737 = vmatprep.subr.mxu0 0.0
        %738 = vmatpush1.msra.mxu0 0.0
        %739 = vmatprep.subr.mxu0 0.0
        %740 = vmatpush1.msra.mxu0 0.0
        %741 = vmatprep.subr.mxu0 0.0
        %742 = vmatpush1.msra.mxu0 0.0
        %743 = vmatprep.subr.mxu0 0.0
        %744 = vmatpush1.msra.mxu0 0.0
        %745 = vmatprep.subr.mxu0 0.0
        %746 = vmatpush1.msra.mxu0 0.0
        %747 = vmatprep.subr.mxu0 0.0
        %748 = vmatpush1.msra.mxu0 0.0
        %749 = vmatprep.subr.mxu0 0.0
        %750 = vmatpush1.msra.mxu0 0.0
        %751 = vmatprep.subr.mxu0 0.0
        %752 = vmatpush1.msra.mxu0 0.0
        %753 = vmatprep.subr.mxu0 0.0
        %754 = vmatpush1.msra.mxu0 0.0
        %755 = vmatprep.subr.mxu0 0.0
        %756 = vmatpush1.msra.mxu0 0.0
        %757 = vmatprep.subr.mxu0 0.0
        %758 = vmatpush1.msra.mxu0 0.0
        %759 = vmatprep.subr.mxu0 0.0
        %760 = vmatpush1.msra.mxu0 0.0
        %761 = vmatprep.subr.mxu0 0.0
        %762 = vmatpush1.msra.mxu0 0.0
        %763 = vmatprep.subr.mxu0 0.0
        %764 = vmatpush1.msra.mxu0 0.0
        %765 = vmatprep.subr.mxu0 0.0
        %766 = vmatpush1.msra.mxu0 0.0
        %767 = vmatprep.subr.mxu0 0.0
        %768 = vmatpush1.msra.mxu0 0.0
        %769 = vmatprep.subr.mxu0 0.0
        %770 = vmatpush1.msra.mxu0 0.0
        %771 = vmatprep.subr.mxu0 0.0
        %772 = vmatpush1.msra.mxu0 0.0
        %773 = vmatprep.subr.mxu0 0.0
        %774 = vmatpush1.msra.mxu0 0.0
        %775 = vmatprep.mubr.f32.mxu0 0.0
        %776 = vmatmul.mubr.f32.gmra.mrb[0].mxu0 %v709
        %v777 = vpop.f32.mrb[0].mxu0
        %v778 = vadd.f32 0.0, %v777
        %v779 = vpop.f32.mrb[0].mxu0
        %780 = vdwg.mxu0
        %781 = vrot.lane.b32.xlu0 %v444, 120
        %v782 = vpop.permute.xlu0 %781
        %783 = vrot.lane.b32.xlu0 %v444, 88
        %v784 = vpop.permute.xlu0 %783
        %v785 = vsel %vm455, %v782, 0
        %v787 = vsel %vm455, %v784, 0
        %789 = vmatprep.subr.mxu0 0.0
        %790 = vmatpush1.xpose.msra.mxu0 %v787
        %791 = vmatprep.subr.mxu0 0.0
        %792 = vmatpush1.xpose.msra.mxu0 0.0
        %793 = vmatprep.subr.mxu0 0.0
        %794 = vmatpush1.xpose.msra.mxu0 0.0
        %795 = vmatprep.subr.mxu0 0.0
        %796 = vmatpush1.xpose.msra.mxu0 0.0
        %797 = vmatprep.subr.mxu0 0.0
        %798 = vmatpush1.xpose.msra.mxu0 0.0
        %799 = vmatprep.subr.mxu0 0.0
        %800 = vmatpush1.xpose.msra.mxu0 0.0
        %801 = vmatprep.subr.mxu0 0.0
        %802 = vmatpush1.xpose.msra.mxu0 0.0
        %803 = vmatprep.subr.mxu0 0.0
        %804 = vmatpush1.xpose.msra.mxu0 0.0
        %805 = vmatprep.subr.mxu0 0.0
        %806 = vmatpush1.xpose.msra.mxu0 0.0
        %807 = vmatprep.subr.mxu0 0.0
        %808 = vmatpush1.xpose.msra.mxu0 0.0
        %809 = vmatprep.subr.mxu0 0.0
        %810 = vmatpush1.xpose.msra.mxu0 0.0
        %811 = vmatprep.subr.mxu0 0.0
        %812 = vmatpush1.xpose.msra.mxu0 0.0
        %813 = vmatprep.subr.mxu0 0.0
        %814 = vmatpush1.xpose.msra.mxu0 0.0
        %815 = vmatprep.subr.mxu0 0.0
        %816 = vmatpush1.xpose.msra.mxu0 0.0
        %817 = vmatprep.subr.mxu0 0.0
        %818 = vmatpush1.xpose.msra.mxu0 0.0
        %819 = vmatprep.subr.mxu0 0.0
        %820 = vmatpush1.xpose.msra.mxu0 0.0
        %821 = vmatprep.subr.mxu0 0.0
        %822 = vmatpush1.xpose.msra.mxu0 0.0
        %823 = vmatprep.subr.mxu0 0.0
        %824 = vmatpush1.xpose.msra.mxu0 0.0
        %825 = vmatprep.subr.mxu0 0.0
        %826 = vmatpush1.xpose.msra.mxu0 0.0
        %827 = vmatprep.subr.mxu0 0.0
        %828 = vmatpush1.xpose.msra.mxu0 0.0
        %829 = vmatprep.subr.mxu0 0.0
        %830 = vmatpush1.xpose.msra.mxu0 0.0
        %831 = vmatprep.subr.mxu0 0.0
        %832 = vmatpush1.xpose.msra.mxu0 0.0
        %833 = vmatprep.subr.mxu0 0.0
        %834 = vmatpush1.xpose.msra.mxu0 0.0
        %835 = vmatprep.subr.mxu0 0.0
        %836 = vmatpush1.xpose.msra.mxu0 0.0
        %837 = vmatprep.subr.mxu0 0.0
        %838 = vmatpush1.xpose.msra.mxu0 0.0
        %839 = vmatprep.subr.mxu0 0.0
        %840 = vmatpush1.xpose.msra.mxu0 0.0
        %841 = vmatprep.subr.mxu0 0.0
        %842 = vmatpush1.xpose.msra.mxu0 0.0
        %843 = vmatprep.subr.mxu0 0.0
        %844 = vmatpush1.xpose.msra.mxu0 0.0
        %845 = vmatprep.subr.mxu0 0.0
        %846 = vmatpush1.xpose.msra.mxu0 0.0
        %847 = vmatprep.subr.mxu0 0.0
        %848 = vmatpush1.xpose.msra.mxu0 0.0
        %849 = vmatprep.subr.mxu0 0.0
        %850 = vmatpush1.xpose.msra.mxu0 0.0
        %851 = vmatprep.subr.mxu0 0.0
        %852 = vmatpush1.xpose.msra.mxu0 0.0
        %853 = vmatprep.mubr.f32.mxu0 0.0
        %854 = vmatmul.mubr.f32.gmra.mrb[0].mxu0 %v785
        %v855 = vpop.f32.mrb[0].mxu0
        %v856 = vadd.f32 0.0, %v855
        %v857 = vpop.f32.mrb[0].mxu0
        %858 = vdwg.mxu0
        %859 = vrot.lane.b32.xlu0 %v449, 120
        %v860 = vpop.permute.xlu0 %859
        %861 = vrot.lane.b32.xlu0 %v449, 88
        %v862 = vpop.permute.xlu0 %861
        %v863 = vsel %vm455, %v860, 0
        %v865 = vsel %vm455, %v862, 0
        %867 = vmatprep.subr.mxu0 0.0
        %868 = vmatpush1.xpose.msra.mxu0 %v865
        %869 = vmatprep.subr.mxu0 0.0
        %870 = vmatpush1.xpose.msra.mxu0 0.0
        %871 = vmatprep.subr.mxu0 0.0
        %872 = vmatpush1.xpose.msra.mxu0 0.0
        %873 = vmatprep.subr.mxu0 0.0
        %874 = vmatpush1.xpose.msra.mxu0 0.0
        %875 = vmatprep.subr.mxu0 0.0
        %876 = vmatpush1.xpose.msra.mxu0 0.0
        %877 = vmatprep.subr.mxu0 0.0
        %878 = vmatpush1.xpose.msra.mxu0 0.0
        %879 = vmatprep.subr.mxu0 0.0
        %880 = vmatpush1.xpose.msra.mxu0 0.0
        %881 = vmatprep.subr.mxu0 0.0
        %882 = vmatpush1.xpose.msra.mxu0 0.0
        %883 = vmatprep.subr.mxu0 0.0
        %884 = vmatpush1.xpose.msra.mxu0 0.0
        %885 = vmatprep.subr.mxu0 0.0
        %886 = vmatpush1.xpose.msra.mxu0 0.0
        %887 = vmatprep.subr.mxu0 0.0
        %888 = vmatpush1.xpose.msra.mxu0 0.0
        %889 = vmatprep.subr.mxu0 0.0
        %890 = vmatpush1.xpose.msra.mxu0 0.0
        %891 = vmatprep.subr.mxu0 0.0
        %892 = vmatpush1.xpose.msra.mxu0 0.0
        %893 = vmatprep.subr.mxu0 0.0
        %894 = vmatpush1.xpose.msra.mxu0 0.0
        %895 = vmatprep.subr.mxu0 0.0
        %896 = vmatpush1.xpose.msra.mxu0 0.0
        %897 = vmatprep.subr.mxu0 0.0
        %898 = vmatpush1.xpose.msra.mxu0 0.0
        %899 = vmatprep.subr.mxu0 0.0
        %900 = vmatpush1.xpose.msra.mxu0 0.0
        %901 = vmatprep.subr.mxu0 0.0
        %902 = vmatpush1.xpose.msra.mxu0 0.0
        %903 = vmatprep.subr.mxu0 0.0
        %904 = vmatpush1.xpose.msra.mxu0 0.0
        %905 = vmatprep.subr.mxu0 0.0
        %906 = vmatpush1.xpose.msra.mxu0 0.0
        %907 = vmatprep.subr.mxu0 0.0
        %908 = vmatpush1.xpose.msra.mxu0 0.0
        %909 = vmatprep.subr.mxu0 0.0
        %910 = vmatpush1.xpose.msra.mxu0 0.0
        %911 = vmatprep.subr.mxu0 0.0
        %912 = vmatpush1.xpose.msra.mxu0 0.0
        %913 = vmatprep.subr.mxu0 0.0
        %914 = vmatpush1.xpose.msra.mxu0 0.0
        %915 = vmatprep.subr.mxu0 0.0
        %916 = vmatpush1.xpose.msra.mxu0 0.0
        %917 = vmatprep.subr.mxu0 0.0
        %918 = vmatpush1.xpose.msra.mxu0 0.0
        %919 = vmatprep.subr.mxu0 0.0
        %920 = vmatpush1.xpose.msra.mxu0 0.0
        %921 = vmatprep.subr.mxu0 0.0
        %922 = vmatpush1.xpose.msra.mxu0 0.0
        %923 = vmatprep.subr.mxu0 0.0
        %924 = vmatpush1.xpose.msra.mxu0 0.0
        %925 = vmatprep.subr.mxu0 0.0
        %926 = vmatpush1.xpose.msra.mxu0 0.0
        %927 = vmatprep.subr.mxu0 0.0
        %928 = vmatpush1.xpose.msra.mxu0 0.0
        %929 = vmatprep.subr.mxu0 0.0
        %930 = vmatpush1.xpose.msra.mxu0 0.0
        %931 = vmatprep.mubr.f32.mxu0 0.0
        %932 = vmatmul.mubr.f32.gmra.mrb[0].mxu0 %v863
        %v933 = vpop.f32.mrb[0].mxu0
        %v934 = vadd.f32 0.0, %v933
        %v935 = vpop.f32.mrb[0].mxu0
        %936 = vdwg.mxu0
        %v937 = vsel %vm455, %v856, -inf
        %938 = vmax.xlane.f32.xlu0 %v937
        %v939 = vpop.xlane.xlu0 %938
        %v940 = vsel %vm455, %v934, -inf
        %941 = vmax.xlane.f32.xlu0 %v940
        %v942 = vpop.xlane.xlu0 %941
        %v943 = vsub.f32 %v856, %v939
        %v944 = vsub.f32 %v934, %v942
        %v945 = vmul.f32 %v943, 1.442695
        %v946 = vpow.pop %v945
        %v947 = vmul.f32 %v944, 1.442695
        %v948 = vpow.pop %v947
        %v949 = vsel %vm455, %v946, 0.0
        %950 = vadd.xlane.f32.xlu0 %v949
        %v951 = vpop.xlane.xlu0 %950
        %v952 = vsel %vm455, %v948, 0.0
        %953 = vadd.xlane.f32.xlu0 %v952
        %v954 = vpop.xlane.xlu0 %953
        %v955 = vrcp.pop %v951
        %v956 = vrcp.pop %v954
        %v957 = vmul.f32 %v946, %v955
        %v958 = vmul.f32 %v948, %v956
        %959 = vrot.lane.b32.xlu0 %v444, 56
        %v960 = vpop.permute.xlu0 %959
        %v963 = vsel %vm455, %v957, 0
        %965 = vmatprep.subr.mxu0 0.0
        %966 = vmatpush1.msra.mxu0 %v960
        %967 = vmatprep.subr.mxu0 0.0
        %968 = vmatpush1.msra.mxu0 0.0
        %969 = vmatprep.subr.mxu0 0.0
        %970 = vmatpush1.msra.mxu0 0.0
        %971 = vmatprep.subr.mxu0 0.0
        %972 = vmatpush1.msra.mxu0 0.0
        %973 = vmatprep.subr.mxu0 0.0
        %974 = vmatpush1.msra.mxu0 0.0
        %975 = vmatprep.subr.mxu0 0.0
        %976 = vmatpush1.msra.mxu0 0.0
        %977 = vmatprep.subr.mxu0 0.0
        %978 = vmatpush1.msra.mxu0 0.0
        %979 = vmatprep.subr.mxu0 0.0
        %980 = vmatpush1.msra.mxu0 0.0
        %981 = vmatprep.subr.mxu0 0.0
        %982 = vmatpush1.msra.mxu0 0.0
        %983 = vmatprep.subr.mxu0 0.0
        %984 = vmatpush1.msra.mxu0 0.0
        %985 = vmatprep.subr.mxu0 0.0
        %986 = vmatpush1.msra.mxu0 0.0
        %987 = vmatprep.subr.mxu0 0.0
        %988 = vmatpush1.msra.mxu0 0.0
        %989 = vmatprep.subr.mxu0 0.0
        %990 = vmatpush1.msra.mxu0 0.0
        %991 = vmatprep.subr.mxu0 0.0
        %992 = vmatpush1.msra.mxu0 0.0
        %993 = vmatprep.subr.mxu0 0.0
        %994 = vmatpush1.msra.mxu0 0.0
        %995 = vmatprep.subr.mxu0 0.0
        %996 = vmatpush1.msra.mxu0 0.0
        %997 = vmatprep.subr.mxu0 0.0
        %998 = vmatpush1.msra.mxu0 0.0
        %999 = vmatprep.subr.mxu0 0.0
        %1000 = vmatpush1.msra.mxu0 0.0
        %1001 = vmatprep.subr.mxu0 0.0
        %1002 = vmatpush1.msra.mxu0 0.0
        %1003 = vmatprep.subr.mxu0 0.0
        %1004 = vmatpush1.msra.mxu0 0.0
        %1005 = vmatprep.subr.mxu0 0.0
        %1006 = vmatpush1.msra.mxu0 0.0
        %1007 = vmatprep.subr.mxu0 0.0
        %1008 = vmatpush1.msra.mxu0 0.0
        %1009 = vmatprep.subr.mxu0 0.0
        %1010 = vmatpush1.msra.mxu0 0.0
        %1011 = vmatprep.subr.mxu0 0.0
        %1012 = vmatpush1.msra.mxu0 0.0
        %1013 = vmatprep.subr.mxu0 0.0
        %1014 = vmatpush1.msra.mxu0 0.0
        %1015 = vmatprep.subr.mxu0 0.0
        %1016 = vmatpush1.msra.mxu0 0.0
        %1017 = vmatprep.subr.mxu0 0.0
        %1018 = vmatpush1.msra.mxu0 0.0
        %1019 = vmatprep.subr.mxu0 0.0
        %1020 = vmatpush1.msra.mxu0 0.0
        %1021 = vmatprep.subr.mxu0 0.0
        %1022 = vmatpush1.msra.mxu0 0.0
        %1023 = vmatprep.subr.mxu0 0.0
        %1024 = vmatpush1.msra.mxu0 0.0
        %1025 = vmatprep.subr.mxu0 0.0
        %1026 = vmatpush1.msra.mxu0 0.0
        %1027 = vmatprep.subr.mxu0 0.0
        %1028 = vmatpush1.msra.mxu0 0.0
        %1029 = vmatprep.mubr.f32.mxu0 0.0
        %1030 = vmatmul.mubr.f32.gmra.mrb[0].mxu0 %v963
        %v1031 = vpop.f32.mrb[0].mxu0
        %v1032 = vadd.f32 0.0, %v1031
        %v1033 = vpop.f32.mrb[0].mxu0
        %1034 = vdwg.mxu0
        %1035 = vrot.lane.b32.xlu0 %v449, 56
        %v1036 = vpop.permute.xlu0 %1035
        %v1039 = vsel %vm455, %v958, 0
        %1041 = vmatprep.subr.mxu0 0.0
        %1042 = vmatpush1.msra.mxu0 %v1036
        %1043 = vmatprep.subr.mxu0 0.0
        %1044 = vmatpush1.msra.mxu0 0.0
        %1045 = vmatprep.subr.mxu0 0.0
        %1046 = vmatpush1.msra.mxu0 0.0
        %1047 = vmatprep.subr.mxu0 0.0
        %1048 = vmatpush1.msra.mxu0 0.0
        %1049 = vmatprep.subr.mxu0 0.0
        %1050 = vmatpush1.msra.mxu0 0.0
        %1051 = vmatprep.subr.mxu0 0.0
        %1052 = vmatpush1.msra.mxu0 0.0
        %1053 = vmatprep.subr.mxu0 0.0
        %1054 = vmatpush1.msra.mxu0 0.0
        %1055 = vmatprep.subr.mxu0 0.0
        %1056 = vmatpush1.msra.mxu0 0.0
        %1057 = vmatprep.subr.mxu0 0.0
        %1058 = vmatpush1.msra.mxu0 0.0
        %1059 = vmatprep.subr.mxu0 0.0
        %1060 = vmatpush1.msra.mxu0 0.0
        %1061 = vmatprep.subr.mxu0 0.0
        %1062 = vmatpush1.msra.mxu0 0.0
        %1063 = vmatprep.subr.mxu0 0.0
        %1064 = vmatpush1.msra.mxu0 0.0
        %1065 = vmatprep.subr.mxu0 0.0
        %1066 = vmatpush1.msra.mxu0 0.0
        %1067 = vmatprep.subr.mxu0 0.0
        %1068 = vmatpush1.msra.mxu0 0.0
        %1069 = vmatprep.subr.mxu0 0.0
        %1070 = vmatpush1.msra.mxu0 0.0
        %1071 = vmatprep.subr.mxu0 0.0
        %1072 = vmatpush1.msra.mxu0 0.0
        %1073 = vmatprep.subr.mxu0 0.0
        %1074 = vmatpush1.msra.mxu0 0.0
        %1075 = vmatprep.subr.mxu0 0.0
        %1076 = vmatpush1.msra.mxu0 0.0
        %1077 = vmatprep.subr.mxu0 0.0
        %1078 = vmatpush1.msra.mxu0 0.0
        %1079 = vmatprep.subr.mxu0 0.0
        %1080 = vmatpush1.msra.mxu0 0.0
        %1081 = vmatprep.subr.mxu0 0.0
        %1082 = vmatpush1.msra.mxu0 0.0
        %1083 = vmatprep.subr.mxu0 0.0
        %1084 = vmatpush1.msra.mxu0 0.0
        %1085 = vmatprep.subr.mxu0 0.0
        %1086 = vmatpush1.msra.mxu0 0.0
        %1087 = vmatprep.subr.mxu0 0.0
        %1088 = vmatpush1.msra.mxu0 0.0
        %1089 = vmatprep.subr.mxu0 0.0
        %1090 = vmatpush1.msra.mxu0 0.0
        %1091 = vmatprep.subr.mxu0 0.0
        %1092 = vmatpush1.msra.mxu0 0.0
        %1093 = vmatprep.subr.mxu0 0.0
        %1094 = vmatpush1.msra.mxu0 0.0
        %1095 = vmatprep.subr.mxu0 0.0
        %1096 = vmatpush1.msra.mxu0 0.0
        %1097 = vmatprep.subr.mxu0 0.0
        %1098 = vmatpush1.msra.mxu0 0.0
        %1099 = vmatprep.subr.mxu0 0.0
        %1100 = vmatpush1.msra.mxu0 0.0
        %1101 = vmatprep.subr.mxu0 0.0
        %1102 = vmatpush1.msra.mxu0 0.0
        %1103 = vmatprep.subr.mxu0 0.0
        %1104 = vmatpush1.msra.mxu0 0.0
        %1105 = vmatprep.mubr.f32.mxu0 0.0
        %1106 = vmatmul.mubr.f32.gmra.mrb[0].mxu0 %v1039
        %v1107 = vpop.f32.mrb[0].mxu0
        %v1108 = vadd.f32 0.0, %v1107
        %v1109 = vpop.f32.mrb[0].mxu0
        %1110 = vdwg.mxu0
        %1111 = vrot.lane.b32.xlu0 %v444, 112
        %v1112 = vpop.permute.xlu0 %1111
        %1113 = vrot.lane.b32.xlu0 %v444, 80
        %v1114 = vpop.permute.xlu0 %1113
        %v1115 = vsel %vm455, %v1112, 0
        %v1117 = vsel %vm455, %v1114, 0
        %1119 = vmatprep.subr.mxu0 0.0
        %1120 = vmatpush1.xpose.msra.mxu0 %v1117
        %1121 = vmatprep.subr.mxu0 0.0
        %1122 = vmatpush1.xpose.msra.mxu0 0.0
        %1123 = vmatprep.subr.mxu0 0.0
        %1124 = vmatpush1.xpose.msra.mxu0 0.0
        %1125 = vmatprep.subr.mxu0 0.0
        %1126 = vmatpush1.xpose.msra.mxu0 0.0
        %1127 = vmatprep.subr.mxu0 0.0
        %1128 = vmatpush1.xpose.msra.mxu0 0.0
        %1129 = vmatprep.subr.mxu0 0.0
        %1130 = vmatpush1.xpose.msra.mxu0 0.0
        %1131 = vmatprep.subr.mxu0 0.0
        %1132 = vmatpush1.xpose.msra.mxu0 0.0
        %1133 = vmatprep.subr.mxu0 0.0
        %1134 = vmatpush1.xpose.msra.mxu0 0.0
        %1135 = vmatprep.subr.mxu0 0.0
        %1136 = vmatpush1.xpose.msra.mxu0 0.0
        %1137 = vmatprep.subr.mxu0 0.0
        %1138 = vmatpush1.xpose.msra.mxu0 0.0
        %1139 = vmatprep.subr.mxu0 0.0
        %1140 = vmatpush1.xpose.msra.mxu0 0.0
        %1141 = vmatprep.subr.mxu0 0.0
        %1142 = vmatpush1.xpose.msra.mxu0 0.0
        %1143 = vmatprep.subr.mxu0 0.0
        %1144 = vmatpush1.xpose.msra.mxu0 0.0
        %1145 = vmatprep.subr.mxu0 0.0
        %1146 = vmatpush1.xpose.msra.mxu0 0.0
        %1147 = vmatprep.subr.mxu0 0.0
        %1148 = vmatpush1.xpose.msra.mxu0 0.0
        %1149 = vmatprep.subr.mxu0 0.0
        %1150 = vmatpush1.xpose.msra.mxu0 0.0
        %1151 = vmatprep.subr.mxu0 0.0
        %1152 = vmatpush1.xpose.msra.mxu0 0.0
        %1153 = vmatprep.subr.mxu0 0.0
        %1154 = vmatpush1.xpose.msra.mxu0 0.0
        %1155 = vmatprep.subr.mxu0 0.0
        %1156 = vmatpush1.xpose.msra.mxu0 0.0
        %1157 = vmatprep.subr.mxu0 0.0
        %1158 = vmatpush1.xpose.msra.mxu0 0.0
        %1159 = vmatprep.subr.mxu0 0.0
        %1160 = vmatpush1.xpose.msra.mxu0 0.0
        %1161 = vmatprep.subr.mxu0 0.0
        %1162 = vmatpush1.xpose.msra.mxu0 0.0
        %1163 = vmatprep.subr.mxu0 0.0
        %1164 = vmatpush1.xpose.msra.mxu0 0.0
        %1165 = vmatprep.subr.mxu0 0.0
        %1166 = vmatpush1.xpose.msra.mxu0 0.0
        %1167 = vmatprep.subr.mxu0 0.0
        %1168 = vmatpush1.xpose.msra.mxu0 0.0
        %1169 = vmatprep.subr.mxu0 0.0
        %1170 = vmatpush1.xpose.msra.mxu0 0.0
        %1171 = vmatprep.subr.mxu0 0.0
        %1172 = vmatpush1.xpose.msra.mxu0 0.0
        %1173 = vmatprep.subr.mxu0 0.0
        %1174 = vmatpush1.xpose.msra.mxu0 0.0
        %1175 = vmatprep.subr.mxu0 0.0
        %1176 = vmatpush1.xpose.msra.mxu0 0.0
        %1177 = vmatprep.subr.mxu0 0.0
        %1178 = vmatpush1.xpose.msra.mxu0 0.0
        %1179 = vmatprep.subr.mxu0 0.0
        %1180 = vmatpush1.xpose.msra.mxu0 0.0
        %1181 = vmatprep.subr.mxu0 0.0
        %1182 = vmatpush1.xpose.msra.mxu0 0.0
        %1183 = vmatprep.mubr.f32.mxu0 0.0
        %1184 = vmatmul.mubr.f32.gmra.mrb[0].mxu0 %v1115
        %v1185 = vpop.f32.mrb[0].mxu0
        %v1186 = vadd.f32 0.0, %v1185
        %v1187 = vpop.f32.mrb[0].mxu0
        %1188 = vdwg.mxu0
        %1189 = vrot.lane.b32.xlu0 %v449, 112
        %v1190 = vpop.permute.xlu0 %1189
        %1191 = vrot.lane.b32.xlu0 %v449, 80
        %v1192 = vpop.permute.xlu0 %1191
        %v1193 = vsel %vm455, %v1190, 0
        %v1195 = vsel %vm455, %v1192, 0
        %1197 = vmatprep.subr.mxu0 0.0
        %1198 = vmatpush1.xpose.msra.mxu0 %v1195
        %1199 = vmatprep.subr.mxu0 0.0
        %1200 = vmatpush1.xpose.msra.mxu0 0.0
        %1201 = vmatprep.subr.mxu0 0.0
        %1202 = vmatpush1.xpose.msra.mxu0 0.0
        %1203 = vmatprep.subr.mxu0 0.0
        %1204 = vmatpush1.xpose.msra.mxu0 0.0
        %1205 = vmatprep.subr.mxu0 0.0
        %1206 = vmatpush1.xpose.msra.mxu0 0.0
        %1207 = vmatprep.subr.mxu0 0.0
        %1208 = vmatpush1.xpose.msra.mxu0 0.0
        %1209 = vmatprep.subr.mxu0 0.0
        %1210 = vmatpush1.xpose.msra.mxu0 0.0
        %1211 = vmatprep.subr.mxu0 0.0
        %1212 = vmatpush1.xpose.msra.mxu0 0.0
        %1213 = vmatprep.subr.mxu0 0.0
        %1214 = vmatpush1.xpose.msra.mxu0 0.0
        %1215 = vmatprep.subr.mxu0 0.0
        %1216 = vmatpush1.xpose.msra.mxu0 0.0
        %1217 = vmatprep.subr.mxu0 0.0
        %1218 = vmatpush1.xpose.msra.mxu0 0.0
        %1219 = vmatprep.subr.mxu0 0.0
        %1220 = vmatpush1.xpose.msra.mxu0 0.0
        %1221 = vmatprep.subr.mxu0 0.0
        %1222 = vmatpush1.xpose.msra.mxu0 0.0
        %1223 = vmatprep.subr.mxu0 0.0
        %1224 = vmatpush1.xpose.msra.mxu0 0.0
        %1225 = vmatprep.subr.mxu0 0.0
        %1226 = vmatpush1.xpose.msra.mxu0 0.0
        %1227 = vmatprep.subr.mxu0 0.0
        %1228 = vmatpush1.xpose.msra.mxu0 0.0
        %1229 = vmatprep.subr.mxu0 0.0
        %1230 = vmatpush1.xpose.msra.mxu0 0.0
        %1231 = vmatprep.subr.mxu0 0.0
        %1232 = vmatpush1.xpose.msra.mxu0 0.0
        %1233 = vmatprep.subr.mxu0 0.0
        %1234 = vmatpush1.xpose.msra.mxu0 0.0
        %1235 = vmatprep.subr.mxu0 0.0
        %1236 = vmatpush1.xpose.msra.mxu0 0.0
        %1237 = vmatprep.subr.mxu0 0.0
        %1238 = vmatpush1.xpose.msra.mxu0 0.0
        %1239 = vmatprep.subr.mxu0 0.0
        %1240 = vmatpush1.xpose.msra.mxu0 0.0
        %1241 = vmatprep.subr.mxu0 0.0
        %1242 = vmatpush1.xpose.msra.mxu0 0.0
        %1243 = vmatprep.subr.mxu0 0.0
        %1244 = vmatpush1.xpose.msra.mxu0 0.0
        %1245 = vmatprep.subr.mxu0 0.0
        %1246 = vmatpush1.xpose.msra.mxu0 0.0
        %1247 = vmatprep.subr.mxu0 0.0
        %1248 = vmatpush1.xpose.msra.mxu0 0.0
        %1249 = vmatprep.subr.mxu0 0.0
        %1250 = vmatpush1.xpose.msra.mxu0 0.0
        %1251 = vmatprep.subr.mxu0 0.0
        %1252 = vmatpush1.xpose.msra.mxu0 0.0
        %1253 = vmatprep.subr.mxu0 0.0
        %1254 = vmatpush1.xpose.msra.mxu0 0.0
        %1255 = vmatprep.subr.mxu0 0.0
        %1256 = vmatpush1.xpose.msra.mxu0 0.0
        %1257 = vmatprep.subr.mxu0 0.0
        %1258 = vmatpush1.xpose.msra.mxu0 0.0
        %1259 = vmatprep.subr.mxu0 0.0
        %1260 = vmatpush1.xpose.msra.mxu0 0.0
        %1261 = vmatprep.mubr.f32.mxu0 0.0
        %1262 = vmatmul.mubr.f32.gmra.mrb[0].mxu0 %v1193
        %v1263 = vpop.f32.mrb[0].mxu0
        %v1264 = vadd.f32 0.0, %v1263
        %v1265 = vpop.f32.mrb[0].mxu0
        %1266 = vdwg.mxu0
        %v1267 = vsel %vm455, %v1186, -inf
        %1268 = vmax.xlane.f32.xlu0 %v1267
        %v1269 = vpop.xlane.xlu0 %1268
        %v1270 = vsel %vm455, %v1264, -inf
        %1271 = vmax.xlane.f32.xlu0 %v1270
        %v1272 = vpop.xlane.xlu0 %1271
        %v1273 = vsub.f32 %v1186, %v1269
        %v1274 = vsub.f32 %v1264, %v1272
        %v1275 = vmul.f32 %v1273, 1.442695
        %v1276 = vpow.pop %v1275
        %v1277 = vmul.f32 %v1274, 1.442695
        %v1278 = vpow.pop %v1277
        %v1279 = vsel %vm455, %v1276, 0.0
        %1280 = vadd.xlane.f32.xlu0 %v1279
        %v1281 = vpop.xlane.xlu0 %1280
        %v1282 = vsel %vm455, %v1278, 0.0
        %1283 = vadd.xlane.f32.xlu0 %v1282
        %v1284 = vpop.xlane.xlu0 %1283
        %v1285 = vrcp.pop %v1281
        %v1286 = vrcp.pop %v1284
        %v1287 = vmul.f32 %v1276, %v1285
        %v1288 = vmul.f32 %v1278, %v1286
        %1289 = vrot.lane.b32.xlu0 %v444, 48
        %v1290 = vpop.permute.xlu0 %1289
        %v1293 = vsel %vm455, %v1287, 0
        %1295 = vmatprep.subr.mxu0 0.0
        %1296 = vmatpush1.msra.mxu0 %v1290
        %1297 = vmatprep.subr.mxu0 0.0
        %1298 = vmatpush1.msra.mxu0 0.0
        %1299 = vmatprep.subr.mxu0 0.0
        %1300 = vmatpush1.msra.mxu0 0.0
        %1301 = vmatprep.subr.mxu0 0.0
        %1302 = vmatpush1.msra.mxu0 0.0
        %1303 = vmatprep.subr.mxu0 0.0
        %1304 = vmatpush1.msra.mxu0 0.0
        %1305 = vmatprep.subr.mxu0 0.0
        %1306 = vmatpush1.msra.mxu0 0.0
        %1307 = vmatprep.subr.mxu0 0.0
        %1308 = vmatpush1.msra.mxu0 0.0
        %1309 = vmatprep.subr.mxu0 0.0
        %1310 = vmatpush1.msra.mxu0 0.0
        %1311 = vmatprep.subr.mxu0 0.0
        %1312 = vmatpush1.msra.mxu0 0.0
        %1313 = vmatprep.subr.mxu0 0.0
        %1314 = vmatpush1.msra.mxu0 0.0
        %1315 = vmatprep.subr.mxu0 0.0
        %1316 = vmatpush1.msra.mxu0 0.0
        %1317 = vmatprep.subr.mxu0 0.0
        %1318 = vmatpush1.msra.mxu0 0.0
        %1319 = vmatprep.subr.mxu0 0.0
        %1320 = vmatpush1.msra.mxu0 0.0
        %1321 = vmatprep.subr.mxu0 0.0
        %1322 = vmatpush1.msra.mxu0 0.0
        %1323 = vmatprep.subr.mxu0 0.0
        %1324 = vmatpush1.msra.mxu0 0.0
        %1325 = vmatprep.subr.mxu0 0.0
        %1326 = vmatpush1.msra.mxu0 0.0
        %1327 = vmatprep.subr.mxu0 0.0
        %1328 = vmatpush1.msra.mxu0 0.0
        %1329 = vmatprep.subr.mxu0 0.0
        %1330 = vmatpush1.msra.mxu0 0.0
        %1331 = vmatprep.subr.mxu0 0.0
        %1332 = vmatpush1.msra.mxu0 0.0
        %1333 = vmatprep.subr.mxu0 0.0
        %1334 = vmatpush1.msra.mxu0 0.0
        %1335 = vmatprep.subr.mxu0 0.0
        %1336 = vmatpush1.msra.mxu0 0.0
        %1337 = vmatprep.subr.mxu0 0.0
        %1338 = vmatpush1.msra.mxu0 0.0
        %1339 = vmatprep.subr.mxu0 0.0
        %1340 = vmatpush1.msra.mxu0 0.0
        %1341 = vmatprep.subr.mxu0 0.0
        %1342 = vmatpush1.msra.mxu0 0.0
        %1343 = vmatprep.subr.mxu0 0.0
        %1344 = vmatpush1.msra.mxu0 0.0
        %1345 = vmatprep.subr.mxu0 0.0
        %1346 = vmatpush1.msra.mxu0 0.0
        %1347 = vmatprep.subr.mxu0 0.0
        %1348 = vmatpush1.msra.mxu0 0.0
        %1349 = vmatprep.subr.mxu0 0.0
        %1350 = vmatpush1.msra.mxu0 0.0
        %1351 = vmatprep.subr.mxu0 0.0
        %1352 = vmatpush1.msra.mxu0 0.0
        %1353 = vmatprep.subr.mxu0 0.0
        %1354 = vmatpush1.msra.mxu0 0.0
        %1355 = vmatprep.subr.mxu0 0.0
        %1356 = vmatpush1.msra.mxu0 0.0
        %1357 = vmatprep.subr.mxu0 0.0
        %1358 = vmatpush1.msra.mxu0 0.0
        %1359 = vmatprep.mubr.f32.mxu0 0.0
        %1360 = vmatmul.mubr.f32.gmra.mrb[0].mxu0 %v1293
        %v1361 = vpop.f32.mrb[0].mxu0
        %v1362 = vadd.f32 0.0, %v1361
        %v1363 = vpop.f32.mrb[0].mxu0
        %1364 = vdwg.mxu0
        %1365 = vrot.lane.b32.xlu0 %v449, 48
        %v1366 = vpop.permute.xlu0 %1365
        %v1369 = vsel %vm455, %v1288, 0
        %1371 = vmatprep.subr.mxu0 0.0
        %1372 = vmatpush1.msra.mxu0 %v1366
        %1373 = vmatprep.subr.mxu0 0.0
        %1374 = vmatpush1.msra.mxu0 0.0
        %1375 = vmatprep.subr.mxu0 0.0
        %1376 = vmatpush1.msra.mxu0 0.0
        %1377 = vmatprep.subr.mxu0 0.0
        %1378 = vmatpush1.msra.mxu0 0.0
        %1379 = vmatprep.subr.mxu0 0.0
        %1380 = vmatpush1.msra.mxu0 0.0
        %1381 = vmatprep.subr.mxu0 0.0
        %1382 = vmatpush1.msra.mxu0 0.0
        %1383 = vmatprep.subr.mxu0 0.0
        %1384 = vmatpush1.msra.mxu0 0.0
        %1385 = vmatprep.subr.mxu0 0.0
        %1386 = vmatpush1.msra.mxu0 0.0
        %1387 = vmatprep.subr.mxu0 0.0
        %1388 = vmatpush1.msra.mxu0 0.0
        %1389 = vmatprep.subr.mxu0 0.0
        %1390 = vmatpush1.msra.mxu0 0.0
        %1391 = vmatprep.subr.mxu0 0.0
        %1392 = vmatpush1.msra.mxu0 0.0
        %1393 = vmatprep.subr.mxu0 0.0
        %1394 = vmatpush1.msra.mxu0 0.0
        %1395 = vmatprep.subr.mxu0 0.0
        %1396 = vmatpush1.msra.mxu0 0.0
        %1397 = vmatprep.subr.mxu0 0.0
        %1398 = vmatpush1.msra.mxu0 0.0
        %1399 = vmatprep.subr.mxu0 0.0
        %1400 = vmatpush1.msra.mxu0 0.0
        %1401 = vmatprep.subr.mxu0 0.0
        %1402 = vmatpush1.msra.mxu0 0.0
        %1403 = vmatprep.subr.mxu0 0.0
        %1404 = vmatpush1.msra.mxu0 0.0
        %1405 = vmatprep.subr.mxu0 0.0
        %1406 = vmatpush1.msra.mxu0 0.0
        %1407 = vmatprep.subr.mxu0 0.0
        %1408 = vmatpush1.msra.mxu0 0.0
        %1409 = vmatprep.subr.mxu0 0.0
        %1410 = vmatpush1.msra.mxu0 0.0
        %1411 = vmatprep.subr.mxu0 0.0
        %1412 = vmatpush1.msra.mxu0 0.0
        %1413 = vmatprep.subr.mxu0 0.0
        %1414 = vmatpush1.msra.mxu0 0.0
        %1415 = vmatprep.subr.mxu0 0.0
        %1416 = vmatpush1.msra.mxu0 0.0
        %1417 = vmatprep.subr.mxu0 0.0
        %1418 = vmatpush1.msra.mxu0 0.0
        %1419 = vmatprep.subr.mxu0 0.0
        %1420 = vmatpush1.msra.mxu0 0.0
        %1421 = vmatprep.subr.mxu0 0.0
        %1422 = vmatpush1.msra.mxu0 0.0
        %1423 = vmatprep.subr.mxu0 0.0
        %1424 = vmatpush1.msra.mxu0 0.0
        %1425 = vmatprep.subr.mxu0 0.0
        %1426 = vmatpush1.msra.mxu0 0.0
        %1427 = vmatprep.subr.mxu0 0.0
        %1428 = vmatpush1.msra.mxu0 0.0
        %1429 = vmatprep.subr.mxu0 0.0
        %1430 = vmatpush1.msra.mxu0 0.0
        %1431 = vmatprep.subr.mxu0 0.0
        %1432 = vmatpush1.msra.mxu0 0.0
        %1433 = vmatprep.subr.mxu0 0.0
        %1434 = vmatpush1.msra.mxu0 0.0
        %1435 = vmatprep.mubr.f32.mxu0 0.0
        %1436 = vmatmul.mubr.f32.gmra.mrb[0].mxu0 %v1369
        %v1437 = vpop.f32.mrb[0].mxu0
        %v1438 = vadd.f32 0.0, %v1437
        %v1439 = vpop.f32.mrb[0].mxu0
        %1440 = vdwg.mxu0
        %1441 = vrot.lane.b32.xlu0 %v444, 104
        %v1442 = vpop.permute.xlu0 %1441
        %1443 = vrot.lane.b32.xlu0 %v444, 72
        %v1444 = vpop.permute.xlu0 %1443
        %v1445 = vsel %vm455, %v1442, 0
        %v1447 = vsel %vm455, %v1444, 0
        %1449 = vmatprep.subr.mxu0 0.0
        %1450 = vmatpush1.xpose.msra.mxu0 %v1447
        %1451 = vmatprep.subr.mxu0 0.0
        %1452 = vmatpush1.xpose.msra.mxu0 0.0
        %1453 = vmatprep.subr.mxu0 0.0
        %1454 = vmatpush1.xpose.msra.mxu0 0.0
        %1455 = vmatprep.subr.mxu0 0.0
        %1456 = vmatpush1.xpose.msra.mxu0 0.0
        %1457 = vmatprep.subr.mxu0 0.0
        %1458 = vmatpush1.xpose.msra.mxu0 0.0
        %1459 = vmatprep.subr.mxu0 0.0
        %1460 = vmatpush1.xpose.msra.mxu0 0.0
        %1461 = vmatprep.subr.mxu0 0.0
        %1462 = vmatpush1.xpose.msra.mxu0 0.0
        %1463 = vmatprep.subr.mxu0 0.0
        %1464 = vmatpush1.xpose.msra.mxu0 0.0
        %1465 = vmatprep.subr.mxu0 0.0
        %1466 = vmatpush1.xpose.msra.mxu0 0.0
        %1467 = vmatprep.subr.mxu0 0.0
        %1468 = vmatpush1.xpose.msra.mxu0 0.0
        %1469 = vmatprep.subr.mxu0 0.0
        %1470 = vmatpush1.xpose.msra.mxu0 0.0
        %1471 = vmatprep.subr.mxu0 0.0
        %1472 = vmatpush1.xpose.msra.mxu0 0.0
        %1473 = vmatprep.subr.mxu0 0.0
        %1474 = vmatpush1.xpose.msra.mxu0 0.0
        %1475 = vmatprep.subr.mxu0 0.0
        %1476 = vmatpush1.xpose.msra.mxu0 0.0
        %1477 = vmatprep.subr.mxu0 0.0
        %1478 = vmatpush1.xpose.msra.mxu0 0.0
        %1479 = vmatprep.subr.mxu0 0.0
        %1480 = vmatpush1.xpose.msra.mxu0 0.0
        %1481 = vmatprep.subr.mxu0 0.0
        %1482 = vmatpush1.xpose.msra.mxu0 0.0
        %1483 = vmatprep.subr.mxu0 0.0
        %1484 = vmatpush1.xpose.msra.mxu0 0.0
        %1485 = vmatprep.subr.mxu0 0.0
        %1486 = vmatpush1.xpose.msra.mxu0 0.0
        %1487 = vmatprep.subr.mxu0 0.0
        %1488 = vmatpush1.xpose.msra.mxu0 0.0
        %1489 = vmatprep.subr.mxu0 0.0
        %1490 = vmatpush1.xpose.msra.mxu0 0.0
        %1491 = vmatprep.subr.mxu0 0.0
        %1492 = vmatpush1.xpose.msra.mxu0 0.0
        %1493 = vmatprep.subr.mxu0 0.0
        %1494 = vmatpush1.xpose.msra.mxu0 0.0
        %1495 = vmatprep.subr.mxu0 0.0
        %1496 = vmatpush1.xpose.msra.mxu0 0.0
        %1497 = vmatprep.subr.mxu0 0.0
        %1498 = vmatpush1.xpose.msra.mxu0 0.0
        %1499 = vmatprep.subr.mxu0 0.0
        %1500 = vmatpush1.xpose.msra.mxu0 0.0
        %1501 = vmatprep.subr.mxu0 0.0
        %1502 = vmatpush1.xpose.msra.mxu0 0.0
        %1503 = vmatprep.subr.mxu0 0.0
        %1504 = vmatpush1.xpose.msra.mxu0 0.0
        %1505 = vmatprep.subr.mxu0 0.0
        %1506 = vmatpush1.xpose.msra.mxu0 0.0
        %1507 = vmatprep.subr.mxu0 0.0
        %1508 = vmatpush1.xpose.msra.mxu0 0.0
        %1509 = vmatprep.subr.mxu0 0.0
        %1510 = vmatpush1.xpose.msra.mxu0 0.0
        %1511 = vmatprep.subr.mxu0 0.0
        %1512 = vmatpush1.xpose.msra.mxu0 0.0
        %1513 = vmatprep.mubr.f32.mxu0 0.0
        %1514 = vmatmul.mubr.f32.gmra.mrb[0].mxu0 %v1445
        %v1515 = vpop.f32.mrb[0].mxu0
        %v1516 = vadd.f32 0.0, %v1515
        %v1517 = vpop.f32.mrb[0].mxu0
        %1518 = vdwg.mxu0
        %1519 = vrot.lane.b32.xlu0 %v449, 104
        %v1520 = vpop.permute.xlu0 %1519
        %1521 = vrot.lane.b32.xlu0 %v449, 72
        %v1522 = vpop.permute.xlu0 %1521
        %v1523 = vsel %vm455, %v1520, 0
        %v1525 = vsel %vm455, %v1522, 0
        %1527 = vmatprep.subr.mxu0 0.0
        %1528 = vmatpush1.xpose.msra.mxu0 %v1525
        %1529 = vmatprep.subr.mxu0 0.0
        %1530 = vmatpush1.xpose.msra.mxu0 0.0
        %1531 = vmatprep.subr.mxu0 0.0
        %1532 = vmatpush1.xpose.msra.mxu0 0.0
        %1533 = vmatprep.subr.mxu0 0.0
        %1534 = vmatpush1.xpose.msra.mxu0 0.0
        %1535 = vmatprep.subr.mxu0 0.0
        %1536 = vmatpush1.xpose.msra.mxu0 0.0
        %1537 = vmatprep.subr.mxu0 0.0
        %1538 = vmatpush1.xpose.msra.mxu0 0.0
        %1539 = vmatprep.subr.mxu0 0.0
        %1540 = vmatpush1.xpose.msra.mxu0 0.0
        %1541 = vmatprep.subr.mxu0 0.0
        %1542 = vmatpush1.xpose.msra.mxu0 0.0
        %1543 = vmatprep.subr.mxu0 0.0
        %1544 = vmatpush1.xpose.msra.mxu0 0.0
        %1545 = vmatprep.subr.mxu0 0.0
        %1546 = vmatpush1.xpose.msra.mxu0 0.0
        %1547 = vmatprep.subr.mxu0 0.0
        %1548 = vmatpush1.xpose.msra.mxu0 0.0
        %1549 = vmatprep.subr.mxu0 0.0
        %1550 = vmatpush1.xpose.msra.mxu0 0.0
        %1551 = vmatprep.subr.mxu0 0.0
        %1552 = vmatpush1.xpose.msra.mxu0 0.0
        %1553 = vmatprep.subr.mxu0 0.0
        %1554 = vmatpush1.xpose.msra.mxu0 0.0
        %1555 = vmatprep.subr.mxu0 0.0
        %1556 = vmatpush1.xpose.msra.mxu0 0.0
        %1557 = vmatprep.subr.mxu0 0.0
        %1558 = vmatpush1.xpose.msra.mxu0 0.0
        %1559 = vmatprep.subr.mxu0 0.0
        %1560 = vmatpush1.xpose.msra.mxu0 0.0
        %1561 = vmatprep.subr.mxu0 0.0
        %1562 = vmatpush1.xpose.msra.mxu0 0.0
        %1563 = vmatprep.subr.mxu0 0.0
        %1564 = vmatpush1.xpose.msra.mxu0 0.0
        %1565 = vmatprep.subr.mxu0 0.0
        %1566 = vmatpush1.xpose.msra.mxu0 0.0
        %1567 = vmatprep.subr.mxu0 0.0
        %1568 = vmatpush1.xpose.msra.mxu0 0.0
        %1569 = vmatprep.subr.mxu0 0.0
        %1570 = vmatpush1.xpose.msra.mxu0 0.0
        %1571 = vmatprep.subr.mxu0 0.0
        %1572 = vmatpush1.xpose.msra.mxu0 0.0
        %1573 = vmatprep.subr.mxu0 0.0
        %1574 = vmatpush1.xpose.msra.mxu0 0.0
        %1575 = vmatprep.subr.mxu0 0.0
        %1576 = vmatpush1.xpose.msra.mxu0 0.0
        %1577 = vmatprep.subr.mxu0 0.0
        %1578 = vmatpush1.xpose.msra.mxu0 0.0
        %1579 = vmatprep.subr.mxu0 0.0
        %1580 = vmatpush1.xpose.msra.mxu0 0.0
        %1581 = vmatprep.subr.mxu0 0.0
        %1582 = vmatpush1.xpose.msra.mxu0 0.0
        %1583 = vmatprep.subr.mxu0 0.0
        %1584 = vmatpush1.xpose.msra.mxu0 0.0
        %1585 = vmatprep.subr.mxu0 0.0
        %1586 = vmatpush1.xpose.msra.mxu0 0.0
        %1587 = vmatprep.subr.mxu0 0.0
        %1588 = vmatpush1.xpose.msra.mxu0 0.0
        %1589 = vmatprep.subr.mxu0 0.0
        %1590 = vmatpush1.xpose.msra.mxu0 0.0
        %1591 = vmatprep.mubr.f32.mxu0 0.0
        %1592 = vmatmul.mubr.f32.gmra.mrb[0].mxu0 %v1523
        %v1593 = vpop.f32.mrb[0].mxu0
        %v1594 = vadd.f32 0.0, %v1593
        %v1595 = vpop.f32.mrb[0].mxu0
        %1596 = vdwg.mxu0
        %v1597 = vsel %vm455, %v1516, -inf
        %1598 = vmax.xlane.f32.xlu0 %v1597
        %v1599 = vpop.xlane.xlu0 %1598
        %v1600 = vsel %vm455, %v1594, -inf
        %1601 = vmax.xlane.f32.xlu0 %v1600
        %v1602 = vpop.xlane.xlu0 %1601
        %v1603 = vsub.f32 %v1516, %v1599
        %v1604 = vsub.f32 %v1594, %v1602
        %v1605 = vmul.f32 %v1603, 1.442695
        %v1606 = vpow.pop %v1605
        %v1607 = vmul.f32 %v1604, 1.442695
        %v1608 = vpow.pop %v1607
        %v1609 = vsel %vm455, %v1606, 0.0
        %1610 = vadd.xlane.f32.xlu0 %v1609
        %v1611 = vpop.xlane.xlu0 %1610
        %v1612 = vsel %vm455, %v1608, 0.0
        %1613 = vadd.xlane.f32.xlu0 %v1612
        %v1614 = vpop.xlane.xlu0 %1613
        %v1615 = vrcp.pop %v1611
        %v1616 = vrcp.pop %v1614
        %v1617 = vmul.f32 %v1606, %v1615
        %v1618 = vmul.f32 %v1608, %v1616
        %1619 = vrot.lane.b32.xlu0 %v444, 40
        %v1620 = vpop.permute.xlu0 %1619
        %v1623 = vsel %vm455, %v1617, 0
        %1625 = vmatprep.subr.mxu0 0.0
        %1626 = vmatpush1.msra.mxu0 %v1620
        %1627 = vmatprep.subr.mxu0 0.0
        %1628 = vmatpush1.msra.mxu0 0.0
        %1629 = vmatprep.subr.mxu0 0.0
        %1630 = vmatpush1.msra.mxu0 0.0
        %1631 = vmatprep.subr.mxu0 0.0
        %1632 = vmatpush1.msra.mxu0 0.0
        %1633 = vmatprep.subr.mxu0 0.0
        %1634 = vmatpush1.msra.mxu0 0.0
        %1635 = vmatprep.subr.mxu0 0.0
        %1636 = vmatpush1.msra.mxu0 0.0
        %1637 = vmatprep.subr.mxu0 0.0
        %1638 = vmatpush1.msra.mxu0 0.0
        %1639 = vmatprep.subr.mxu0 0.0
        %1640 = vmatpush1.msra.mxu0 0.0
        %1641 = vmatprep.subr.mxu0 0.0
        %1642 = vmatpush1.msra.mxu0 0.0
        %1643 = vmatprep.subr.mxu0 0.0
        %1644 = vmatpush1.msra.mxu0 0.0
        %1645 = vmatprep.subr.mxu0 0.0
        %1646 = vmatpush1.msra.mxu0 0.0
        %1647 = vmatprep.subr.mxu0 0.0
        %1648 = vmatpush1.msra.mxu0 0.0
        %1649 = vmatprep.subr.mxu0 0.0
        %1650 = vmatpush1.msra.mxu0 0.0
        %1651 = vmatprep.subr.mxu0 0.0
        %1652 = vmatpush1.msra.mxu0 0.0
        %1653 = vmatprep.subr.mxu0 0.0
        %1654 = vmatpush1.msra.mxu0 0.0
        %1655 = vmatprep.subr.mxu0 0.0
        %1656 = vmatpush1.msra.mxu0 0.0
        %1657 = vmatprep.subr.mxu0 0.0
        %1658 = vmatpush1.msra.mxu0 0.0
        %1659 = vmatprep.subr.mxu0 0.0
        %1660 = vmatpush1.msra.mxu0 0.0
        %1661 = vmatprep.subr.mxu0 0.0
        %1662 = vmatpush1.msra.mxu0 0.0
        %1663 = vmatprep.subr.mxu0 0.0
        %1664 = vmatpush1.msra.mxu0 0.0
        %1665 = vmatprep.subr.mxu0 0.0
        %1666 = vmatpush1.msra.mxu0 0.0
        %1667 = vmatprep.subr.mxu0 0.0
        %1668 = vmatpush1.msra.mxu0 0.0
        %1669 = vmatprep.subr.mxu0 0.0
        %1670 = vmatpush1.msra.mxu0 0.0
        %1671 = vmatprep.subr.mxu0 0.0
        %1672 = vmatpush1.msra.mxu0 0.0
        %1673 = vmatprep.subr.mxu0 0.0
        %1674 = vmatpush1.msra.mxu0 0.0
        %1675 = vmatprep.subr.mxu0 0.0
        %1676 = vmatpush1.msra.mxu0 0.0
        %1677 = vmatprep.subr.mxu0 0.0
        %1678 = vmatpush1.msra.mxu0 0.0
        %1679 = vmatprep.subr.mxu0 0.0
        %1680 = vmatpush1.msra.mxu0 0.0
        %1681 = vmatprep.subr.mxu0 0.0
        %1682 = vmatpush1.msra.mxu0 0.0
        %1683 = vmatprep.subr.mxu0 0.0
        %1684 = vmatpush1.msra.mxu0 0.0
        %1685 = vmatprep.subr.mxu0 0.0
        %1686 = vmatpush1.msra.mxu0 0.0
        %1687 = vmatprep.subr.mxu0 0.0
        %1688 = vmatpush1.msra.mxu0 0.0
        %1689 = vmatprep.mubr.f32.mxu0 0.0
        %1690 = vmatmul.mubr.f32.gmra.mrb[0].mxu0 %v1623
        %v1691 = vpop.f32.mrb[0].mxu0
        %v1692 = vadd.f32 0.0, %v1691
        %v1693 = vpop.f32.mrb[0].mxu0
        %1694 = vdwg.mxu0
        %1695 = vrot.lane.b32.xlu0 %v449, 40
        %v1696 = vpop.permute.xlu0 %1695
        %v1699 = vsel %vm455, %v1618, 0
        %1701 = vmatprep.subr.mxu0 0.0
        %1702 = vmatpush1.msra.mxu0 %v1696
        %1703 = vmatprep.subr.mxu0 0.0
        %1704 = vmatpush1.msra.mxu0 0.0
        %1705 = vmatprep.subr.mxu0 0.0
        %1706 = vmatpush1.msra.mxu0 0.0
        %1707 = vmatprep.subr.mxu0 0.0
        %1708 = vmatpush1.msra.mxu0 0.0
        %1709 = vmatprep.subr.mxu0 0.0
        %1710 = vmatpush1.msra.mxu0 0.0
        %1711 = vmatprep.subr.mxu0 0.0
        %1712 = vmatpush1.msra.mxu0 0.0
        %1713 = vmatprep.subr.mxu0 0.0
        %1714 = vmatpush1.msra.mxu0 0.0
        %1715 = vmatprep.subr.mxu0 0.0
        %1716 = vmatpush1.msra.mxu0 0.0
        %1717 = vmatprep.subr.mxu0 0.0
        %1718 = vmatpush1.msra.mxu0 0.0
        %1719 = vmatprep.subr.mxu0 0.0
        %1720 = vmatpush1.msra.mxu0 0.0
        %1721 = vmatprep.subr.mxu0 0.0
        %1722 = vmatpush1.msra.mxu0 0.0
        %1723 = vmatprep.subr.mxu0 0.0
        %1724 = vmatpush1.msra.mxu0 0.0
        %1725 = vmatprep.subr.mxu0 0.0
        %1726 = vmatpush1.msra.mxu0 0.0
        %1727 = vmatprep.subr.mxu0 0.0
        %1728 = vmatpush1.msra.mxu0 0.0
        %1729 = vmatprep.subr.mxu0 0.0
        %1730 = vmatpush1.msra.mxu0 0.0
        %1731 = vmatprep.subr.mxu0 0.0
        %1732 = vmatpush1.msra.mxu0 0.0
        %1733 = vmatprep.subr.mxu0 0.0
        %1734 = vmatpush1.msra.mxu0 0.0
        %1735 = vmatprep.subr.mxu0 0.0
        %1736 = vmatpush1.msra.mxu0 0.0
        %1737 = vmatprep.subr.mxu0 0.0
        %1738 = vmatpush1.msra.mxu0 0.0
        %1739 = vmatprep.subr.mxu0 0.0
        %1740 = vmatpush1.msra.mxu0 0.0
        %1741 = vmatprep.subr.mxu0 0.0
        %1742 = vmatpush1.msra.mxu0 0.0
        %1743 = vmatprep.subr.mxu0 0.0
        %1744 = vmatpush1.msra.mxu0 0.0
        %1745 = vmatprep.subr.mxu0 0.0
        %1746 = vmatpush1.msra.mxu0 0.0
        %1747 = vmatprep.subr.mxu0 0.0
        %1748 = vmatpush1.msra.mxu0 0.0
        %1749 = vmatprep.subr.mxu0 0.0
        %1750 = vmatpush1.msra.mxu0 0.0
        %1751 = vmatprep.subr.mxu0 0.0
        %1752 = vmatpush1.msra.mxu0 0.0
        %1753 = vmatprep.subr.mxu0 0.0
        %1754 = vmatpush1.msra.mxu0 0.0
        %1755 = vmatprep.subr.mxu0 0.0
        %1756 = vmatpush1.msra.mxu0 0.0
        %1757 = vmatprep.subr.mxu0 0.0
        %1758 = vmatpush1.msra.mxu0 0.0
        %1759 = vmatprep.subr.mxu0 0.0
        %1760 = vmatpush1.msra.mxu0 0.0
        %1761 = vmatprep.subr.mxu0 0.0
        %1762 = vmatpush1.msra.mxu0 0.0
        %1763 = vmatprep.subr.mxu0 0.0
        %1764 = vmatpush1.msra.mxu0 0.0
        %1765 = vmatprep.mubr.f32.mxu0 0.0
        %1766 = vmatmul.mubr.f32.gmra.mrb[0].mxu0 %v1699
        %v1767 = vpop.f32.mrb[0].mxu0
        %v1768 = vadd.f32 0.0, %v1767
        %v1769 = vpop.f32.mrb[0].mxu0
        %1770 = vdwg.mxu0
        %1773 = vrot.lane.b32.xlu0 %v1032, 8
        %v1774 = vpop.permute.xlu0 %1773
        %1775 = vrot.lane.b32.xlu0 %v1108, 8
        %v1776 = vpop.permute.xlu0 %1775
        %1781 = vrot.lane.b32.xlu0 %v1362, 16
        %v1782 = vpop.permute.xlu0 %1781
        %1783 = vrot.lane.b32.xlu0 %v1438, 16
        %v1784 = vpop.permute.xlu0 %1783
        %1789 = vrot.lane.b32.xlu0 %v1692, 24
        %v1790 = vpop.permute.xlu0 %1789
        %1791 = vrot.lane.b32.xlu0 %v1768, 24
        %v1792 = vpop.permute.xlu0 %1791
        %v1795 = vsel %vm455, %v702, %v1774
        %v1796 = vsel %vm455, %v778, %v1776
        %vm1797 = vcmask 130048
        %v1798 = vsel %vm1797, %v1795, %v1782
        %v1799 = vsel %vm1797, %v1796, %v1784
        %vm1800 = vcmask 195584
        %v1801 = vsel %vm1800, %v1798, %v1790
        %v1802 = vsel %vm1800, %v1799, %v1792
        %1807 = vrot.lane.b32.xlu0 %v325, 32
        %v1808 = vpop.permute.xlu0 %1807
        %1809 = vrot.lane.b32.xlu0 %v326, 32
        %v1810 = vpop.permute.xlu0 %1809
        %1811 = vrot.lane.b32.xlu0 %v327, 32
        %v1812 = vpop.permute.xlu0 %1811
        %1813 = vrot.lane.b32.xlu0 %v328, 32
        %v1814 = vpop.permute.xlu0 %1813
        %v1820 = vsel %vm285, %v1801, 0
        %v1823 = vsel %vm285, %v1802, 0
        %1825 = vmatprep.subr.mxu0 0.0
        %1826 = vmatpush1.msra.mxu0 %v1808
        %1827 = vmatprep.subr.mxu0 0.0
        %1828 = vmatpush1.msra.mxu0 %v1810
        %1829 = vmatprep.subr.mxu0 0.0
        %1830 = vmatpush1.msra.mxu0 %v1812
        %1831 = vmatprep.subr.mxu0 0.0
        %1832 = vmatpush1.msra.mxu0 %v1814
        %1833 = vmatprep.subr.mxu0 0.0
        %1834 = vmatpush1.msra.mxu0 0.0
        %1835 = vmatprep.subr.mxu0 0.0
        %1836 = vmatpush1.msra.mxu0 0.0
        %1837 = vmatprep.subr.mxu0 0.0
        %1838 = vmatpush1.msra.mxu0 0.0
        %1839 = vmatprep.subr.mxu0 0.0
        %1840 = vmatpush1.msra.mxu0 0.0
        %1841 = vmatprep.subr.mxu0 0.0
        %1842 = vmatpush1.msra.mxu0 0.0
        %1843 = vmatprep.subr.mxu0 0.0
        %1844 = vmatpush1.msra.mxu0 0.0
        %1845 = vmatprep.subr.mxu0 0.0
        %1846 = vmatpush1.msra.mxu0 0.0
        %1847 = vmatprep.subr.mxu0 0.0
        %1848 = vmatpush1.msra.mxu0 0.0
        %1849 = vmatprep.subr.mxu0 0.0
        %1850 = vmatpush1.msra.mxu0 0.0
        %1851 = vmatprep.subr.mxu0 0.0
        %1852 = vmatpush1.msra.mxu0 0.0
        %1853 = vmatprep.subr.mxu0 0.0
        %1854 = vmatpush1.msra.mxu0 0.0
        %1855 = vmatprep.subr.mxu0 0.0
        %1856 = vmatpush1.msra.mxu0 0.0
        %1857 = vmatprep.subr.mxu0 0.0
        %1858 = vmatpush1.msra.mxu0 0.0
        %1859 = vmatprep.subr.mxu0 0.0
        %1860 = vmatpush1.msra.mxu0 0.0
        %1861 = vmatprep.subr.mxu0 0.0
        %1862 = vmatpush1.msra.mxu0 0.0
        %1863 = vmatprep.subr.mxu0 0.0
        %1864 = vmatpush1.msra.mxu0 0.0
        %1865 = vmatprep.subr.mxu0 0.0
        %1866 = vmatpush1.msra.mxu0 0.0
        %1867 = vmatprep.subr.mxu0 0.0
        %1868 = vmatpush1.msra.mxu0 0.0
        %1869 = vmatprep.subr.mxu0 0.0
        %1870 = vmatpush1.msra.mxu0 0.0
        %1871 = vmatprep.subr.mxu0 0.0
        %1872 = vmatpush1.msra.mxu0 0.0
        %1873 = vmatprep.subr.mxu0 0.0
        %1874 = vmatpush1.msra.mxu0 0.0
        %1875 = vmatprep.subr.mxu0 0.0
        %1876 = vmatpush1.msra.mxu0 0.0
        %1877 = vmatprep.subr.mxu0 0.0
        %1878 = vmatpush1.msra.mxu0 0.0
        %1879 = vmatprep.subr.mxu0 0.0
        %1880 = vmatpush1.msra.mxu0 0.0
        %1881 = vmatprep.subr.mxu0 0.0
        %1882 = vmatpush1.msra.mxu0 0.0
        %1883 = vmatprep.subr.mxu0 0.0
        %1884 = vmatpush1.msra.mxu0 0.0
        %1885 = vmatprep.subr.mxu0 0.0
        %1886 = vmatpush1.msra.mxu0 0.0
        %1887 = vmatprep.subr.mxu0 0.0
        %1888 = vmatpush1.msra.mxu0 0.0
        %1889 = vmatprep.mubr.f32.mxu0 0.0
        %1890 = vmatmul.mubr.f32.gmra.mrb[0].mxu0 %v1820
        %v1891 = vpop.f32.mrb[0].mxu0
        %v1892 = vadd.f32 0.0, %v1891
        %v1893 = vpop.f32.mrb[0].mxu0
        %1894 = vmatprep.mubr.f32.mxu0 0.0
        %1895 = vmatmul.mubr.f32.gmra.mrb[0].mxu0 %v1823
        %v1896 = vpop.f32.mrb[0].mxu0
        %v1897 = vadd.f32 0.0, %v1896
        %v1898 = vpop.f32.mrb[0].mxu0
        %1899 = vdwg.mxu0
        %v1900 = vadd.f32 %v323, %v1892
        %v1901 = vadd.f32 %v324, %v1897
        %v1902 = vlaneseq
        %v1903 = vshrl.u32 %v1902, 7
        %v1904 = vsub.s32 3, %v1903
        %v1905 = vrot.slane %v281, %v1904
        %v1906 = vadd.f32 %v1900, %v1905
        %v1907 = vadd.f32 %v1901, %v1905
        %v1908 = vsel %vm285, %v1906, 0.0
        %1909 = vadd.xlane.f32.xlu0 %v1908
        %v1910 = vpop.xlane.xlu0 %1909
        %v1911 = vsel %vm285, %v1907, 0.0
        %1912 = vadd.xlane.f32.xlu0 %v1911
        %v1913 = vpop.xlane.xlu0 %1912
        %v1914 = vmul.f32 %v1910, %v292
        %v1915 = vmul.f32 %v1913, %v292
        %v1916 = vsub.f32 %v1906, %v1914
        %v1917 = vsub.f32 %v1907, %v1915
        %v1918 = vmul.f32 %v1916, %v1916
        %v1919 = vmul.f32 %v1917, %v1917
        %v1920 = vsel %vm285, %v1918, 0.0
        %1921 = vadd.xlane.f32.xlu0 %v1920
        %v1922 = vpop.xlane.xlu0 %1921
        %v1923 = vsel %vm285, %v1919, 0.0
        %1924 = vadd.xlane.f32.xlu0 %v1923
        %v1925 = vpop.xlane.xlu0 %1924
        %v1926 = vmul.f32 %v1922, %v292
        %v1927 = vmul.f32 %v1925, %v292
        %v1928 = vadd.f32 %v1926, 1e-12
        %v1929 = vadd.f32 %v1927, 1e-12
        %v1930 = vrsqrt.pop %v1928
        %v1931 = vrsqrt.pop %v1929
        %v1932 = vmul.f32 %v1916, %v1930
        %v1933 = vmul.f32 %v1917, %v1931
        %v1934 = vlaneseq
        %v1935 = vshrl.u32 %v1934, 7
        %v1936 = vsub.s32 4, %v1935
        %v1937 = vrot.slane %v281, %v1936
        %v1938 = vmul.f32 %v1932, %v1937
        %v1939 = vmul.f32 %v1933, %v1937
        %v1940 = vlaneseq
        %v1941 = vshrl.u32 %v1940, 7
        %v1942 = vsub.s32 5, %v1941
        %v1943 = vrot.slane %v281, %v1942
        %v1944 = vadd.f32 %v1938, %v1943
        %v1945 = vadd.f32 %v1939, %v1943
        %v1946 = vld [vmem:[%s3] sm:$0xff]
        %v1947 = vld [vmem:[%s3 + $0x8] sm:$0xff]
        %v1948 = vld [vmem:[%s3 + $0x10] sm:$0xff]
        %v1949 = vld [vmem:[%s3 + $0x18] sm:$0xff]
        %v1950 = vlaneseq
        %v1951 = vshrl.u32 %v1950, 7
        %v1952 = vsub.s32 6, %v1951
        %v1953 = vrot.slane %v281, %v1952
        %v1955 = vsel %vm285, %v1944, 0
        %v1958 = vsel %vm285, %v1945, 0
        %1960 = vmatprep.subr.mxu0 0.0
        %1961 = vmatpush1.msra.mxu0 %v1946
        %1962 = vmatprep.subr.mxu0 0.0
        %1963 = vmatpush1.msra.mxu0 %v1947
        %1964 = vmatprep.subr.mxu0 0.0
        %1965 = vmatpush1.msra.mxu0 %v1948
        %1966 = vmatprep.subr.mxu0 0.0
        %1967 = vmatpush1.msra.mxu0 %v1949
        %1968 = vmatprep.subr.mxu0 0.0
        %1969 = vmatpush1.msra.mxu0 0.0
        %1970 = vmatprep.subr.mxu0 0.0
        %1971 = vmatpush1.msra.mxu0 0.0
        %1972 = vmatprep.subr.mxu0 0.0
        %1973 = vmatpush1.msra.mxu0 0.0
        %1974 = vmatprep.subr.mxu0 0.0
        %1975 = vmatpush1.msra.mxu0 0.0
        %1976 = vmatprep.subr.mxu0 0.0
        %1977 = vmatpush1.msra.mxu0 0.0
        %1978 = vmatprep.subr.mxu0 0.0
        %1979 = vmatpush1.msra.mxu0 0.0
        %1980 = vmatprep.subr.mxu0 0.0
        %1981 = vmatpush1.msra.mxu0 0.0
        %1982 = vmatprep.subr.mxu0 0.0
        %1983 = vmatpush1.msra.mxu0 0.0
        %1984 = vmatprep.subr.mxu0 0.0
        %1985 = vmatpush1.msra.mxu0 0.0
        %1986 = vmatprep.subr.mxu0 0.0
        %1987 = vmatpush1.msra.mxu0 0.0
        %1988 = vmatprep.subr.mxu0 0.0
        %1989 = vmatpush1.msra.mxu0 0.0
        %1990 = vmatprep.subr.mxu0 0.0
        %1991 = vmatpush1.msra.mxu0 0.0
        %1992 = vmatprep.subr.mxu0 0.0
        %1993 = vmatpush1.msra.mxu0 0.0
        %1994 = vmatprep.subr.mxu0 0.0
        %1995 = vmatpush1.msra.mxu0 0.0
        %1996 = vmatprep.subr.mxu0 0.0
        %1997 = vmatpush1.msra.mxu0 0.0
        %1998 = vmatprep.subr.mxu0 0.0
        %1999 = vmatpush1.msra.mxu0 0.0
        %2000 = vmatprep.subr.mxu0 0.0
        %2001 = vmatpush1.msra.mxu0 0.0
        %2002 = vmatprep.subr.mxu0 0.0
        %2003 = vmatpush1.msra.mxu0 0.0
        %2004 = vmatprep.subr.mxu0 0.0
        %2005 = vmatpush1.msra.mxu0 0.0
        %2006 = vmatprep.subr.mxu0 0.0
        %2007 = vmatpush1.msra.mxu0 0.0
        %2008 = vmatprep.subr.mxu0 0.0
        %2009 = vmatpush1.msra.mxu0 0.0
        %2010 = vmatprep.subr.mxu0 0.0
        %2011 = vmatpush1.msra.mxu0 0.0
        %2012 = vmatprep.subr.mxu0 0.0
        %2013 = vmatpush1.msra.mxu0 0.0
        %2014 = vmatprep.subr.mxu0 0.0
        %2015 = vmatpush1.msra.mxu0 0.0
        %2016 = vmatprep.subr.mxu0 0.0
        %2017 = vmatpush1.msra.mxu0 0.0
        %2018 = vmatprep.subr.mxu0 0.0
        %2019 = vmatpush1.msra.mxu0 0.0
        %2020 = vmatprep.subr.mxu0 0.0
        %2021 = vmatpush1.msra.mxu0 0.0
        %2022 = vmatprep.subr.mxu0 0.0
        %2023 = vmatpush1.msra.mxu0 0.0
        %2024 = vmatprep.mubr.f32.mxu0 0.0
        %2025 = vmatmul.mubr.f32.gmra.mrb[0].mxu0 %v1955
        %v2026 = vpop.f32.mrb[0].mxu0
        %v2027 = vadd.f32 %v1953, %v2026
        %v2028 = vpop.f32.mrb[0].mxu0
        %2029 = vmatprep.mubr.f32.mxu0 0.0
        %2030 = vmatmul.mubr.f32.gmra.mrb[0].mxu0 %v1958
        %v2031 = vpop.f32.mrb[0].mxu0
        %v2032 = vadd.f32 %v1953, %v2031
        %v2033 = vpop.f32.mrb[0].mxu0
        %2034 = vdwg.mxu0
        %v2035 = vmul.f32 %v2027, 0.5
        %v2036 = vmul.f32 %v2032, 0.5
        %v2037 = vmul.f32 %v2027, 0.70710677
        %v2038 = vmul.f32 %v2032, 0.70710677
        %v2039 = verf.f32.pop %v2037
        %v2040 = verf.f32.pop %v2038
        %v2041 = vadd.f32 %v2039, 1.0
        %v2042 = vadd.f32 %v2040, 1.0
        %v2043 = vmul.f32 %v2035, %v2041
        %v2044 = vmul.f32 %v2036, %v2042
        %v2045 = vld [vmem:[%s4] sm:$0xff]
        %v2046 = vld [vmem:[%s4 + $0x8] sm:$0xff]
        %v2047 = vld [vmem:[%s4 + $0x10] sm:$0xff]
        %v2048 = vld [vmem:[%s4 + $0x18] sm:$0xff]
        %v2049 = vld [vmem:[%s4 + $0x20] sm:$0xff]
        %v2050 = vld [vmem:[%s4 + $0x28] sm:$0xff]
        %v2051 = vld [vmem:[%s4 + $0x30] sm:$0xff]
        %v2052 = vld [vmem:[%s4 + $0x38] sm:$0xff]
        %vm2053 = vcmask 523264
        %v2055 = vsel %vm2053, %v2043, 0
        %v2058 = vsel %vm2053, %v2044, 0
        %2060 = vmatprep.subr.mxu0 0.0
        %2061 = vmatpush1.msra.mxu0 %v2045
        %2062 = vmatprep.subr.mxu0 0.0
        %2063 = vmatpush1.msra.mxu0 %v2046
        %2064 = vmatprep.subr.mxu0 0.0
        %2065 = vmatpush1.msra.mxu0 %v2047
        %2066 = vmatprep.subr.mxu0 0.0
        %2067 = vmatpush1.msra.mxu0 %v2048
        %2068 = vmatprep.subr.mxu0 0.0
        %2069 = vmatpush1.msra.mxu0 %v2049
        %2070 = vmatprep.subr.mxu0 0.0
        %2071 = vmatpush1.msra.mxu0 %v2050
        %2072 = vmatprep.subr.mxu0 0.0
        %2073 = vmatpush1.msra.mxu0 %v2051
        %2074 = vmatprep.subr.mxu0 0.0
        %2075 = vmatpush1.msra.mxu0 %v2052
        %2076 = vmatprep.subr.mxu0 0.0
        %2077 = vmatpush1.msra.mxu0 0.0
        %2078 = vmatprep.subr.mxu0 0.0
        %2079 = vmatpush1.msra.mxu0 0.0
        %2080 = vmatprep.subr.mxu0 0.0
        %2081 = vmatpush1.msra.mxu0 0.0
        %2082 = vmatprep.subr.mxu0 0.0
        %2083 = vmatpush1.msra.mxu0 0.0
        %2084 = vmatprep.subr.mxu0 0.0
        %2085 = vmatpush1.msra.mxu0 0.0
        %2086 = vmatprep.subr.mxu0 0.0
        %2087 = vmatpush1.msra.mxu0 0.0
        %2088 = vmatprep.subr.mxu0 0.0
        %2089 = vmatpush1.msra.mxu0 0.0
        %2090 = vmatprep.subr.mxu0 0.0
        %2091 = vmatpush1.msra.mxu0 0.0
        %2092 = vmatprep.subr.mxu0 0.0
        %2093 = vmatpush1.msra.mxu0 0.0
        %2094 = vmatprep.subr.mxu0 0.0
        %2095 = vmatpush1.msra.mxu0 0.0
        %2096 = vmatprep.subr.mxu0 0.0
        %2097 = vmatpush1.msra.mxu0 0.0
        %2098 = vmatprep.subr.mxu0 0.0
        %2099 = vmatpush1.msra.mxu0 0.0
        %2100 = vmatprep.subr.mxu0 0.0
        %2101 = vmatpush1.msra.mxu0 0.0
        %2102 = vmatprep.subr.mxu0 0.0
        %2103 = vmatpush1.msra.mxu0 0.0
        %2104 = vmatprep.subr.mxu0 0.0
        %2105 = vmatpush1.msra.mxu0 0.0
        %2106 = vmatprep.subr.mxu0 0.0
        %2107 = vmatpush1.msra.mxu0 0.0
        %2108 = vmatprep.subr.mxu0 0.0
        %2109 = vmatpush1.msra.mxu0 0.0
        %2110 = vmatprep.subr.mxu0 0.0
        %2111 = vmatpush1.msra.mxu0 0.0
        %2112 = vmatprep.subr.mxu0 0.0
        %2113 = vmatpush1.msra.mxu0 0.0
        %2114 = vmatprep.subr.mxu0 0.0
        %2115 = vmatpush1.msra.mxu0 0.0
        %2116 = vmatprep.subr.mxu0 0.0
        %2117 = vmatpush1.msra.mxu0 0.0
        %2118 = vmatprep.subr.mxu0 0.0
        %2119 = vmatpush1.msra.mxu0 0.0
        %2120 = vmatprep.subr.mxu0 0.0
        %2121 = vmatpush1.msra.mxu0 0.0
        %2122 = vmatprep.subr.mxu0 0.0
        %2123 = vmatpush1.msra.mxu0 0.0
        %2124 = vmatprep.mubr.f32.mxu0 0.0
        %2125 = vmatmul.mubr.f32.gmra.mrb[0].mxu0 %v2055
        %v2126 = vpop.f32.mrb[0].mxu0
        %v2127 = vadd.f32 0.0, %v2126
        %v2128 = vpop.f32.mrb[0].mxu0
        %2129 = vmatprep.mubr.f32.mxu0 0.0
        %2130 = vmatmul.mubr.f32.gmra.mrb[0].mxu0 %v2058
        %v2131 = vpop.f32.mrb[0].mxu0
        %v2132 = vadd.f32 0.0, %v2131
        %v2133 = vpop.f32.mrb[0].mxu0
        %2134 = vdwg.mxu0
        %v2135 = vadd.f32 %v1906, %v2127
        %v2136 = vadd.f32 %v1907, %v2132
        %v2137 = vlaneseq
        %v2138 = vshrl.u32 %v2137, 7
        %v2139 = vsub.s32 7, %v2138
        %v2140 = vrot.slane %v281, %v2139
        %v2141 = vadd.f32 %v2135, %v2140
        %v2142 = vadd.f32 %v2136, %v2140
        %s2143 = scalar_lea.vmem %s2, 32
        %v2144 = vld [vmem:[%s2143] sm:$0xff]
        %v2145 = vld [vmem:[%s2143 + $0x8] sm:$0xff]
        %v2146 = vld [vmem:[%s2143 + $0x10] sm:$0xff]
        %v2147 = vld [vmem:[%s2143 + $0x18] sm:$0xff]
        %v2148 = vsel %vm285, %v2141, 0.0
        %2149 = vadd.xlane.f32.xlu0 %v2148
        %v2150 = vpop.xlane.xlu0 %2149
        %v2151 = vsel %vm285, %v2142, 0.0
        %2152 = vadd.xlane.f32.xlu0 %v2151
        %v2153 = vpop.xlane.xlu0 %2152
        %v2154 = vmul.f32 %v2150, %v292
        %v2155 = vmul.f32 %v2153, %v292
        %v2156 = vsub.f32 %v2141, %v2154
        %v2157 = vsub.f32 %v2142, %v2155
        %v2158 = vmul.f32 %v2156, %v2156
        %v2159 = vmul.f32 %v2157, %v2157
        %v2160 = vsel %vm285, %v2158, 0.0
        %2161 = vadd.xlane.f32.xlu0 %v2160
        %v2162 = vpop.xlane.xlu0 %2161
        %v2163 = vsel %vm285, %v2159, 0.0
        %2164 = vadd.xlane.f32.xlu0 %v2163
        %v2165 = vpop.xlane.xlu0 %2164
        %v2166 = vmul.f32 %v2162, %v292
        %v2167 = vmul.f32 %v2165, %v292
        %v2168 = vadd.f32 %v2166, 1e-12
        %v2169 = vadd.f32 %v2167, 1e-12
        %v2170 = vrsqrt.pop %v2168
        %v2171 = vrsqrt.pop %v2169
        %v2172 = vmul.f32 %v2156, %v2170
        %v2173 = vmul.f32 %v2157, %v2171
        %v2174 = vlaneseq
        %v2175 = vshrl.u32 %v2174, 7
        %v2176 = vsub.s32 0, %v2175
        %v2177 = vrot.slane %v282, %v2176
        %v2178 = vmul.f32 %v2172, %v2177
        %v2179 = vmul.f32 %v2173, %v2177
        %v2180 = vlaneseq
        %v2181 = vshrl.u32 %v2180, 7
        %v2182 = vsub.s32 1, %v2181
        %v2183 = vrot.slane %v282, %v2182
        %v2184 = vadd.f32 %v2178, %v2183
        %v2185 = vadd.f32 %v2179, %v2183
        %v2186 = vlaneseq
        %v2187 = vshrl.u32 %v2186, 7
        %v2188 = vsub.s32 2, %v2187
        %v2189 = vrot.slane %v282, %v2188
        %v2191 = vsel %vm285, %v2184, 0
        %v2194 = vsel %vm285, %v2185, 0
        %2196 = vmatprep.subr.mxu0 0.0
        %2197 = vmatpush1.msra.mxu0 %v2144
        %2198 = vmatprep.subr.mxu0 0.0
        %2199 = vmatpush1.msra.mxu0 %v2145
        %2200 = vmatprep.subr.mxu0 0.0
        %2201 = vmatpush1.msra.mxu0 %v2146
        %2202 = vmatprep.subr.mxu0 0.0
        %2203 = vmatpush1.msra.mxu0 %v2147
        %2204 = vmatprep.subr.mxu0 0.0
        %2205 = vmatpush1.msra.mxu0 0.0
        %2206 = vmatprep.subr.mxu0 0.0
        %2207 = vmatpush1.msra.mxu0 0.0
        %2208 = vmatprep.subr.mxu0 0.0
        %2209 = vmatpush1.msra.mxu0 0.0
        %2210 = vmatprep.subr.mxu0 0.0
        %2211 = vmatpush1.msra.mxu0 0.0
        %2212 = vmatprep.subr.mxu0 0.0
        %2213 = vmatpush1.msra.mxu0 0.0
        %2214 = vmatprep.subr.mxu0 0.0
        %2215 = vmatpush1.msra.mxu0 0.0
        %2216 = vmatprep.subr.mxu0 0.0
        %2217 = vmatpush1.msra.mxu0 0.0
        %2218 = vmatprep.subr.mxu0 0.0
        %2219 = vmatpush1.msra.mxu0 0.0
        %2220 = vmatprep.subr.mxu0 0.0
        %2221 = vmatpush1.msra.mxu0 0.0
        %2222 = vmatprep.subr.mxu0 0.0
        %2223 = vmatpush1.msra.mxu0 0.0
        %2224 = vmatprep.subr.mxu0 0.0
        %2225 = vmatpush1.msra.mxu0 0.0
        %2226 = vmatprep.subr.mxu0 0.0
        %2227 = vmatpush1.msra.mxu0 0.0
        %2228 = vmatprep.subr.mxu0 0.0
        %2229 = vmatpush1.msra.mxu0 0.0
        %2230 = vmatprep.subr.mxu0 0.0
        %2231 = vmatpush1.msra.mxu0 0.0
        %2232 = vmatprep.subr.mxu0 0.0
        %2233 = vmatpush1.msra.mxu0 0.0
        %2234 = vmatprep.subr.mxu0 0.0
        %2235 = vmatpush1.msra.mxu0 0.0
        %2236 = vmatprep.subr.mxu0 0.0
        %2237 = vmatpush1.msra.mxu0 0.0
        %2238 = vmatprep.subr.mxu0 0.0
        %2239 = vmatpush1.msra.mxu0 0.0
        %2240 = vmatprep.subr.mxu0 0.0
        %2241 = vmatpush1.msra.mxu0 0.0
        %2242 = vmatprep.subr.mxu0 0.0
        %2243 = vmatpush1.msra.mxu0 0.0
        %2244 = vmatprep.subr.mxu0 0.0
        %2245 = vmatpush1.msra.mxu0 0.0
        %2246 = vmatprep.subr.mxu0 0.0
        %2247 = vmatpush1.msra.mxu0 0.0
        %2248 = vmatprep.subr.mxu0 0.0
        %2249 = vmatpush1.msra.mxu0 0.0
        %2250 = vmatprep.subr.mxu0 0.0
        %2251 = vmatpush1.msra.mxu0 0.0
        %2252 = vmatprep.subr.mxu0 0.0
        %2253 = vmatpush1.msra.mxu0 0.0
        %2254 = vmatprep.subr.mxu0 0.0
        %2255 = vmatpush1.msra.mxu0 0.0
        %2256 = vmatprep.subr.mxu0 0.0
        %2257 = vmatpush1.msra.mxu0 0.0
        %2258 = vmatprep.subr.mxu0 0.0
        %2259 = vmatpush1.msra.mxu0 0.0
        %2260 = vmatprep.mubr.f32.mxu0 0.0
        %2261 = vmatmul.mubr.f32.gmra.mrb[0].mxu0 %v2191
        %v2262 = vpop.f32.mrb[0].mxu0
        %v2263 = vadd.f32 %v2189, %v2262
        %v2264 = vpop.f32.mrb[0].mxu0
        %2265 = vmatprep.mubr.f32.mxu0 0.0
        %2266 = vmatmul.mubr.f32.gmra.mrb[0].mxu0 %v2194
        %v2267 = vpop.f32.mrb[0].mxu0
        %v2268 = vadd.f32 %v2189, %v2267
        %v2269 = vpop.f32.mrb[0].mxu0
        %2270 = vdwg.mxu0
        %2272 = vrot.lane.b32.xlu0 %v2263, 96
        %v2273 = vpop.permute.xlu0 %2272
        %v2274 = vsel %vm455, %v2263, 0
        %v2276 = vsel %vm455, %v2273, 0
        %2278 = vmatprep.subr.mxu0 0.0
        %2279 = vmatpush1.xpose.msra.mxu0 %v2276
        %2280 = vmatprep.subr.mxu0 0.0
        %2281 = vmatpush1.xpose.msra.mxu0 0.0
        %2282 = vmatprep.subr.mxu0 0.0
        %2283 = vmatpush1.xpose.msra.mxu0 0.0
        %2284 = vmatprep.subr.mxu0 0.0
        %2285 = vmatpush1.xpose.msra.mxu0 0.0
        %2286 = vmatprep.subr.mxu0 0.0
        %2287 = vmatpush1.xpose.msra.mxu0 0.0
        %2288 = vmatprep.subr.mxu0 0.0
        %2289 = vmatpush1.xpose.msra.mxu0 0.0
        %2290 = vmatprep.subr.mxu0 0.0
        %2291 = vmatpush1.xpose.msra.mxu0 0.0
        %2292 = vmatprep.subr.mxu0 0.0
        %2293 = vmatpush1.xpose.msra.mxu0 0.0
        %2294 = vmatprep.subr.mxu0 0.0
        %2295 = vmatpush1.xpose.msra.mxu0 0.0
        %2296 = vmatprep.subr.mxu0 0.0
        %2297 = vmatpush1.xpose.msra.mxu0 0.0
        %2298 = vmatprep.subr.mxu0 0.0
        %2299 = vmatpush1.xpose.msra.mxu0 0.0
        %2300 = vmatprep.subr.mxu0 0.0
        %2301 = vmatpush1.xpose.msra.mxu0 0.0
        %2302 = vmatprep.subr.mxu0 0.0
        %2303 = vmatpush1.xpose.msra.mxu0 0.0
        %2304 = vmatprep.subr.mxu0 0.0
        %2305 = vmatpush1.xpose.msra.mxu0 0.0
        %2306 = vmatprep.subr.mxu0 0.0
        %2307 = vmatpush1.xpose.msra.mxu0 0.0
        %2308 = vmatprep.subr.mxu0 0.0
        %2309 = vmatpush1.xpose.msra.mxu0 0.0
        %2310 = vmatprep.subr.mxu0 0.0
        %2311 = vmatpush1.xpose.msra.mxu0 0.0
        %2312 = vmatprep.subr.mxu0 0.0
        %2313 = vmatpush1.xpose.msra.mxu0 0.0
        %2314 = vmatprep.subr.mxu0 0.0
        %2315 = vmatpush1.xpose.msra.mxu0 0.0
        %2316 = vmatprep.subr.mxu0 0.0
        %2317 = vmatpush1.xpose.msra.mxu0 0.0
        %2318 = vmatprep.subr.mxu0 0.0
        %2319 = vmatpush1.xpose.msra.mxu0 0.0
        %2320 = vmatprep.subr.mxu0 0.0
        %2321 = vmatpush1.xpose.msra.mxu0 0.0
        %2322 = vmatprep.subr.mxu0 0.0
        %2323 = vmatpush1.xpose.msra.mxu0 0.0
        %2324 = vmatprep.subr.mxu0 0.0
        %2325 = vmatpush1.xpose.msra.mxu0 0.0
        %2326 = vmatprep.subr.mxu0 0.0
        %2327 = vmatpush1.xpose.msra.mxu0 0.0
        %2328 = vmatprep.subr.mxu0 0.0
        %2329 = vmatpush1.xpose.msra.mxu0 0.0
        %2330 = vmatprep.subr.mxu0 0.0
        %2331 = vmatpush1.xpose.msra.mxu0 0.0
        %2332 = vmatprep.subr.mxu0 0.0
        %2333 = vmatpush1.xpose.msra.mxu0 0.0
        %2334 = vmatprep.subr.mxu0 0.0
        %2335 = vmatpush1.xpose.msra.mxu0 0.0
        %2336 = vmatprep.subr.mxu0 0.0
        %2337 = vmatpush1.xpose.msra.mxu0 0.0
        %2338 = vmatprep.subr.mxu0 0.0
        %2339 = vmatpush1.xpose.msra.mxu0 0.0
        %2340 = vmatprep.subr.mxu0 0.0
        %2341 = vmatpush1.xpose.msra.mxu0 0.0
        %2342 = vmatprep.mubr.f32.mxu0 0.0
        %2343 = vmatmul.mubr.f32.gmra.mrb[0].mxu0 %v2274
        %v2344 = vpop.f32.mrb[0].mxu0
        %v2345 = vadd.f32 0.0, %v2344
        %v2346 = vpop.f32.mrb[0].mxu0
        %2347 = vdwg.mxu0
        %2349 = vrot.lane.b32.xlu0 %v2268, 96
        %v2350 = vpop.permute.xlu0 %2349
        %v2351 = vsel %vm455, %v2268, 0
        %v2353 = vsel %vm455, %v2350, 0
        %2355 = vmatprep.subr.mxu0 0.0
        %2356 = vmatpush1.xpose.msra.mxu0 %v2353
        %2357 = vmatprep.subr.mxu0 0.0
        %2358 = vmatpush1.xpose.msra.mxu0 0.0
        %2359 = vmatprep.subr.mxu0 0.0
        %2360 = vmatpush1.xpose.msra.mxu0 0.0
        %2361 = vmatprep.subr.mxu0 0.0
        %2362 = vmatpush1.xpose.msra.mxu0 0.0
        %2363 = vmatprep.subr.mxu0 0.0
        %2364 = vmatpush1.xpose.msra.mxu0 0.0
        %2365 = vmatprep.subr.mxu0 0.0
        %2366 = vmatpush1.xpose.msra.mxu0 0.0
        %2367 = vmatprep.subr.mxu0 0.0
        %2368 = vmatpush1.xpose.msra.mxu0 0.0
        %2369 = vmatprep.subr.mxu0 0.0
        %2370 = vmatpush1.xpose.msra.mxu0 0.0
        %2371 = vmatprep.subr.mxu0 0.0
        %2372 = vmatpush1.xpose.msra.mxu0 0.0
        %2373 = vmatprep.subr.mxu0 0.0
        %2374 = vmatpush1.xpose.msra.mxu0 0.0
        %2375 = vmatprep.subr.mxu0 0.0
        %2376 = vmatpush1.xpose.msra.mxu0 0.0
        %2377 = vmatprep.subr.mxu0 0.0
        %2378 = vmatpush1.xpose.msra.mxu0 0.0
        %2379 = vmatprep.subr.mxu0 0.0
        %2380 = vmatpush1.xpose.msra.mxu0 0.0
        %2381 = vmatprep.subr.mxu0 0.0
        %2382 = vmatpush1.xpose.msra.mxu0 0.0
        %2383 = vmatprep.subr.mxu0 0.0
        %2384 = vmatpush1.xpose.msra.mxu0 0.0
        %2385 = vmatprep.subr.mxu0 0.0
        %2386 = vmatpush1.xpose.msra.mxu0 0.0
        %2387 = vmatprep.subr.mxu0 0.0
        %2388 = vmatpush1.xpose.msra.mxu0 0.0
        %2389 = vmatprep.subr.mxu0 0.0
        %2390 = vmatpush1.xpose.msra.mxu0 0.0
        %2391 = vmatprep.subr.mxu0 0.0
        %2392 = vmatpush1.xpose.msra.mxu0 0.0
        %2393 = vmatprep.subr.mxu0 0.0
        %2394 = vmatpush1.xpose.msra.mxu0 0.0
        %2395 = vmatprep.subr.mxu0 0.0
        %2396 = vmatpush1.xpose.msra.mxu0 0.0
        %2397 = vmatprep.subr.mxu0 0.0
        %2398 = vmatpush1.xpose.msra.mxu0 0.0
        %2399 = vmatprep.subr.mxu0 0.0
        %2400 = vmatpush1.xpose.msra.mxu0 0.0
        %2401 = vmatprep.subr.mxu0 0.0
        %2402 = vmatpush1.xpose.msra.mxu0 0.0
        %2403 = vmatprep.subr.mxu0 0.0
        %2404 = vmatpush1.xpose.msra.mxu0 0.0
        %2405 = vmatprep.subr.mxu0 0.0
        %2406 = vmatpush1.xpose.msra.mxu0 0.0
        %2407 = vmatprep.subr.mxu0 0.0
        %2408 = vmatpush1.xpose.msra.mxu0 0.0
        %2409 = vmatprep.subr.mxu0 0.0
        %2410 = vmatpush1.xpose.msra.mxu0 0.0
        %2411 = vmatprep.subr.mxu0 0.0
        %2412 = vmatpush1.xpose.msra.mxu0 0.0
        %2413 = vmatprep.subr.mxu0 0.0
        %2414 = vmatpush1.xpose.msra.mxu0 0.0
        %2415 = vmatprep.subr.mxu0 0.0
        %2416 = vmatpush1.xpose.msra.mxu0 0.0
        %2417 = vmatprep.subr.mxu0 0.0
        %2418 = vmatpush1.xpose.msra.mxu0 0.0
        %2419 = vmatprep.mubr.f32.mxu0 0.0
        %2420 = vmatmul.mubr.f32.gmra.mrb[0].mxu0 %v2351
        %v2421 = vpop.f32.mrb[0].mxu0
        %v2422 = vadd.f32 0.0, %v2421
        %v2423 = vpop.f32.mrb[0].mxu0
        %2424 = vdwg.mxu0
        %v2425 = vsel %vm455, %v2345, -inf
        %2426 = vmax.xlane.f32.xlu0 %v2425
        %v2427 = vpop.xlane.xlu0 %2426
        %v2428 = vsel %vm455, %v2422, -inf
        %2429 = vmax.xlane.f32.xlu0 %v2428
        %v2430 = vpop.xlane.xlu0 %2429
        %v2431 = vsub.f32 %v2345, %v2427
        %v2432 = vsub.f32 %v2422, %v2430
        %v2433 = vmul.f32 %v2431, 1.442695
        %v2434 = vpow.pop %v2433
        %v2435 = vmul.f32 %v2432, 1.442695
        %v2436 = vpow.pop %v2435
        %v2437 = vsel %vm455, %v2434, 0.0
        %2438 = vadd.xlane.f32.xlu0 %v2437
        %v2439 = vpop.xlane.xlu0 %2438
        %v2440 = vsel %vm455, %v2436, 0.0
        %2441 = vadd.xlane.f32.xlu0 %v2440
        %v2442 = vpop.xlane.xlu0 %2441
        %v2443 = vrcp.pop %v2439
        %v2444 = vrcp.pop %v2442
        %v2445 = vmul.f32 %v2434, %v2443
        %v2446 = vmul.f32 %v2436, %v2444
        %2447 = vrot.lane.b32.xlu0 %v2263, 64
        %v2448 = vpop.permute.xlu0 %2447
        %v2451 = vsel %vm455, %v2445, 0
        %2453 = vmatprep.subr.mxu0 0.0
        %2454 = vmatpush1.msra.mxu0 %v2448
        %2455 = vmatprep.subr.mxu0 0.0
        %2456 = vmatpush1.msra.mxu0 0.0
        %2457 = vmatprep.subr.mxu0 0.0
        %2458 = vmatpush1.msra.mxu0 0.0
        %2459 = vmatprep.subr.mxu0 0.0
        %2460 = vmatpush1.msra.mxu0 0.0
        %2461 = vmatprep.subr.mxu0 0.0
        %2462 = vmatpush1.msra.mxu0 0.0
        %2463 = vmatprep.subr.mxu0 0.0
        %2464 = vmatpush1.msra.mxu0 0.0
        %2465 = vmatprep.subr.mxu0 0.0
        %2466 = vmatpush1.msra.mxu0 0.0
        %2467 = vmatprep.subr.mxu0 0.0
        %2468 = vmatpush1.msra.mxu0 0.0
        %2469 = vmatprep.subr.mxu0 0.0
        %2470 = vmatpush1.msra.mxu0 0.0
        %2471 = vmatprep.subr.mxu0 0.0
        %2472 = vmatpush1.msra.mxu0 0.0
        %2473 = vmatprep.subr.mxu0 0.0
        %2474 = vmatpush1.msra.mxu0 0.0
        %2475 = vmatprep.subr.mxu0 0.0
        %2476 = vmatpush1.msra.mxu0 0.0
        %2477 = vmatprep.subr.mxu0 0.0
        %2478 = vmatpush1.msra.mxu0 0.0
        %2479 = vmatprep.subr.mxu0 0.0
        %2480 = vmatpush1.msra.mxu0 0.0
        %2481 = vmatprep.subr.mxu0 0.0
        %2482 = vmatpush1.msra.mxu0 0.0
        %2483 = vmatprep.subr.mxu0 0.0
        %2484 = vmatpush1.msra.mxu0 0.0
        %2485 = vmatprep.subr.mxu0 0.0
        %2486 = vmatpush1.msra.mxu0 0.0
        %2487 = vmatprep.subr.mxu0 0.0
        %2488 = vmatpush1.msra.mxu0 0.0
        %2489 = vmatprep.subr.mxu0 0.0
        %2490 = vmatpush1.msra.mxu0 0.0
        %2491 = vmatprep.subr.mxu0 0.0
        %2492 = vmatpush1.msra.mxu0 0.0
        %2493 = vmatprep.subr.mxu0 0.0
        %2494 = vmatpush1.msra.mxu0 0.0
        %2495 = vmatprep.subr.mxu0 0.0
        %2496 = vmatpush1.msra.mxu0 0.0
        %2497 = vmatprep.subr.mxu0 0.0
        %2498 = vmatpush1.msra.mxu0 0.0
        %2499 = vmatprep.subr.mxu0 0.0
        %2500 = vmatpush1.msra.mxu0 0.0
        %2501 = vmatprep.subr.mxu0 0.0
        %2502 = vmatpush1.msra.mxu0 0.0
        %2503 = vmatprep.subr.mxu0 0.0
        %2504 = vmatpush1.msra.mxu0 0.0
        %2505 = vmatprep.subr.mxu0 0.0
        %2506 = vmatpush1.msra.mxu0 0.0
        %2507 = vmatprep.subr.mxu0 0.0
        %2508 = vmatpush1.msra.mxu0 0.0
        %2509 = vmatprep.subr.mxu0 0.0
        %2510 = vmatpush1.msra.mxu0 0.0
        %2511 = vmatprep.subr.mxu0 0.0
        %2512 = vmatpush1.msra.mxu0 0.0
        %2513 = vmatprep.subr.mxu0 0.0
        %2514 = vmatpush1.msra.mxu0 0.0
        %2515 = vmatprep.subr.mxu0 0.0
        %2516 = vmatpush1.msra.mxu0 0.0
        %2517 = vmatprep.mubr.f32.mxu0 0.0
        %2518 = vmatmul.mubr.f32.gmra.mrb[0].mxu0 %v2451
        %v2519 = vpop.f32.mrb[0].mxu0
        %v2520 = vadd.f32 0.0, %v2519
        %v2521 = vpop.f32.mrb[0].mxu0
        %2522 = vdwg.mxu0
        %2523 = vrot.lane.b32.xlu0 %v2268, 64
        %v2524 = vpop.permute.xlu0 %2523
        %v2527 = vsel %vm455, %v2446, 0
        %2529 = vmatprep.subr.mxu0 0.0
        %2530 = vmatpush1.msra.mxu0 %v2524
        %2531 = vmatprep.subr.mxu0 0.0
        %2532 = vmatpush1.msra.mxu0 0.0
        %2533 = vmatprep.subr.mxu0 0.0
        %2534 = vmatpush1.msra.mxu0 0.0
        %2535 = vmatprep.subr.mxu0 0.0
        %2536 = vmatpush1.msra.mxu0 0.0
        %2537 = vmatprep.subr.mxu0 0.0
        %2538 = vmatpush1.msra.mxu0 0.0
        %2539 = vmatprep.subr.mxu0 0.0
        %2540 = vmatpush1.msra.mxu0 0.0
        %2541 = vmatprep.subr.mxu0 0.0
        %2542 = vmatpush1.msra.mxu0 0.0
        %2543 = vmatprep.subr.mxu0 0.0
        %2544 = vmatpush1.msra.mxu0 0.0
        %2545 = vmatprep.subr.mxu0 0.0
        %2546 = vmatpush1.msra.mxu0 0.0
        %2547 = vmatprep.subr.mxu0 0.0
        %2548 = vmatpush1.msra.mxu0 0.0
        %2549 = vmatprep.subr.mxu0 0.0
        %2550 = vmatpush1.msra.mxu0 0.0
        %2551 = vmatprep.subr.mxu0 0.0
        %2552 = vmatpush1.msra.mxu0 0.0
        %2553 = vmatprep.subr.mxu0 0.0
        %2554 = vmatpush1.msra.mxu0 0.0
        %2555 = vmatprep.subr.mxu0 0.0
        %2556 = vmatpush1.msra.mxu0 0.0
        %2557 = vmatprep.subr.mxu0 0.0
        %2558 = vmatpush1.msra.mxu0 0.0
        %2559 = vmatprep.subr.mxu0 0.0
        %2560 = vmatpush1.msra.mxu0 0.0
        %2561 = vmatprep.subr.mxu0 0.0
        %2562 = vmatpush1.msra.mxu0 0.0
        %2563 = vmatprep.subr.mxu0 0.0
        %2564 = vmatpush1.msra.mxu0 0.0
        %2565 = vmatprep.subr.mxu0 0.0
        %2566 = vmatpush1.msra.mxu0 0.0
        %2567 = vmatprep.subr.mxu0 0.0
        %2568 = vmatpush1.msra.mxu0 0.0
        %2569 = vmatprep.subr.mxu0 0.0
        %2570 = vmatpush1.msra.mxu0 0.0
        %2571 = vmatprep.subr.mxu0 0.0
        %2572 = vmatpush1.msra.mxu0 0.0
        %2573 = vmatprep.subr.mxu0 0.0
        %2574 = vmatpush1.msra.mxu0 0.0
        %2575 = vmatprep.subr.mxu0 0.0
        %2576 = vmatpush1.msra.mxu0 0.0
        %2577 = vmatprep.subr.mxu0 0.0
        %2578 = vmatpush1.msra.mxu0 0.0
        %2579 = vmatprep.subr.mxu0 0.0
        %2580 = vmatpush1.msra.mxu0 0.0
        %2581 = vmatprep.subr.mxu0 0.0
        %2582 = vmatpush1.msra.mxu0 0.0
        %2583 = vmatprep.subr.mxu0 0.0
        %2584 = vmatpush1.msra.mxu0 0.0
        %2585 = vmatprep.subr.mxu0 0.0
        %2586 = vmatpush1.msra.mxu0 0.0
        %2587 = vmatprep.subr.mxu0 0.0
        %2588 = vmatpush1.msra.mxu0 0.0
        %2589 = vmatprep.subr.mxu0 0.0
        %2590 = vmatpush1.msra.mxu0 0.0
        %2591 = vmatprep.subr.mxu0 0.0
        %2592 = vmatpush1.msra.mxu0 0.0
        %2593 = vmatprep.mubr.f32.mxu0 0.0
        %2594 = vmatmul.mubr.f32.gmra.mrb[0].mxu0 %v2527
        %v2595 = vpop.f32.mrb[0].mxu0
        %v2596 = vadd.f32 0.0, %v2595
        %v2597 = vpop.f32.mrb[0].mxu0
        %2598 = vdwg.mxu0
        %2599 = vrot.lane.b32.xlu0 %v2263, 120
        %v2600 = vpop.permute.xlu0 %2599
        %2601 = vrot.lane.b32.xlu0 %v2263, 88
        %v2602 = vpop.permute.xlu0 %2601
        %v2603 = vsel %vm455, %v2600, 0
        %v2605 = vsel %vm455, %v2602, 0
        %2607 = vmatprep.subr.mxu0 0.0
        %2608 = vmatpush1.xpose.msra.mxu0 %v2605
        %2609 = vmatprep.subr.mxu0 0.0
        %2610 = vmatpush1.xpose.msra.mxu0 0.0
        %2611 = vmatprep.subr.mxu0 0.0
        %2612 = vmatpush1.xpose.msra.mxu0 0.0
        %2613 = vmatprep.subr.mxu0 0.0
        %2614 = vmatpush1.xpose.msra.mxu0 0.0
        %2615 = vmatprep.subr.mxu0 0.0
        %2616 = vmatpush1.xpose.msra.mxu0 0.0
        %2617 = vmatprep.subr.mxu0 0.0
        %2618 = vmatpush1.xpose.msra.mxu0 0.0
        %2619 = vmatprep.subr.mxu0 0.0
        %2620 = vmatpush1.xpose.msra.mxu0 0.0
        %2621 = vmatprep.subr.mxu0 0.0
        %2622 = vmatpush1.xpose.msra.mxu0 0.0
        %2623 = vmatprep.subr.mxu0 0.0
        %2624 = vmatpush1.xpose.msra.mxu0 0.0
        %2625 = vmatprep.subr.mxu0 0.0
        %2626 = vmatpush1.xpose.msra.mxu0 0.0
        %2627 = vmatprep.subr.mxu0 0.0
        %2628 = vmatpush1.xpose.msra.mxu0 0.0
        %2629 = vmatprep.subr.mxu0 0.0
        %2630 = vmatpush1.xpose.msra.mxu0 0.0
        %2631 = vmatprep.subr.mxu0 0.0
        %2632 = vmatpush1.xpose.msra.mxu0 0.0
        %2633 = vmatprep.subr.mxu0 0.0
        %2634 = vmatpush1.xpose.msra.mxu0 0.0
        %2635 = vmatprep.subr.mxu0 0.0
        %2636 = vmatpush1.xpose.msra.mxu0 0.0
        %2637 = vmatprep.subr.mxu0 0.0
        %2638 = vmatpush1.xpose.msra.mxu0 0.0
        %2639 = vmatprep.subr.mxu0 0.0
        %2640 = vmatpush1.xpose.msra.mxu0 0.0
        %2641 = vmatprep.subr.mxu0 0.0
        %2642 = vmatpush1.xpose.msra.mxu0 0.0
        %2643 = vmatprep.subr.mxu0 0.0
        %2644 = vmatpush1.xpose.msra.mxu0 0.0
        %2645 = vmatprep.subr.mxu0 0.0
        %2646 = vmatpush1.xpose.msra.mxu0 0.0
        %2647 = vmatprep.subr.mxu0 0.0
        %2648 = vmatpush1.xpose.msra.mxu0 0.0
        %2649 = vmatprep.subr.mxu0 0.0
        %2650 = vmatpush1.xpose.msra.mxu0 0.0
        %2651 = vmatprep.subr.mxu0 0.0
        %2652 = vmatpush1.xpose.msra.mxu0 0.0
        %2653 = vmatprep.subr.mxu0 0.0
        %2654 = vmatpush1.xpose.msra.mxu0 0.0
        %2655 = vmatprep.subr.mxu0 0.0
        %2656 = vmatpush1.xpose.msra.mxu0 0.0
        %2657 = vmatprep.subr.mxu0 0.0
        %2658 = vmatpush1.xpose.msra.mxu0 0.0
        %2659 = vmatprep.subr.mxu0 0.0
        %2660 = vmatpush1.xpose.msra.mxu0 0.0
        %2661 = vmatprep.subr.mxu0 0.0
        %2662 = vmatpush1.xpose.msra.mxu0 0.0
        %2663 = vmatprep.subr.mxu0 0.0
        %2664 = vmatpush1.xpose.msra.mxu0 0.0
        %2665 = vmatprep.subr.mxu0 0.0
        %2666 = vmatpush1.xpose.msra.mxu0 0.0
        %2667 = vmatprep.subr.mxu0 0.0
        %2668 = vmatpush1.xpose.msra.mxu0 0.0
        %2669 = vmatprep.subr.mxu0 0.0
        %2670 = vmatpush1.xpose.msra.mxu0 0.0
        %2671 = vmatprep.mubr.f32.mxu0 0.0
        %2672 = vmatmul.mubr.f32.gmra.mrb[0].mxu0 %v2603
        %v2673 = vpop.f32.mrb[0].mxu0
        %v2674 = vadd.f32 0.0, %v2673
        %v2675 = vpop.f32.mrb[0].mxu0
        %2676 = vdwg.mxu0
        %2677 = vrot.lane.b32.xlu0 %v2268, 120
        %v2678 = vpop.permute.xlu0 %2677
        %2679 = vrot.lane.b32.xlu0 %v2268, 88
        %v2680 = vpop.permute.xlu0 %2679
        %v2681 = vsel %vm455, %v2678, 0
        %v2683 = vsel %vm455, %v2680, 0
        %2685 = vmatprep.subr.mxu0 0.0
        %2686 = vmatpush1.xpose.msra.mxu0 %v2683
        %2687 = vmatprep.subr.mxu0 0.0
        %2688 = vmatpush1.xpose.msra.mxu0 0.0
        %2689 = vmatprep.subr.mxu0 0.0
        %2690 = vmatpush1.xpose.msra.mxu0 0.0
        %2691 = vmatprep.subr.mxu0 0.0
        %2692 = vmatpush1.xpose.msra.mxu0 0.0
        %2693 = vmatprep.subr.mxu0 0.0
        %2694 = vmatpush1.xpose.msra.mxu0 0.0
        %2695 = vmatprep.subr.mxu0 0.0
        %2696 = vmatpush1.xpose.msra.mxu0 0.0
        %2697 = vmatprep.subr.mxu0 0.0
        %2698 = vmatpush1.xpose.msra.mxu0 0.0
        %2699 = vmatprep.subr.mxu0 0.0
        %2700 = vmatpush1.xpose.msra.mxu0 0.0
        %2701 = vmatprep.subr.mxu0 0.0
        %2702 = vmatpush1.xpose.msra.mxu0 0.0
        %2703 = vmatprep.subr.mxu0 0.0
        %2704 = vmatpush1.xpose.msra.mxu0 0.0
        %2705 = vmatprep.subr.mxu0 0.0
        %2706 = vmatpush1.xpose.msra.mxu0 0.0
        %2707 = vmatprep.subr.mxu0 0.0
        %2708 = vmatpush1.xpose.msra.mxu0 0.0
        %2709 = vmatprep.subr.mxu0 0.0
        %2710 = vmatpush1.xpose.msra.mxu0 0.0
        %2711 = vmatprep.subr.mxu0 0.0
        %2712 = vmatpush1.xpose.msra.mxu0 0.0
        %2713 = vmatprep.subr.mxu0 0.0
        %2714 = vmatpush1.xpose.msra.mxu0 0.0
        %2715 = vmatprep.subr.mxu0 0.0
        %2716 = vmatpush1.xpose.msra.mxu0 0.0
        %2717 = vmatprep.subr.mxu0 0.0
        %2718 = vmatpush1.xpose.msra.mxu0 0.0
        %2719 = vmatprep.subr.mxu0 0.0
        %2720 = vmatpush1.xpose.msra.mxu0 0.0
        %2721 = vmatprep.subr.mxu0 0.0
        %2722 = vmatpush1.xpose.msra.mxu0 0.0
        %2723 = vmatprep.subr.mxu0 0.0
        %2724 = vmatpush1.xpose.msra.mxu0 0.0
        %2725 = vmatprep.subr.mxu0 0.0
        %2726 = vmatpush1.xpose.msra.mxu0 0.0
        %2727 = vmatprep.subr.mxu0 0.0
        %2728 = vmatpush1.xpose.msra.mxu0 0.0
        %2729 = vmatprep.subr.mxu0 0.0
        %2730 = vmatpush1.xpose.msra.mxu0 0.0
        %2731 = vmatprep.subr.mxu0 0.0
        %2732 = vmatpush1.xpose.msra.mxu0 0.0
        %2733 = vmatprep.subr.mxu0 0.0
        %2734 = vmatpush1.xpose.msra.mxu0 0.0
        %2735 = vmatprep.subr.mxu0 0.0
        %2736 = vmatpush1.xpose.msra.mxu0 0.0
        %2737 = vmatprep.subr.mxu0 0.0
        %2738 = vmatpush1.xpose.msra.mxu0 0.0
        %2739 = vmatprep.subr.mxu0 0.0
        %2740 = vmatpush1.xpose.msra.mxu0 0.0
        %2741 = vmatprep.subr.mxu0 0.0
        %2742 = vmatpush1.xpose.msra.mxu0 0.0
        %2743 = vmatprep.subr.mxu0 0.0
        %2744 = vmatpush1.xpose.msra.mxu0 0.0
        %2745 = vmatprep.subr.mxu0 0.0
        %2746 = vmatpush1.xpose.msra.mxu0 0.0
        %2747 = vmatprep.subr.mxu0 0.0
        %2748 = vmatpush1.xpose.msra.mxu0 0.0
        %2749 = vmatprep.mubr.f32.mxu0 0.0
        %2750 = vmatmul.mubr.f32.gmra.mrb[0].mxu0 %v2681
        %v2751 = vpop.f32.mrb[0].mxu0
        %v2752 = vadd.f32 0.0, %v2751
        %v2753 = vpop.f32.mrb[0].mxu0
        %2754 = vdwg.mxu0
        %v2755 = vsel %vm455, %v2674, -inf
        %2756 = vmax.xlane.f32.xlu0 %v2755
        %v2757 = vpop.xlane.xlu0 %2756
        %v2758 = vsel %vm455, %v2752, -inf
        %2759 = vmax.xlane.f32.xlu0 %v2758
        %v2760 = vpop.xlane.xlu0 %2759
        %v2761 = vsub.f32 %v2674, %v2757
        %v2762 = vsub.f32 %v2752, %v2760
        %v2763 = vmul.f32 %v2761, 1.442695
        %v2764 = vpow.pop %v2763
        %v2765 = vmul.f32 %v2762, 1.442695
        %v2766 = vpow.pop %v2765
        %v2767 = vsel %vm455, %v2764, 0.0
        %2768 = vadd.xlane.f32.xlu0 %v2767
        %v2769 = vpop.xlane.xlu0 %2768
        %v2770 = vsel %vm455, %v2766, 0.0
        %2771 = vadd.xlane.f32.xlu0 %v2770
        %v2772 = vpop.xlane.xlu0 %2771
        %v2773 = vrcp.pop %v2769
        %v2774 = vrcp.pop %v2772
        %v2775 = vmul.f32 %v2764, %v2773
        %v2776 = vmul.f32 %v2766, %v2774
        %2777 = vrot.lane.b32.xlu0 %v2263, 56
        %v2778 = vpop.permute.xlu0 %2777
        %v2781 = vsel %vm455, %v2775, 0
        %2783 = vmatprep.subr.mxu0 0.0
        %2784 = vmatpush1.msra.mxu0 %v2778
        %2785 = vmatprep.subr.mxu0 0.0
        %2786 = vmatpush1.msra.mxu0 0.0
        %2787 = vmatprep.subr.mxu0 0.0
        %2788 = vmatpush1.msra.mxu0 0.0
        %2789 = vmatprep.subr.mxu0 0.0
        %2790 = vmatpush1.msra.mxu0 0.0
        %2791 = vmatprep.subr.mxu0 0.0
        %2792 = vmatpush1.msra.mxu0 0.0
        %2793 = vmatprep.subr.mxu0 0.0
        %2794 = vmatpush1.msra.mxu0 0.0
        %2795 = vmatprep.subr.mxu0 0.0
        %2796 = vmatpush1.msra.mxu0 0.0
        %2797 = vmatprep.subr.mxu0 0.0
        %2798 = vmatpush1.msra.mxu0 0.0
        %2799 = vmatprep.subr.mxu0 0.0
        %2800 = vmatpush1.msra.mxu0 0.0
        %2801 = vmatprep.subr.mxu0 0.0
        %2802 = vmatpush1.msra.mxu0 0.0
        %2803 = vmatprep.subr.mxu0 0.0
        %2804 = vmatpush1.msra.mxu0 0.0
        %2805 = vmatprep.subr.mxu0 0.0
        %2806 = vmatpush1.msra.mxu0 0.0
        %2807 = vmatprep.subr.mxu0 0.0
        %2808 = vmatpush1.msra.mxu0 0.0
        %2809 = vmatprep.subr.mxu0 0.0
        %2810 = vmatpush1.msra.mxu0 0.0
        %2811 = vmatprep.subr.mxu0 0.0
        %2812 = vmatpush1.msra.mxu0 0.0
        %2813 = vmatprep.subr.mxu0 0.0
        %2814 = vmatpush1.msra.mxu0 0.0
        %2815 = vmatprep.subr.mxu0 0.0
        %2816 = vmatpush1.msra.mxu0 0.0
        %2817 = vmatprep.subr.mxu0 0.0
        %2818 = vmatpush1.msra.mxu0 0.0
        %2819 = vmatprep.subr.mxu0 0.0
        %2820 = vmatpush1.msra.mxu0 0.0
        %2821 = vmatprep.subr.mxu0 0.0
        %2822 = vmatpush1.msra.mxu0 0.0
        %2823 = vmatprep.subr.mxu0 0.0
        %2824 = vmatpush1.msra.mxu0 0.0
        %2825 = vmatprep.subr.mxu0 0.0
        %2826 = vmatpush1.msra.mxu0 0.0
        %2827 = vmatprep.subr.mxu0 0.0
        %2828 = vmatpush1.msra.mxu0 0.0
        %2829 = vmatprep.subr.mxu0 0.0
        %2830 = vmatpush1.msra.mxu0 0.0
        %2831 = vmatprep.subr.mxu0 0.0
        %2832 = vmatpush1.msra.mxu0 0.0
        %2833 = vmatprep.subr.mxu0 0.0
        %2834 = vmatpush1.msra.mxu0 0.0
        %2835 = vmatprep.subr.mxu0 0.0
        %2836 = vmatpush1.msra.mxu0 0.0
        %2837 = vmatprep.subr.mxu0 0.0
        %2838 = vmatpush1.msra.mxu0 0.0
        %2839 = vmatprep.subr.mxu0 0.0
        %2840 = vmatpush1.msra.mxu0 0.0
        %2841 = vmatprep.subr.mxu0 0.0
        %2842 = vmatpush1.msra.mxu0 0.0
        %2843 = vmatprep.subr.mxu0 0.0
        %2844 = vmatpush1.msra.mxu0 0.0
        %2845 = vmatprep.subr.mxu0 0.0
        %2846 = vmatpush1.msra.mxu0 0.0
        %2847 = vmatprep.mubr.f32.mxu0 0.0
        %2848 = vmatmul.mubr.f32.gmra.mrb[0].mxu0 %v2781
        %v2849 = vpop.f32.mrb[0].mxu0
        %v2850 = vadd.f32 0.0, %v2849
        %v2851 = vpop.f32.mrb[0].mxu0
        %2852 = vdwg.mxu0
        %2853 = vrot.lane.b32.xlu0 %v2268, 56
        %v2854 = vpop.permute.xlu0 %2853
        %v2857 = vsel %vm455, %v2776, 0
        %2859 = vmatprep.subr.mxu0 0.0
        %2860 = vmatpush1.msra.mxu0 %v2854
        %2861 = vmatprep.subr.mxu0 0.0
        %2862 = vmatpush1.msra.mxu0 0.0
        %2863 = vmatprep.subr.mxu0 0.0
        %2864 = vmatpush1.msra.mxu0 0.0
        %2865 = vmatprep.subr.mxu0 0.0
        %2866 = vmatpush1.msra.mxu0 0.0
        %2867 = vmatprep.subr.mxu0 0.0
        %2868 = vmatpush1.msra.mxu0 0.0
        %2869 = vmatprep.subr.mxu0 0.0
        %2870 = vmatpush1.msra.mxu0 0.0
        %2871 = vmatprep.subr.mxu0 0.0
        %2872 = vmatpush1.msra.mxu0 0.0
        %2873 = vmatprep.subr.mxu0 0.0
        %2874 = vmatpush1.msra.mxu0 0.0
        %2875 = vmatprep.subr.mxu0 0.0
        %2876 = vmatpush1.msra.mxu0 0.0
        %2877 = vmatprep.subr.mxu0 0.0
        %2878 = vmatpush1.msra.mxu0 0.0
        %2879 = vmatprep.subr.mxu0 0.0
        %2880 = vmatpush1.msra.mxu0 0.0
        %2881 = vmatprep.subr.mxu0 0.0
        %2882 = vmatpush1.msra.mxu0 0.0
        %2883 = vmatprep.subr.mxu0 0.0
        %2884 = vmatpush1.msra.mxu0 0.0
        %2885 = vmatprep.subr.mxu0 0.0
        %2886 = vmatpush1.msra.mxu0 0.0
        %2887 = vmatprep.subr.mxu0 0.0
        %2888 = vmatpush1.msra.mxu0 0.0
        %2889 = vmatprep.subr.mxu0 0.0
        %2890 = vmatpush1.msra.mxu0 0.0
        %2891 = vmatprep.subr.mxu0 0.0
        %2892 = vmatpush1.msra.mxu0 0.0
        %2893 = vmatprep.subr.mxu0 0.0
        %2894 = vmatpush1.msra.mxu0 0.0
        %2895 = vmatprep.subr.mxu0 0.0
        %2896 = vmatpush1.msra.mxu0 0.0
        %2897 = vmatprep.subr.mxu0 0.0
        %2898 = vmatpush1.msra.mxu0 0.0
        %2899 = vmatprep.subr.mxu0 0.0
        %2900 = vmatpush1.msra.mxu0 0.0
        %2901 = vmatprep.subr.mxu0 0.0
        %2902 = vmatpush1.msra.mxu0 0.0
        %2903 = vmatprep.subr.mxu0 0.0
        %2904 = vmatpush1.msra.mxu0 0.0
        %2905 = vmatprep.subr.mxu0 0.0
        %2906 = vmatpush1.msra.mxu0 0.0
        %2907 = vmatprep.subr.mxu0 0.0
        %2908 = vmatpush1.msra.mxu0 0.0
        %2909 = vmatprep.subr.mxu0 0.0
        %2910 = vmatpush1.msra.mxu0 0.0
        %2911 = vmatprep.subr.mxu0 0.0
        %2912 = vmatpush1.msra.mxu0 0.0
        %2913 = vmatprep.subr.mxu0 0.0
        %2914 = vmatpush1.msra.mxu0 0.0
        %2915 = vmatprep.subr.mxu0 0.0
        %2916 = vmatpush1.msra.mxu0 0.0
        %2917 = vmatprep.subr.mxu0 0.0
        %2918 = vmatpush1.msra.mxu0 0.0
        %2919 = vmatprep.subr.mxu0 0.0
        %2920 = vmatpush1.msra.mxu0 0.0
        %2921 = vmatprep.subr.mxu0 0.0
        %2922 = vmatpush1.msra.mxu0 0.0
        %2923 = vmatprep.mubr.f32.mxu0 0.0
        %2924 = vmatmul.mubr.f32.gmra.mrb[0].mxu0 %v2857
        %v2925 = vpop.f32.mrb[0].mxu0
        %v2926 = vadd.f32 0.0, %v2925
        %v2927 = vpop.f32.mrb[0].mxu0
        %2928 = vdwg.mxu0
        %2929 = vrot.lane.b32.xlu0 %v2263, 112
        %v2930 = vpop.permute.xlu0 %2929
        %2931 = vrot.lane.b32.xlu0 %v2263, 80
        %v2932 = vpop.permute.xlu0 %2931
        %v2933 = vsel %vm455, %v2930, 0
        %v2935 = vsel %vm455, %v2932, 0
        %2937 = vmatprep.subr.mxu0 0.0
        %2938 = vmatpush1.xpose.msra.mxu0 %v2935
        %2939 = vmatprep.subr.mxu0 0.0
        %2940 = vmatpush1.xpose.msra.mxu0 0.0
        %2941 = vmatprep.subr.mxu0 0.0
        %2942 = vmatpush1.xpose.msra.mxu0 0.0
        %2943 = vmatprep.subr.mxu0 0.0
        %2944 = vmatpush1.xpose.msra.mxu0 0.0
        %2945 = vmatprep.subr.mxu0 0.0
        %2946 = vmatpush1.xpose.msra.mxu0 0.0
        %2947 = vmatprep.subr.mxu0 0.0
        %2948 = vmatpush1.xpose.msra.mxu0 0.0
        %2949 = vmatprep.subr.mxu0 0.0
        %2950 = vmatpush1.xpose.msra.mxu0 0.0
        %2951 = vmatprep.subr.mxu0 0.0
        %2952 = vmatpush1.xpose.msra.mxu0 0.0
        %2953 = vmatprep.subr.mxu0 0.0
        %2954 = vmatpush1.xpose.msra.mxu0 0.0
        %2955 = vmatprep.subr.mxu0 0.0
        %2956 = vmatpush1.xpose.msra.mxu0 0.0
        %2957 = vmatprep.subr.mxu0 0.0
        %2958 = vmatpush1.xpose.msra.mxu0 0.0
        %2959 = vmatprep.subr.mxu0 0.0
        %2960 = vmatpush1.xpose.msra.mxu0 0.0
        %2961 = vmatprep.subr.mxu0 0.0
        %2962 = vmatpush1.xpose.msra.mxu0 0.0
        %2963 = vmatprep.subr.mxu0 0.0
        %2964 = vmatpush1.xpose.msra.mxu0 0.0
        %2965 = vmatprep.subr.mxu0 0.0
        %2966 = vmatpush1.xpose.msra.mxu0 0.0
        %2967 = vmatprep.subr.mxu0 0.0
        %2968 = vmatpush1.xpose.msra.mxu0 0.0
        %2969 = vmatprep.subr.mxu0 0.0
        %2970 = vmatpush1.xpose.msra.mxu0 0.0
        %2971 = vmatprep.subr.mxu0 0.0
        %2972 = vmatpush1.xpose.msra.mxu0 0.0
        %2973 = vmatprep.subr.mxu0 0.0
        %2974 = vmatpush1.xpose.msra.mxu0 0.0
        %2975 = vmatprep.subr.mxu0 0.0
        %2976 = vmatpush1.xpose.msra.mxu0 0.0
        %2977 = vmatprep.subr.mxu0 0.0
        %2978 = vmatpush1.xpose.msra.mxu0 0.0
        %2979 = vmatprep.subr.mxu0 0.0
        %2980 = vmatpush1.xpose.msra.mxu0 0.0
        %2981 = vmatprep.subr.mxu0 0.0
        %2982 = vmatpush1.xpose.msra.mxu0 0.0
        %2983 = vmatprep.subr.mxu0 0.0
        %2984 = vmatpush1.xpose.msra.mxu0 0.0
        %2985 = vmatprep.subr.mxu0 0.0
        %2986 = vmatpush1.xpose.msra.mxu0 0.0
        %2987 = vmatprep.subr.mxu0 0.0
        %2988 = vmatpush1.xpose.msra.mxu0 0.0
        %2989 = vmatprep.subr.mxu0 0.0
        %2990 = vmatpush1.xpose.msra.mxu0 0.0
        %2991 = vmatprep.subr.mxu0 0.0
        %2992 = vmatpush1.xpose.msra.mxu0 0.0
        %2993 = vmatprep.subr.mxu0 0.0
        %2994 = vmatpush1.xpose.msra.mxu0 0.0
        %2995 = vmatprep.subr.mxu0 0.0
        %2996 = vmatpush1.xpose.msra.mxu0 0.0
        %2997 = vmatprep.subr.mxu0 0.0
        %2998 = vmatpush1.xpose.msra.mxu0 0.0
        %2999 = vmatprep.subr.mxu0 0.0
        %3000 = vmatpush1.xpose.msra.mxu0 0.0
        %3001 = vmatprep.mubr.f32.mxu0 0.0
        %3002 = vmatmul.mubr.f32.gmra.mrb[0].mxu0 %v2933
        %v3003 = vpop.f32.mrb[0].mxu0
        %v3004 = vadd.f32 0.0, %v3003
        %v3005 = vpop.f32.mrb[0].mxu0
        %3006 = vdwg.mxu0
        %3007 = vrot.lane.b32.xlu0 %v2268, 112
        %v3008 = vpop.permute.xlu0 %3007
        %3009 = vrot.lane.b32.xlu0 %v2268, 80
        %v3010 = vpop.permute.xlu0 %3009
        %v3011 = vsel %vm455, %v3008, 0
        %v3013 = vsel %vm455, %v3010, 0
        %3015 = vmatprep.subr.mxu0 0.0
        %3016 = vmatpush1.xpose.msra.mxu0 %v3013
        %3017 = vmatprep.subr.mxu0 0.0
        %3018 = vmatpush1.xpose.msra.mxu0 0.0
        %3019 = vmatprep.subr.mxu0 0.0
        %3020 = vmatpush1.xpose.msra.mxu0 0.0
        %3021 = vmatprep.subr.mxu0 0.0
        %3022 = vmatpush1.xpose.msra.mxu0 0.0
        %3023 = vmatprep.subr.mxu0 0.0
        %3024 = vmatpush1.xpose.msra.mxu0 0.0
        %3025 = vmatprep.subr.mxu0 0.0
        %3026 = vmatpush1.xpose.msra.mxu0 0.0
        %3027 = vmatprep.subr.mxu0 0.0
        %3028 = vmatpush1.xpose.msra.mxu0 0.0
        %3029 = vmatprep.subr.mxu0 0.0
        %3030 = vmatpush1.xpose.msra.mxu0 0.0
        %3031 = vmatprep.subr.mxu0 0.0
        %3032 = vmatpush1.xpose.msra.mxu0 0.0
        %3033 = vmatprep.subr.mxu0 0.0
        %3034 = vmatpush1.xpose.msra.mxu0 0.0
        %3035 = vmatprep.subr.mxu0 0.0
        %3036 = vmatpush1.xpose.msra.mxu0 0.0
        %3037 = vmatprep.subr.mxu0 0.0
        %3038 = vmatpush1.xpose.msra.mxu0 0.0
        %3039 = vmatprep.subr.mxu0 0.0
        %3040 = vmatpush1.xpose.msra.mxu0 0.0
        %3041 = vmatprep.subr.mxu0 0.0
        %3042 = vmatpush1.xpose.msra.mxu0 0.0
        %3043 = vmatprep.subr.mxu0 0.0
        %3044 = vmatpush1.xpose.msra.mxu0 0.0
        %3045 = vmatprep.subr.mxu0 0.0
        %3046 = vmatpush1.xpose.msra.mxu0 0.0
        %3047 = vmatprep.subr.mxu0 0.0
        %3048 = vmatpush1.xpose.msra.mxu0 0.0
        %3049 = vmatprep.subr.mxu0 0.0
        %3050 = vmatpush1.xpose.msra.mxu0 0.0
        %3051 = vmatprep.subr.mxu0 0.0
        %3052 = vmatpush1.xpose.msra.mxu0 0.0
        %3053 = vmatprep.subr.mxu0 0.0
        %3054 = vmatpush1.xpose.msra.mxu0 0.0
        %3055 = vmatprep.subr.mxu0 0.0
        %3056 = vmatpush1.xpose.msra.mxu0 0.0
        %3057 = vmatprep.subr.mxu0 0.0
        %3058 = vmatpush1.xpose.msra.mxu0 0.0
        %3059 = vmatprep.subr.mxu0 0.0
        %3060 = vmatpush1.xpose.msra.mxu0 0.0
        %3061 = vmatprep.subr.mxu0 0.0
        %3062 = vmatpush1.xpose.msra.mxu0 0.0
        %3063 = vmatprep.subr.mxu0 0.0
        %3064 = vmatpush1.xpose.msra.mxu0 0.0
        %3065 = vmatprep.subr.mxu0 0.0
        %3066 = vmatpush1.xpose.msra.mxu0 0.0
        %3067 = vmatprep.subr.mxu0 0.0
        %3068 = vmatpush1.xpose.msra.mxu0 0.0
        %3069 = vmatprep.subr.mxu0 0.0
        %3070 = vmatpush1.xpose.msra.mxu0 0.0
        %3071 = vmatprep.subr.mxu0 0.0
        %3072 = vmatpush1.xpose.msra.mxu0 0.0
        %3073 = vmatprep.subr.mxu0 0.0
        %3074 = vmatpush1.xpose.msra.mxu0 0.0
        %3075 = vmatprep.subr.mxu0 0.0
        %3076 = vmatpush1.xpose.msra.mxu0 0.0
        %3077 = vmatprep.subr.mxu0 0.0
        %3078 = vmatpush1.xpose.msra.mxu0 0.0
        %3079 = vmatprep.mubr.f32.mxu0 0.0
        %3080 = vmatmul.mubr.f32.gmra.mrb[0].mxu0 %v3011
        %v3081 = vpop.f32.mrb[0].mxu0
        %v3082 = vadd.f32 0.0, %v3081
        %v3083 = vpop.f32.mrb[0].mxu0
        %3084 = vdwg.mxu0
        %v3085 = vsel %vm455, %v3004, -inf
        %3086 = vmax.xlane.f32.xlu0 %v3085
        %v3087 = vpop.xlane.xlu0 %3086
        %v3088 = vsel %vm455, %v3082, -inf
        %3089 = vmax.xlane.f32.xlu0 %v3088
        %v3090 = vpop.xlane.xlu0 %3089
        %v3091 = vsub.f32 %v3004, %v3087
        %v3092 = vsub.f32 %v3082, %v3090
        %v3093 = vmul.f32 %v3091, 1.442695
        %v3094 = vpow.pop %v3093
        %v3095 = vmul.f32 %v3092, 1.442695
        %v3096 = vpow.pop %v3095
        %v3097 = vsel %vm455, %v3094, 0.0
        %3098 = vadd.xlane.f32.xlu0 %v3097
        %v3099 = vpop.xlane.xlu0 %3098
        %v3100 = vsel %vm455, %v3096, 0.0
        %3101 = vadd.xlane.f32.xlu0 %v3100
        %v3102 = vpop.xlane.xlu0 %3101
        %v3103 = vrcp.pop %v3099
        %v3104 = vrcp.pop %v3102
        %v3105 = vmul.f32 %v3094, %v3103
        %v3106 = vmul.f32 %v3096, %v3104
        %3107 = vrot.lane.b32.xlu0 %v2263, 48
        %v3108 = vpop.permute.xlu0 %3107
        %v3111 = vsel %vm455, %v3105, 0
        %3113 = vmatprep.subr.mxu0 0.0
        %3114 = vmatpush1.msra.mxu0 %v3108
        %3115 = vmatprep.subr.mxu0 0.0
        %3116 = vmatpush1.msra.mxu0 0.0
        %3117 = vmatprep.subr.mxu0 0.0
        %3118 = vmatpush1.msra.mxu0 0.0
        %3119 = vmatprep.subr.mxu0 0.0
        %3120 = vmatpush1.msra.mxu0 0.0
        %3121 = vmatprep.subr.mxu0 0.0
        %3122 = vmatpush1.msra.mxu0 0.0
        %3123 = vmatprep.subr.mxu0 0.0
        %3124 = vmatpush1.msra.mxu0 0.0
        %3125 = vmatprep.subr.mxu0 0.0
        %3126 = vmatpush1.msra.mxu0 0.0
        %3127 = vmatprep.subr.mxu0 0.0
        %3128 = vmatpush1.msra.mxu0 0.0
        %3129 = vmatprep.subr.mxu0 0.0
        %3130 = vmatpush1.msra.mxu0 0.0
        %3131 = vmatprep.subr.mxu0 0.0
        %3132 = vmatpush1.msra.mxu0 0.0
        %3133 = vmatprep.subr.mxu0 0.0
        %3134 = vmatpush1.msra.mxu0 0.0
        %3135 = vmatprep.subr.mxu0 0.0
        %3136 = vmatpush1.msra.mxu0 0.0
        %3137 = vmatprep.subr.mxu0 0.0
        %3138 = vmatpush1.msra.mxu0 0.0
        %3139 = vmatprep.subr.mxu0 0.0
        %3140 = vmatpush1.msra.mxu0 0.0
        %3141 = vmatprep.subr.mxu0 0.0
        %3142 = vmatpush1.msra.mxu0 0.0
        %3143 = vmatprep.subr.mxu0 0.0
        %3144 = vmatpush1.msra.mxu0 0.0
        %3145 = vmatprep.subr.mxu0 0.0
        %3146 = vmatpush1.msra.mxu0 0.0
        %3147 = vmatprep.subr.mxu0 0.0
        %3148 = vmatpush1.msra.mxu0 0.0
        %3149 = vmatprep.subr.mxu0 0.0
        %3150 = vmatpush1.msra.mxu0 0.0
        %3151 = vmatprep.subr.mxu0 0.0
        %3152 = vmatpush1.msra.mxu0 0.0
        %3153 = vmatprep.subr.mxu0 0.0
        %3154 = vmatpush1.msra.mxu0 0.0
        %3155 = vmatprep.subr.mxu0 0.0
        %3156 = vmatpush1.msra.mxu0 0.0
        %3157 = vmatprep.subr.mxu0 0.0
        %3158 = vmatpush1.msra.mxu0 0.0
        %3159 = vmatprep.subr.mxu0 0.0
        %3160 = vmatpush1.msra.mxu0 0.0
        %3161 = vmatprep.subr.mxu0 0.0
        %3162 = vmatpush1.msra.mxu0 0.0
        %3163 = vmatprep.subr.mxu0 0.0
        %3164 = vmatpush1.msra.mxu0 0.0
        %3165 = vmatprep.subr.mxu0 0.0
        %3166 = vmatpush1.msra.mxu0 0.0
        %3167 = vmatprep.subr.mxu0 0.0
        %3168 = vmatpush1.msra.mxu0 0.0
        %3169 = vmatprep.subr.mxu0 0.0
        %3170 = vmatpush1.msra.mxu0 0.0
        %3171 = vmatprep.subr.mxu0 0.0
        %3172 = vmatpush1.msra.mxu0 0.0
        %3173 = vmatprep.subr.mxu0 0.0
        %3174 = vmatpush1.msra.mxu0 0.0
        %3175 = vmatprep.subr.mxu0 0.0
        %3176 = vmatpush1.msra.mxu0 0.0
        %3177 = vmatprep.mubr.f32.mxu0 0.0
        %3178 = vmatmul.mubr.f32.gmra.mrb[0].mxu0 %v3111
        %v3179 = vpop.f32.mrb[0].mxu0
        %v3180 = vadd.f32 0.0, %v3179
        %v3181 = vpop.f32.mrb[0].mxu0
        %3182 = vdwg.mxu0
        %3183 = vrot.lane.b32.xlu0 %v2268, 48
        %v3184 = vpop.permute.xlu0 %3183
        %v3187 = vsel %vm455, %v3106, 0
        %3189 = vmatprep.subr.mxu0 0.0
        %3190 = vmatpush1.msra.mxu0 %v3184
        %3191 = vmatprep.subr.mxu0 0.0
        %3192 = vmatpush1.msra.mxu0 0.0
        %3193 = vmatprep.subr.mxu0 0.0
        %3194 = vmatpush1.msra.mxu0 0.0
        %3195 = vmatprep.subr.mxu0 0.0
        %3196 = vmatpush1.msra.mxu0 0.0
        %3197 = vmatprep.subr.mxu0 0.0
        %3198 = vmatpush1.msra.mxu0 0.0
        %3199 = vmatprep.subr.mxu0 0.0
        %3200 = vmatpush1.msra.mxu0 0.0
        %3201 = vmatprep.subr.mxu0 0.0
        %3202 = vmatpush1.msra.mxu0 0.0
        %3203 = vmatprep.subr.mxu0 0.0
        %3204 = vmatpush1.msra.mxu0 0.0
        %3205 = vmatprep.subr.mxu0 0.0
        %3206 = vmatpush1.msra.mxu0 0.0
        %3207 = vmatprep.subr.mxu0 0.0
        %3208 = vmatpush1.msra.mxu0 0.0
        %3209 = vmatprep.subr.mxu0 0.0
        %3210 = vmatpush1.msra.mxu0 0.0
        %3211 = vmatprep.subr.mxu0 0.0
        %3212 = vmatpush1.msra.mxu0 0.0
        %3213 = vmatprep.subr.mxu0 0.0
        %3214 = vmatpush1.msra.mxu0 0.0
        %3215 = vmatprep.subr.mxu0 0.0
        %3216 = vmatpush1.msra.mxu0 0.0
        %3217 = vmatprep.subr.mxu0 0.0
        %3218 = vmatpush1.msra.mxu0 0.0
        %3219 = vmatprep.subr.mxu0 0.0
        %3220 = vmatpush1.msra.mxu0 0.0
        %3221 = vmatprep.subr.mxu0 0.0
        %3222 = vmatpush1.msra.mxu0 0.0
        %3223 = vmatprep.subr.mxu0 0.0
        %3224 = vmatpush1.msra.mxu0 0.0
        %3225 = vmatprep.subr.mxu0 0.0
        %3226 = vmatpush1.msra.mxu0 0.0
        %3227 = vmatprep.subr.mxu0 0.0
        %3228 = vmatpush1.msra.mxu0 0.0
        %3229 = vmatprep.subr.mxu0 0.0
        %3230 = vmatpush1.msra.mxu0 0.0
        %3231 = vmatprep.subr.mxu0 0.0
        %3232 = vmatpush1.msra.mxu0 0.0
        %3233 = vmatprep.subr.mxu0 0.0
        %3234 = vmatpush1.msra.mxu0 0.0
        %3235 = vmatprep.subr.mxu0 0.0
        %3236 = vmatpush1.msra.mxu0 0.0
        %3237 = vmatprep.subr.mxu0 0.0
        %3238 = vmatpush1.msra.mxu0 0.0
        %3239 = vmatprep.subr.mxu0 0.0
        %3240 = vmatpush1.msra.mxu0 0.0
        %3241 = vmatprep.subr.mxu0 0.0
        %3242 = vmatpush1.msra.mxu0 0.0
        %3243 = vmatprep.subr.mxu0 0.0
        %3244 = vmatpush1.msra.mxu0 0.0
        %3245 = vmatprep.subr.mxu0 0.0
        %3246 = vmatpush1.msra.mxu0 0.0
        %3247 = vmatprep.subr.mxu0 0.0
        %3248 = vmatpush1.msra.mxu0 0.0
        %3249 = vmatprep.subr.mxu0 0.0
        %3250 = vmatpush1.msra.mxu0 0.0
        %3251 = vmatprep.subr.mxu0 0.0
        %3252 = vmatpush1.msra.mxu0 0.0
        %3253 = vmatprep.mubr.f32.mxu0 0.0
        %3254 = vmatmul.mubr.f32.gmra.mrb[0].mxu0 %v3187
        %v3255 = vpop.f32.mrb[0].mxu0
        %v3256 = vadd.f32 0.0, %v3255
        %v3257 = vpop.f32.mrb[0].mxu0
        %3258 = vdwg.mxu0
        %3259 = vrot.lane.b32.xlu0 %v2263, 104
        %v3260 = vpop.permute.xlu0 %3259
        %3261 = vrot.lane.b32.xlu0 %v2263, 72
        %v3262 = vpop.permute.xlu0 %3261
        %v3263 = vsel %vm455, %v3260, 0
        %v3265 = vsel %vm455, %v3262, 0
        %3267 = vmatprep.subr.mxu0 0.0
        %3268 = vmatpush1.xpose.msra.mxu0 %v3265
        %3269 = vmatprep.subr.mxu0 0.0
        %3270 = vmatpush1.xpose.msra.mxu0 0.0
        %3271 = vmatprep.subr.mxu0 0.0
        %3272 = vmatpush1.xpose.msra.mxu0 0.0
        %3273 = vmatprep.subr.mxu0 0.0
        %3274 = vmatpush1.xpose.msra.mxu0 0.0
        %3275 = vmatprep.subr.mxu0 0.0
        %3276 = vmatpush1.xpose.msra.mxu0 0.0
        %3277 = vmatprep.subr.mxu0 0.0
        %3278 = vmatpush1.xpose.msra.mxu0 0.0
        %3279 = vmatprep.subr.mxu0 0.0
        %3280 = vmatpush1.xpose.msra.mxu0 0.0
        %3281 = vmatprep.subr.mxu0 0.0
        %3282 = vmatpush1.xpose.msra.mxu0 0.0
        %3283 = vmatprep.subr.mxu0 0.0
        %3284 = vmatpush1.xpose.msra.mxu0 0.0
        %3285 = vmatprep.subr.mxu0 0.0
        %3286 = vmatpush1.xpose.msra.mxu0 0.0
        %3287 = vmatprep.subr.mxu0 0.0
        %3288 = vmatpush1.xpose.msra.mxu0 0.0
        %3289 = vmatprep.subr.mxu0 0.0
        %3290 = vmatpush1.xpose.msra.mxu0 0.0
        %3291 = vmatprep.subr.mxu0 0.0
        %3292 = vmatpush1.xpose.msra.mxu0 0.0
        %3293 = vmatprep.subr.mxu0 0.0
        %3294 = vmatpush1.xpose.msra.mxu0 0.0
        %3295 = vmatprep.subr.mxu0 0.0
        %3296 = vmatpush1.xpose.msra.mxu0 0.0
        %3297 = vmatprep.subr.mxu0 0.0
        %3298 = vmatpush1.xpose.msra.mxu0 0.0
        %3299 = vmatprep.subr.mxu0 0.0
        %3300 = vmatpush1.xpose.msra.mxu0 0.0
        %3301 = vmatprep.subr.mxu0 0.0
        %3302 = vmatpush1.xpose.msra.mxu0 0.0
        %3303 = vmatprep.subr.mxu0 0.0
        %3304 = vmatpush1.xpose.msra.mxu0 0.0
        %3305 = vmatprep.subr.mxu0 0.0
        %3306 = vmatpush1.xpose.msra.mxu0 0.0
        %3307 = vmatprep.subr.mxu0 0.0
        %3308 = vmatpush1.xpose.msra.mxu0 0.0
        %3309 = vmatprep.subr.mxu0 0.0
        %3310 = vmatpush1.xpose.msra.mxu0 0.0
        %3311 = vmatprep.subr.mxu0 0.0
        %3312 = vmatpush1.xpose.msra.mxu0 0.0
        %3313 = vmatprep.subr.mxu0 0.0
        %3314 = vmatpush1.xpose.msra.mxu0 0.0
        %3315 = vmatprep.subr.mxu0 0.0
        %3316 = vmatpush1.xpose.msra.mxu0 0.0
        %3317 = vmatprep.subr.mxu0 0.0
        %3318 = vmatpush1.xpose.msra.mxu0 0.0
        %3319 = vmatprep.subr.mxu0 0.0
        %3320 = vmatpush1.xpose.msra.mxu0 0.0
        %3321 = vmatprep.subr.mxu0 0.0
        %3322 = vmatpush1.xpose.msra.mxu0 0.0
        %3323 = vmatprep.subr.mxu0 0.0
        %3324 = vmatpush1.xpose.msra.mxu0 0.0
        %3325 = vmatprep.subr.mxu0 0.0
        %3326 = vmatpush1.xpose.msra.mxu0 0.0
        %3327 = vmatprep.subr.mxu0 0.0
        %3328 = vmatpush1.xpose.msra.mxu0 0.0
        %3329 = vmatprep.subr.mxu0 0.0
        %3330 = vmatpush1.xpose.msra.mxu0 0.0
        %3331 = vmatprep.mubr.f32.mxu0 0.0
        %3332 = vmatmul.mubr.f32.gmra.mrb[0].mxu0 %v3263
        %v3333 = vpop.f32.mrb[0].mxu0
        %v3334 = vadd.f32 0.0, %v3333
        %v3335 = vpop.f32.mrb[0].mxu0
        %3336 = vdwg.mxu0
        %3337 = vrot.lane.b32.xlu0 %v2268, 104
        %v3338 = vpop.permute.xlu0 %3337
        %3339 = vrot.lane.b32.xlu0 %v2268, 72
        %v3340 = vpop.permute.xlu0 %3339
        %v3341 = vsel %vm455, %v3338, 0
        %v3343 = vsel %vm455, %v3340, 0
        %3345 = vmatprep.subr.mxu0 0.0
        %3346 = vmatpush1.xpose.msra.mxu0 %v3343
        %3347 = vmatprep.subr.mxu0 0.0
        %3348 = vmatpush1.xpose.msra.mxu0 0.0
        %3349 = vmatprep.subr.mxu0 0.0
        %3350 = vmatpush1.xpose.msra.mxu0 0.0
        %3351 = vmatprep.subr.mxu0 0.0
        %3352 = vmatpush1.xpose.msra.mxu0 0.0
        %3353 = vmatprep.subr.mxu0 0.0
        %3354 = vmatpush1.xpose.msra.mxu0 0.0
        %3355 = vmatprep.subr.mxu0 0.0
        %3356 = vmatpush1.xpose.msra.mxu0 0.0
        %3357 = vmatprep.subr.mxu0 0.0
        %3358 = vmatpush1.xpose.msra.mxu0 0.0
        %3359 = vmatprep.subr.mxu0 0.0
        %3360 = vmatpush1.xpose.msra.mxu0 0.0
        %3361 = vmatprep.subr.mxu0 0.0
        %3362 = vmatpush1.xpose.msra.mxu0 0.0
        %3363 = vmatprep.subr.mxu0 0.0
        %3364 = vmatpush1.xpose.msra.mxu0 0.0
        %3365 = vmatprep.subr.mxu0 0.0
        %3366 = vmatpush1.xpose.msra.mxu0 0.0
        %3367 = vmatprep.subr.mxu0 0.0
        %3368 = vmatpush1.xpose.msra.mxu0 0.0
        %3369 = vmatprep.subr.mxu0 0.0
        %3370 = vmatpush1.xpose.msra.mxu0 0.0
        %3371 = vmatprep.subr.mxu0 0.0
        %3372 = vmatpush1.xpose.msra.mxu0 0.0
        %3373 = vmatprep.subr.mxu0 0.0
        %3374 = vmatpush1.xpose.msra.mxu0 0.0
        %3375 = vmatprep.subr.mxu0 0.0
        %3376 = vmatpush1.xpose.msra.mxu0 0.0
        %3377 = vmatprep.subr.mxu0 0.0
        %3378 = vmatpush1.xpose.msra.mxu0 0.0
        %3379 = vmatprep.subr.mxu0 0.0
        %3380 = vmatpush1.xpose.msra.mxu0 0.0
        %3381 = vmatprep.subr.mxu0 0.0
        %3382 = vmatpush1.xpose.msra.mxu0 0.0
        %3383 = vmatprep.subr.mxu0 0.0
        %3384 = vmatpush1.xpose.msra.mxu0 0.0
        %3385 = vmatprep.subr.mxu0 0.0
        %3386 = vmatpush1.xpose.msra.mxu0 0.0
        %3387 = vmatprep.subr.mxu0 0.0
        %3388 = vmatpush1.xpose.msra.mxu0 0.0
        %3389 = vmatprep.subr.mxu0 0.0
        %3390 = vmatpush1.xpose.msra.mxu0 0.0
        %3391 = vmatprep.subr.mxu0 0.0
        %3392 = vmatpush1.xpose.msra.mxu0 0.0
        %3393 = vmatprep.subr.mxu0 0.0
        %3394 = vmatpush1.xpose.msra.mxu0 0.0
        %3395 = vmatprep.subr.mxu0 0.0
        %3396 = vmatpush1.xpose.msra.mxu0 0.0
        %3397 = vmatprep.subr.mxu0 0.0
        %3398 = vmatpush1.xpose.msra.mxu0 0.0
        %3399 = vmatprep.subr.mxu0 0.0
        %3400 = vmatpush1.xpose.msra.mxu0 0.0
        %3401 = vmatprep.subr.mxu0 0.0
        %3402 = vmatpush1.xpose.msra.mxu0 0.0
        %3403 = vmatprep.subr.mxu0 0.0
        %3404 = vmatpush1.xpose.msra.mxu0 0.0
        %3405 = vmatprep.subr.mxu0 0.0
        %3406 = vmatpush1.xpose.msra.mxu0 0.0
        %3407 = vmatprep.subr.mxu0 0.0
        %3408 = vmatpush1.xpose.msra.mxu0 0.0
        %3409 = vmatprep.mubr.f32.mxu0 0.0
        %3410 = vmatmul.mubr.f32.gmra.mrb[0].mxu0 %v3341
        %v3411 = vpop.f32.mrb[0].mxu0
        %v3412 = vadd.f32 0.0, %v3411
        %v3413 = vpop.f32.mrb[0].mxu0
        %3414 = vdwg.mxu0
        %v3415 = vsel %vm455, %v3334, -inf
        %3416 = vmax.xlane.f32.xlu0 %v3415
        %v3417 = vpop.xlane.xlu0 %3416
        %v3418 = vsel %vm455, %v3412, -inf
        %3419 = vmax.xlane.f32.xlu0 %v3418
        %v3420 = vpop.xlane.xlu0 %3419
        %v3421 = vsub.f32 %v3334, %v3417
        %v3422 = vsub.f32 %v3412, %v3420
        %v3423 = vmul.f32 %v3421, 1.442695
        %v3424 = vpow.pop %v3423
        %v3425 = vmul.f32 %v3422, 1.442695
        %v3426 = vpow.pop %v3425
        %v3427 = vsel %vm455, %v3424, 0.0
        %3428 = vadd.xlane.f32.xlu0 %v3427
        %v3429 = vpop.xlane.xlu0 %3428
        %v3430 = vsel %vm455, %v3426, 0.0
        %3431 = vadd.xlane.f32.xlu0 %v3430
        %v3432 = vpop.xlane.xlu0 %3431
        %v3433 = vrcp.pop %v3429
        %v3434 = vrcp.pop %v3432
        %v3435 = vmul.f32 %v3424, %v3433
        %v3436 = vmul.f32 %v3426, %v3434
        %3437 = vrot.lane.b32.xlu0 %v2263, 40
        %v3438 = vpop.permute.xlu0 %3437
        %v3441 = vsel %vm455, %v3435, 0
        %3443 = vmatprep.subr.mxu0 0.0
        %3444 = vmatpush1.msra.mxu0 %v3438
        %3445 = vmatprep.subr.mxu0 0.0
        %3446 = vmatpush1.msra.mxu0 0.0
        %3447 = vmatprep.subr.mxu0 0.0
        %3448 = vmatpush1.msra.mxu0 0.0
        %3449 = vmatprep.subr.mxu0 0.0
        %3450 = vmatpush1.msra.mxu0 0.0
        %3451 = vmatprep.subr.mxu0 0.0
        %3452 = vmatpush1.msra.mxu0 0.0
        %3453 = vmatprep.subr.mxu0 0.0
        %3454 = vmatpush1.msra.mxu0 0.0
        %3455 = vmatprep.subr.mxu0 0.0
        %3456 = vmatpush1.msra.mxu0 0.0
        %3457 = vmatprep.subr.mxu0 0.0
        %3458 = vmatpush1.msra.mxu0 0.0
        %3459 = vmatprep.subr.mxu0 0.0
        %3460 = vmatpush1.msra.mxu0 0.0
        %3461 = vmatprep.subr.mxu0 0.0
        %3462 = vmatpush1.msra.mxu0 0.0
        %3463 = vmatprep.subr.mxu0 0.0
        %3464 = vmatpush1.msra.mxu0 0.0
        %3465 = vmatprep.subr.mxu0 0.0
        %3466 = vmatpush1.msra.mxu0 0.0
        %3467 = vmatprep.subr.mxu0 0.0
        %3468 = vmatpush1.msra.mxu0 0.0
        %3469 = vmatprep.subr.mxu0 0.0
        %3470 = vmatpush1.msra.mxu0 0.0
        %3471 = vmatprep.subr.mxu0 0.0
        %3472 = vmatpush1.msra.mxu0 0.0
        %3473 = vmatprep.subr.mxu0 0.0
        %3474 = vmatpush1.msra.mxu0 0.0
        %3475 = vmatprep.subr.mxu0 0.0
        %3476 = vmatpush1.msra.mxu0 0.0
        %3477 = vmatprep.subr.mxu0 0.0
        %3478 = vmatpush1.msra.mxu0 0.0
        %3479 = vmatprep.subr.mxu0 0.0
        %3480 = vmatpush1.msra.mxu0 0.0
        %3481 = vmatprep.subr.mxu0 0.0
        %3482 = vmatpush1.msra.mxu0 0.0
        %3483 = vmatprep.subr.mxu0 0.0
        %3484 = vmatpush1.msra.mxu0 0.0
        %3485 = vmatprep.subr.mxu0 0.0
        %3486 = vmatpush1.msra.mxu0 0.0
        %3487 = vmatprep.subr.mxu0 0.0
        %3488 = vmatpush1.msra.mxu0 0.0
        %3489 = vmatprep.subr.mxu0 0.0
        %3490 = vmatpush1.msra.mxu0 0.0
        %3491 = vmatprep.subr.mxu0 0.0
        %3492 = vmatpush1.msra.mxu0 0.0
        %3493 = vmatprep.subr.mxu0 0.0
        %3494 = vmatpush1.msra.mxu0 0.0
        %3495 = vmatprep.subr.mxu0 0.0
        %3496 = vmatpush1.msra.mxu0 0.0
        %3497 = vmatprep.subr.mxu0 0.0
        %3498 = vmatpush1.msra.mxu0 0.0
        %3499 = vmatprep.subr.mxu0 0.0
        %3500 = vmatpush1.msra.mxu0 0.0
        %3501 = vmatprep.subr.mxu0 0.0
        %3502 = vmatpush1.msra.mxu0 0.0
        %3503 = vmatprep.subr.mxu0 0.0
        %3504 = vmatpush1.msra.mxu0 0.0
        %3505 = vmatprep.subr.mxu0 0.0
        %3506 = vmatpush1.msra.mxu0 0.0
        %3507 = vmatprep.mubr.f32.mxu0 0.0
        %3508 = vmatmul.mubr.f32.gmra.mrb[0].mxu0 %v3441
        %v3509 = vpop.f32.mrb[0].mxu0
        %v3510 = vadd.f32 0.0, %v3509
        %v3511 = vpop.f32.mrb[0].mxu0
        %3512 = vdwg.mxu0
        %3513 = vrot.lane.b32.xlu0 %v2268, 40
        %v3514 = vpop.permute.xlu0 %3513
        %v3517 = vsel %vm455, %v3436, 0
        %3519 = vmatprep.subr.mxu0 0.0
        %3520 = vmatpush1.msra.mxu0 %v3514
        %3521 = vmatprep.subr.mxu0 0.0
        %3522 = vmatpush1.msra.mxu0 0.0
        %3523 = vmatprep.subr.mxu0 0.0
        %3524 = vmatpush1.msra.mxu0 0.0
        %3525 = vmatprep.subr.mxu0 0.0
        %3526 = vmatpush1.msra.mxu0 0.0
        %3527 = vmatprep.subr.mxu0 0.0
        %3528 = vmatpush1.msra.mxu0 0.0
        %3529 = vmatprep.subr.mxu0 0.0
        %3530 = vmatpush1.msra.mxu0 0.0
        %3531 = vmatprep.subr.mxu0 0.0
        %3532 = vmatpush1.msra.mxu0 0.0
        %3533 = vmatprep.subr.mxu0 0.0
        %3534 = vmatpush1.msra.mxu0 0.0
        %3535 = vmatprep.subr.mxu0 0.0
        %3536 = vmatpush1.msra.mxu0 0.0
        %3537 = vmatprep.subr.mxu0 0.0
        %3538 = vmatpush1.msra.mxu0 0.0
        %3539 = vmatprep.subr.mxu0 0.0
        %3540 = vmatpush1.msra.mxu0 0.0
        %3541 = vmatprep.subr.mxu0 0.0
        %3542 = vmatpush1.msra.mxu0 0.0
        %3543 = vmatprep.subr.mxu0 0.0
        %3544 = vmatpush1.msra.mxu0 0.0
        %3545 = vmatprep.subr.mxu0 0.0
        %3546 = vmatpush1.msra.mxu0 0.0
        %3547 = vmatprep.subr.mxu0 0.0
        %3548 = vmatpush1.msra.mxu0 0.0
        %3549 = vmatprep.subr.mxu0 0.0
        %3550 = vmatpush1.msra.mxu0 0.0
        %3551 = vmatprep.subr.mxu0 0.0
        %3552 = vmatpush1.msra.mxu0 0.0
        %3553 = vmatprep.subr.mxu0 0.0
        %3554 = vmatpush1.msra.mxu0 0.0
        %3555 = vmatprep.subr.mxu0 0.0
        %3556 = vmatpush1.msra.mxu0 0.0
        %3557 = vmatprep.subr.mxu0 0.0
        %3558 = vmatpush1.msra.mxu0 0.0
        %3559 = vmatprep.subr.mxu0 0.0
        %3560 = vmatpush1.msra.mxu0 0.0
        %3561 = vmatprep.subr.mxu0 0.0
        %3562 = vmatpush1.msra.mxu0 0.0
        %3563 = vmatprep.subr.mxu0 0.0
        %3564 = vmatpush1.msra.mxu0 0.0
        %3565 = vmatprep.subr.mxu0 0.0
        %3566 = vmatpush1.msra.mxu0 0.0
        %3567 = vmatprep.subr.mxu0 0.0
        %3568 = vmatpush1.msra.mxu0 0.0
        %3569 = vmatprep.subr.mxu0 0.0
        %3570 = vmatpush1.msra.mxu0 0.0
        %3571 = vmatprep.subr.mxu0 0.0
        %3572 = vmatpush1.msra.mxu0 0.0
        %3573 = vmatprep.subr.mxu0 0.0
        %3574 = vmatpush1.msra.mxu0 0.0
        %3575 = vmatprep.subr.mxu0 0.0
        %3576 = vmatpush1.msra.mxu0 0.0
        %3577 = vmatprep.subr.mxu0 0.0
        %3578 = vmatpush1.msra.mxu0 0.0
        %3579 = vmatprep.subr.mxu0 0.0
        %3580 = vmatpush1.msra.mxu0 0.0
        %3581 = vmatprep.subr.mxu0 0.0
        %3582 = vmatpush1.msra.mxu0 0.0
        %3583 = vmatprep.mubr.f32.mxu0 0.0
        %3584 = vmatmul.mubr.f32.gmra.mrb[0].mxu0 %v3517
        %v3585 = vpop.f32.mrb[0].mxu0
        %v3586 = vadd.f32 0.0, %v3585
        %v3587 = vpop.f32.mrb[0].mxu0
        %3588 = vdwg.mxu0
        %3591 = vrot.lane.b32.xlu0 %v2850, 8
        %v3592 = vpop.permute.xlu0 %3591
        %3593 = vrot.lane.b32.xlu0 %v2926, 8
        %v3594 = vpop.permute.xlu0 %3593
        %3599 = vrot.lane.b32.xlu0 %v3180, 16
        %v3600 = vpop.permute.xlu0 %3599
        %3601 = vrot.lane.b32.xlu0 %v3256, 16
        %v3602 = vpop.permute.xlu0 %3601
        %3607 = vrot.lane.b32.xlu0 %v3510, 24
        %v3608 = vpop.permute.xlu0 %3607
        %3609 = vrot.lane.b32.xlu0 %v3586, 24
        %v3610 = vpop.permute.xlu0 %3609
        %v3613 = vsel %vm455, %v2520, %v3592
        %v3614 = vsel %vm455, %v2596, %v3594
        %v3615 = vsel %vm1797, %v3613, %v3600
        %v3616 = vsel %vm1797, %v3614, %v3602
        %v3617 = vsel %vm1800, %v3615, %v3608
        %v3618 = vsel %vm1800, %v3616, %v3610
        %3623 = vrot.lane.b32.xlu0 %v2144, 32
        %v3624 = vpop.permute.xlu0 %3623
        %3625 = vrot.lane.b32.xlu0 %v2145, 32
        %v3626 = vpop.permute.xlu0 %3625
        %3627 = vrot.lane.b32.xlu0 %v2146, 32
        %v3628 = vpop.permute.xlu0 %3627
        %3629 = vrot.lane.b32.xlu0 %v2147, 32
        %v3630 = vpop.permute.xlu0 %3629
        %v3636 = vsel %vm285, %v3617, 0
        %v3639 = vsel %vm285, %v3618, 0
        %3641 = vmatprep.subr.mxu0 0.0
        %3642 = vmatpush1.msra.mxu0 %v3624
        %3643 = vmatprep.subr.mxu0 0.0
        %3644 = vmatpush1.msra.mxu0 %v3626
        %3645 = vmatprep.subr.mxu0 0.0
        %3646 = vmatpush1.msra.mxu0 %v3628
        %3647 = vmatprep.subr.mxu0 0.0
        %3648 = vmatpush1.msra.mxu0 %v3630
        %3649 = vmatprep.subr.mxu0 0.0
        %3650 = vmatpush1.msra.mxu0 0.0
        %3651 = vmatprep.subr.mxu0 0.0
        %3652 = vmatpush1.msra.mxu0 0.0
        %3653 = vmatprep.subr.mxu0 0.0
        %3654 = vmatpush1.msra.mxu0 0.0
        %3655 = vmatprep.subr.mxu0 0.0
        %3656 = vmatpush1.msra.mxu0 0.0
        %3657 = vmatprep.subr.mxu0 0.0
        %3658 = vmatpush1.msra.mxu0 0.0
        %3659 = vmatprep.subr.mxu0 0.0
        %3660 = vmatpush1.msra.mxu0 0.0
        %3661 = vmatprep.subr.mxu0 0.0
        %3662 = vmatpush1.msra.mxu0 0.0
        %3663 = vmatprep.subr.mxu0 0.0
        %3664 = vmatpush1.msra.mxu0 0.0
        %3665 = vmatprep.subr.mxu0 0.0
        %3666 = vmatpush1.msra.mxu0 0.0
        %3667 = vmatprep.subr.mxu0 0.0
        %3668 = vmatpush1.msra.mxu0 0.0
        %3669 = vmatprep.subr.mxu0 0.0
        %3670 = vmatpush1.msra.mxu0 0.0
        %3671 = vmatprep.subr.mxu0 0.0
        %3672 = vmatpush1.msra.mxu0 0.0
        %3673 = vmatprep.subr.mxu0 0.0
        %3674 = vmatpush1.msra.mxu0 0.0
        %3675 = vmatprep.subr.mxu0 0.0
        %3676 = vmatpush1.msra.mxu0 0.0
        %3677 = vmatprep.subr.mxu0 0.0
        %3678 = vmatpush1.msra.mxu0 0.0
        %3679 = vmatprep.subr.mxu0 0.0
        %3680 = vmatpush1.msra.mxu0 0.0
        %3681 = vmatprep.subr.mxu0 0.0
        %3682 = vmatpush1.msra.mxu0 0.0
        %3683 = vmatprep.subr.mxu0 0.0
        %3684 = vmatpush1.msra.mxu0 0.0
        %3685 = vmatprep.subr.mxu0 0.0
        %3686 = vmatpush1.msra.mxu0 0.0
        %3687 = vmatprep.subr.mxu0 0.0
        %3688 = vmatpush1.msra.mxu0 0.0
        %3689 = vmatprep.subr.mxu0 0.0
        %3690 = vmatpush1.msra.mxu0 0.0
        %3691 = vmatprep.subr.mxu0 0.0
        %3692 = vmatpush1.msra.mxu0 0.0
        %3693 = vmatprep.subr.mxu0 0.0
        %3694 = vmatpush1.msra.mxu0 0.0
        %3695 = vmatprep.subr.mxu0 0.0
        %3696 = vmatpush1.msra.mxu0 0.0
        %3697 = vmatprep.subr.mxu0 0.0
        %3698 = vmatpush1.msra.mxu0 0.0
        %3699 = vmatprep.subr.mxu0 0.0
        %3700 = vmatpush1.msra.mxu0 0.0
        %3701 = vmatprep.subr.mxu0 0.0
        %3702 = vmatpush1.msra.mxu0 0.0
        %3703 = vmatprep.subr.mxu0 0.0
        %3704 = vmatpush1.msra.mxu0 0.0
        %3705 = vmatprep.mubr.f32.mxu0 0.0
        %3706 = vmatmul.mubr.f32.gmra.mrb[0].mxu0 %v3636
        %v3707 = vpop.f32.mrb[0].mxu0
        %v3708 = vadd.f32 0.0, %v3707
        %v3709 = vpop.f32.mrb[0].mxu0
        %3710 = vmatprep.mubr.f32.mxu0 0.0
        %3711 = vmatmul.mubr.f32.gmra.mrb[0].mxu0 %v3639
        %v3712 = vpop.f32.mrb[0].mxu0
        %v3713 = vadd.f32 0.0, %v3712
        %v3714 = vpop.f32.mrb[0].mxu0
        %3715 = vdwg.mxu0
        %v3716 = vadd.f32 %v2141, %v3708
        %v3717 = vadd.f32 %v2142, %v3713
        %v3718 = vlaneseq
        %v3719 = vshrl.u32 %v3718, 7
        %v3720 = vsub.s32 3, %v3719
        %v3721 = vrot.slane %v282, %v3720
        %v3722 = vadd.f32 %v3716, %v3721
        %v3723 = vadd.f32 %v3717, %v3721
        %v3724 = vsel %vm285, %v3722, 0.0
        %3725 = vadd.xlane.f32.xlu0 %v3724
        %v3726 = vpop.xlane.xlu0 %3725
        %v3727 = vsel %vm285, %v3723, 0.0
        %3728 = vadd.xlane.f32.xlu0 %v3727
        %v3729 = vpop.xlane.xlu0 %3728
        %v3730 = vmul.f32 %v3726, %v292
        %v3731 = vmul.f32 %v3729, %v292
        %v3732 = vsub.f32 %v3722, %v3730
        %v3733 = vsub.f32 %v3723, %v3731
        %v3734 = vmul.f32 %v3732, %v3732
        %v3735 = vmul.f32 %v3733, %v3733
        %v3736 = vsel %vm285, %v3734, 0.0
        %3737 = vadd.xlane.f32.xlu0 %v3736
        %v3738 = vpop.xlane.xlu0 %3737
        %v3739 = vsel %vm285, %v3735, 0.0
        %3740 = vadd.xlane.f32.xlu0 %v3739
        %v3741 = vpop.xlane.xlu0 %3740
        %v3742 = vmul.f32 %v3738, %v292
        %v3743 = vmul.f32 %v3741, %v292
        %v3744 = vadd.f32 %v3742, 1e-12
        %v3745 = vadd.f32 %v3743, 1e-12
        %v3746 = vrsqrt.pop %v3744
        %v3747 = vrsqrt.pop %v3745
        %v3748 = vmul.f32 %v3732, %v3746
        %v3749 = vmul.f32 %v3733, %v3747
        %v3750 = vlaneseq
        %v3751 = vshrl.u32 %v3750, 7
        %v3752 = vsub.s32 4, %v3751
        %v3753 = vrot.slane %v282, %v3752
        %v3754 = vmul.f32 %v3748, %v3753
        %v3755 = vmul.f32 %v3749, %v3753
        %v3756 = vlaneseq
        %v3757 = vshrl.u32 %v3756, 7
        %v3758 = vsub.s32 5, %v3757
        %v3759 = vrot.slane %v282, %v3758
        %v3760 = vadd.f32 %v3754, %v3759
        %v3761 = vadd.f32 %v3755, %v3759
        %s3762 = scalar_lea.vmem %s3, 32
        %v3763 = vld [vmem:[%s3762] sm:$0xff]
        %v3764 = vld [vmem:[%s3762 + $0x8] sm:$0xff]
        %v3765 = vld [vmem:[%s3762 + $0x10] sm:$0xff]
        %v3766 = vld [vmem:[%s3762 + $0x18] sm:$0xff]
        %v3767 = vlaneseq
        %v3768 = vshrl.u32 %v3767, 7
        %v3769 = vsub.s32 6, %v3768
        %v3770 = vrot.slane %v282, %v3769
        %v3772 = vsel %vm285, %v3760, 0
        %v3775 = vsel %vm285, %v3761, 0
        %3777 = vmatprep.subr.mxu0 0.0
        %3778 = vmatpush1.msra.mxu0 %v3763
        %3779 = vmatprep.subr.mxu0 0.0
        %3780 = vmatpush1.msra.mxu0 %v3764
        %3781 = vmatprep.subr.mxu0 0.0
        %3782 = vmatpush1.msra.mxu0 %v3765
        %3783 = vmatprep.subr.mxu0 0.0
        %3784 = vmatpush1.msra.mxu0 %v3766
        %3785 = vmatprep.subr.mxu0 0.0
        %3786 = vmatpush1.msra.mxu0 0.0
        %3787 = vmatprep.subr.mxu0 0.0
        %3788 = vmatpush1.msra.mxu0 0.0
        %3789 = vmatprep.subr.mxu0 0.0
        %3790 = vmatpush1.msra.mxu0 0.0
        %3791 = vmatprep.subr.mxu0 0.0
        %3792 = vmatpush1.msra.mxu0 0.0
        %3793 = vmatprep.subr.mxu0 0.0
        %3794 = vmatpush1.msra.mxu0 0.0
        %3795 = vmatprep.subr.mxu0 0.0
        %3796 = vmatpush1.msra.mxu0 0.0
        %3797 = vmatprep.subr.mxu0 0.0
        %3798 = vmatpush1.msra.mxu0 0.0
        %3799 = vmatprep.subr.mxu0 0.0
        %3800 = vmatpush1.msra.mxu0 0.0
        %3801 = vmatprep.subr.mxu0 0.0
        %3802 = vmatpush1.msra.mxu0 0.0
        %3803 = vmatprep.subr.mxu0 0.0
        %3804 = vmatpush1.msra.mxu0 0.0
        %3805 = vmatprep.subr.mxu0 0.0
        %3806 = vmatpush1.msra.mxu0 0.0
        %3807 = vmatprep.subr.mxu0 0.0
        %3808 = vmatpush1.msra.mxu0 0.0
        %3809 = vmatprep.subr.mxu0 0.0
        %3810 = vmatpush1.msra.mxu0 0.0
        %3811 = vmatprep.subr.mxu0 0.0
        %3812 = vmatpush1.msra.mxu0 0.0
        %3813 = vmatprep.subr.mxu0 0.0
        %3814 = vmatpush1.msra.mxu0 0.0
        %3815 = vmatprep.subr.mxu0 0.0
        %3816 = vmatpush1.msra.mxu0 0.0
        %3817 = vmatprep.subr.mxu0 0.0
        %3818 = vmatpush1.msra.mxu0 0.0
        %3819 = vmatprep.subr.mxu0 0.0
        %3820 = vmatpush1.msra.mxu0 0.0
        %3821 = vmatprep.subr.mxu0 0.0
        %3822 = vmatpush1.msra.mxu0 0.0
        %3823 = vmatprep.subr.mxu0 0.0
        %3824 = vmatpush1.msra.mxu0 0.0
        %3825 = vmatprep.subr.mxu0 0.0
        %3826 = vmatpush1.msra.mxu0 0.0
        %3827 = vmatprep.subr.mxu0 0.0
        %3828 = vmatpush1.msra.mxu0 0.0
        %3829 = vmatprep.subr.mxu0 0.0
        %3830 = vmatpush1.msra.mxu0 0.0
        %3831 = vmatprep.subr.mxu0 0.0
        %3832 = vmatpush1.msra.mxu0 0.0
        %3833 = vmatprep.subr.mxu0 0.0
        %3834 = vmatpush1.msra.mxu0 0.0
        %3835 = vmatprep.subr.mxu0 0.0
        %3836 = vmatpush1.msra.mxu0 0.0
        %3837 = vmatprep.subr.mxu0 0.0
        %3838 = vmatpush1.msra.mxu0 0.0
        %3839 = vmatprep.subr.mxu0 0.0
        %3840 = vmatpush1.msra.mxu0 0.0
        %3841 = vmatprep.mubr.f32.mxu0 0.0
        %3842 = vmatmul.mubr.f32.gmra.mrb[0].mxu0 %v3772
        %v3843 = vpop.f32.mrb[0].mxu0
        %v3844 = vadd.f32 %v3770, %v3843
        %v3845 = vpop.f32.mrb[0].mxu0
        %3846 = vmatprep.mubr.f32.mxu0 0.0
        %3847 = vmatmul.mubr.f32.gmra.mrb[0].mxu0 %v3775
        %v3848 = vpop.f32.mrb[0].mxu0
        %v3849 = vadd.f32 %v3770, %v3848
        %v3850 = vpop.f32.mrb[0].mxu0
        %3851 = vdwg.mxu0
        %v3852 = vmul.f32 %v3844, 0.5
        %v3853 = vmul.f32 %v3849, 0.5
        %v3854 = vmul.f32 %v3844, 0.70710677
        %v3855 = vmul.f32 %v3849, 0.70710677
        %v3856 = verf.f32.pop %v3854
        %v3857 = verf.f32.pop %v3855
        %v3858 = vadd.f32 %v3856, 1.0
        %v3859 = vadd.f32 %v3857, 1.0
        %v3860 = vmul.f32 %v3852, %v3858
        %v3861 = vmul.f32 %v3853, %v3859
        %s3862 = scalar_lea.vmem %s4, 64
        %v3863 = vld [vmem:[%s3862] sm:$0xff]
        %v3864 = vld [vmem:[%s3862 + $0x8] sm:$0xff]
        %v3865 = vld [vmem:[%s3862 + $0x10] sm:$0xff]
        %v3866 = vld [vmem:[%s3862 + $0x18] sm:$0xff]
        %v3867 = vld [vmem:[%s3862 + $0x20] sm:$0xff]
        %v3868 = vld [vmem:[%s3862 + $0x28] sm:$0xff]
        %v3869 = vld [vmem:[%s3862 + $0x30] sm:$0xff]
        %v3870 = vld [vmem:[%s3862 + $0x38] sm:$0xff]
        %v3872 = vsel %vm2053, %v3860, 0
        %v3875 = vsel %vm2053, %v3861, 0
        %3877 = vmatprep.subr.mxu0 0.0
        %3878 = vmatpush1.msra.mxu0 %v3863
        %3879 = vmatprep.subr.mxu0 0.0
        %3880 = vmatpush1.msra.mxu0 %v3864
        %3881 = vmatprep.subr.mxu0 0.0
        %3882 = vmatpush1.msra.mxu0 %v3865
        %3883 = vmatprep.subr.mxu0 0.0
        %3884 = vmatpush1.msra.mxu0 %v3866
        %3885 = vmatprep.subr.mxu0 0.0
        %3886 = vmatpush1.msra.mxu0 %v3867
        %3887 = vmatprep.subr.mxu0 0.0
        %3888 = vmatpush1.msra.mxu0 %v3868
        %3889 = vmatprep.subr.mxu0 0.0
        %3890 = vmatpush1.msra.mxu0 %v3869
        %3891 = vmatprep.subr.mxu0 0.0
        %3892 = vmatpush1.msra.mxu0 %v3870
        %3893 = vmatprep.subr.mxu0 0.0
        %3894 = vmatpush1.msra.mxu0 0.0
        %3895 = vmatprep.subr.mxu0 0.0
        %3896 = vmatpush1.msra.mxu0 0.0
        %3897 = vmatprep.subr.mxu0 0.0
        %3898 = vmatpush1.msra.mxu0 0.0
        %3899 = vmatprep.subr.mxu0 0.0
        %3900 = vmatpush1.msra.mxu0 0.0
        %3901 = vmatprep.subr.mxu0 0.0
        %3902 = vmatpush1.msra.mxu0 0.0
        %3903 = vmatprep.subr.mxu0 0.0
        %3904 = vmatpush1.msra.mxu0 0.0
        %3905 = vmatprep.subr.mxu0 0.0
        %3906 = vmatpush1.msra.mxu0 0.0
        %3907 = vmatprep.subr.mxu0 0.0
        %3908 = vmatpush1.msra.mxu0 0.0
        %3909 = vmatprep.subr.mxu0 0.0
        %3910 = vmatpush1.msra.mxu0 0.0
        %3911 = vmatprep.subr.mxu0 0.0
        %3912 = vmatpush1.msra.mxu0 0.0
        %3913 = vmatprep.subr.mxu0 0.0
        %3914 = vmatpush1.msra.mxu0 0.0
        %3915 = vmatprep.subr.mxu0 0.0
        %3916 = vmatpush1.msra.mxu0 0.0
        %3917 = vmatprep.subr.mxu0 0.0
        %3918 = vmatpush1.msra.mxu0 0.0
        %3919 = vmatprep.subr.mxu0 0.0
        %3920 = vmatpush1.msra.mxu0 0.0
        %3921 = vmatprep.subr.mxu0 0.0
        %3922 = vmatpush1.msra.mxu0 0.0
        %3923 = vmatprep.subr.mxu0 0.0
        %3924 = vmatpush1.msra.mxu0 0.0
        %3925 = vmatprep.subr.mxu0 0.0
        %3926 = vmatpush1.msra.mxu0 0.0
        %3927 = vmatprep.subr.mxu0 0.0
        %3928 = vmatpush1.msra.mxu0 0.0
        %3929 = vmatprep.subr.mxu0 0.0
        %3930 = vmatpush1.msra.mxu0 0.0
        %3931 = vmatprep.subr.mxu0 0.0
        %3932 = vmatpush1.msra.mxu0 0.0
        %3933 = vmatprep.subr.mxu0 0.0
        %3934 = vmatpush1.msra.mxu0 0.0
        %3935 = vmatprep.subr.mxu0 0.0
        %3936 = vmatpush1.msra.mxu0 0.0
        %3937 = vmatprep.subr.mxu0 0.0
        %3938 = vmatpush1.msra.mxu0 0.0
        %3939 = vmatprep.subr.mxu0 0.0
        %3940 = vmatpush1.msra.mxu0 0.0
        %3941 = vmatprep.mubr.f32.mxu0 0.0
        %3942 = vmatmul.mubr.f32.gmra.mrb[0].mxu0 %v3872
        %v3943 = vpop.f32.mrb[0].mxu0
        %v3944 = vadd.f32 0.0, %v3943
        %v3945 = vpop.f32.mrb[0].mxu0
        %3946 = vmatprep.mubr.f32.mxu0 0.0
        %3947 = vmatmul.mubr.f32.gmra.mrb[0].mxu0 %v3875
        %v3948 = vpop.f32.mrb[0].mxu0
        %v3949 = vadd.f32 0.0, %v3948
        %v3950 = vpop.f32.mrb[0].mxu0
        %3951 = vdwg.mxu0
        %v3952 = vadd.f32 %v3722, %v3944
        %v3953 = vadd.f32 %v3723, %v3949
        %v3954 = vlaneseq
        %v3955 = vshrl.u32 %v3954, 7
        %v3956 = vsub.s32 7, %v3955
        %v3957 = vrot.slane %v282, %v3956
        %v3958 = vadd.f32 %v3952, %v3957
        %v3959 = vadd.f32 %v3953, %v3957
        %v3960 = vsel %vm285, %v3958, 0.0
        %3961 = vadd.xlane.f32.xlu0 %v3960
        %v3962 = vpop.xlane.xlu0 %3961
        %v3963 = vsel %vm285, %v3959, 0.0
        %3964 = vadd.xlane.f32.xlu0 %v3963
        %v3965 = vpop.xlane.xlu0 %3964
        %v3966 = vmul.f32 %v3962, %v292
        %v3967 = vmul.f32 %v3965, %v292
        %v3968 = vsub.f32 %v3958, %v3966
        %v3969 = vsub.f32 %v3959, %v3967
        %v3970 = vmul.f32 %v3968, %v3968
        %v3971 = vmul.f32 %v3969, %v3969
        %v3972 = vsel %vm285, %v3970, 0.0
        %3973 = vadd.xlane.f32.xlu0 %v3972
        %v3974 = vpop.xlane.xlu0 %3973
        %v3975 = vsel %vm285, %v3971, 0.0
        %3976 = vadd.xlane.f32.xlu0 %v3975
        %v3977 = vpop.xlane.xlu0 %3976
        %v3978 = vmul.f32 %v3974, %v292
        %v3979 = vmul.f32 %v3977, %v292
        %v3980 = vadd.f32 %v3978, 1e-12
        %v3981 = vadd.f32 %v3979, 1e-12
        %v3982 = vrsqrt.pop %v3980
        %v3983 = vrsqrt.pop %v3981
        %v3984 = vmul.f32 %v3968, %v3982
        %v3985 = vmul.f32 %v3969, %v3983
        %v3986 = vlaneseq
        %v3987 = vshrl.u32 %v3986, 7
        %v3988 = vsub.s32 2, %v3987
        %v3989 = vrot.slane %v280, %v3988
        %v3990 = vmul.f32 %v3984, %v3989
        %v3991 = vmul.f32 %v3985, %v3989
        %v3992 = vlaneseq
        %v3993 = vshrl.u32 %v3992, 7
        %v3994 = vsub.s32 3, %v3993
        %v3995 = vrot.slane %v280, %v3994
        %v3996 = vadd.f32 %v3990, %v3995
        %v3997 = vadd.f32 %v3991, %v3995
        %v3998 = vld [vmem:[%s5] sm:$0xff]
        %v3999 = vld [vmem:[%s5 + $0x8] sm:$0xff]
        %v4000 = vld [vmem:[%s5 + $0x10] sm:$0xff]
        %v4001 = vld [vmem:[%s5 + $0x18] sm:$0xff]
        %v4002 = vlaneseq
        %v4003 = vshrl.u32 %v4002, 7
        %v4004 = vsub.s32 4, %v4003
        %v4005 = vrot.slane %v280, %v4004
        %v4007 = vsel %vm285, %v3996, 0
        %v4010 = vsel %vm285, %v3997, 0
        %4012 = vmatprep.subr.mxu0 0.0
        %4013 = vmatpush1.msra.mxu0 %v3998
        %4014 = vmatprep.subr.mxu0 0.0
        %4015 = vmatpush1.msra.mxu0 %v3999
        %4016 = vmatprep.subr.mxu0 0.0
        %4017 = vmatpush1.msra.mxu0 %v4000
        %4018 = vmatprep.subr.mxu0 0.0
        %4019 = vmatpush1.msra.mxu0 %v4001
        %4020 = vmatprep.subr.mxu0 0.0
        %4021 = vmatpush1.msra.mxu0 0.0
        %4022 = vmatprep.subr.mxu0 0.0
        %4023 = vmatpush1.msra.mxu0 0.0
        %4024 = vmatprep.subr.mxu0 0.0
        %4025 = vmatpush1.msra.mxu0 0.0
        %4026 = vmatprep.subr.mxu0 0.0
        %4027 = vmatpush1.msra.mxu0 0.0
        %4028 = vmatprep.subr.mxu0 0.0
        %4029 = vmatpush1.msra.mxu0 0.0
        %4030 = vmatprep.subr.mxu0 0.0
        %4031 = vmatpush1.msra.mxu0 0.0
        %4032 = vmatprep.subr.mxu0 0.0
        %4033 = vmatpush1.msra.mxu0 0.0
        %4034 = vmatprep.subr.mxu0 0.0
        %4035 = vmatpush1.msra.mxu0 0.0
        %4036 = vmatprep.subr.mxu0 0.0
        %4037 = vmatpush1.msra.mxu0 0.0
        %4038 = vmatprep.subr.mxu0 0.0
        %4039 = vmatpush1.msra.mxu0 0.0
        %4040 = vmatprep.subr.mxu0 0.0
        %4041 = vmatpush1.msra.mxu0 0.0
        %4042 = vmatprep.subr.mxu0 0.0
        %4043 = vmatpush1.msra.mxu0 0.0
        %4044 = vmatprep.subr.mxu0 0.0
        %4045 = vmatpush1.msra.mxu0 0.0
        %4046 = vmatprep.subr.mxu0 0.0
        %4047 = vmatpush1.msra.mxu0 0.0
        %4048 = vmatprep.subr.mxu0 0.0
        %4049 = vmatpush1.msra.mxu0 0.0
        %4050 = vmatprep.subr.mxu0 0.0
        %4051 = vmatpush1.msra.mxu0 0.0
        %4052 = vmatprep.subr.mxu0 0.0
        %4053 = vmatpush1.msra.mxu0 0.0
        %4054 = vmatprep.subr.mxu0 0.0
        %4055 = vmatpush1.msra.mxu0 0.0
        %4056 = vmatprep.subr.mxu0 0.0
        %4057 = vmatpush1.msra.mxu0 0.0
        %4058 = vmatprep.subr.mxu0 0.0
        %4059 = vmatpush1.msra.mxu0 0.0
        %4060 = vmatprep.subr.mxu0 0.0
        %4061 = vmatpush1.msra.mxu0 0.0
        %4062 = vmatprep.subr.mxu0 0.0
        %4063 = vmatpush1.msra.mxu0 0.0
        %4064 = vmatprep.subr.mxu0 0.0
        %4065 = vmatpush1.msra.mxu0 0.0
        %4066 = vmatprep.subr.mxu0 0.0
        %4067 = vmatpush1.msra.mxu0 0.0
        %4068 = vmatprep.subr.mxu0 0.0
        %4069 = vmatpush1.msra.mxu0 0.0
        %4070 = vmatprep.subr.mxu0 0.0
        %4071 = vmatpush1.msra.mxu0 0.0
        %4072 = vmatprep.subr.mxu0 0.0
        %4073 = vmatpush1.msra.mxu0 0.0
        %4074 = vmatprep.subr.mxu0 0.0
        %4075 = vmatpush1.msra.mxu0 0.0
        %4076 = vmatprep.mubr.f32.mxu0 0.0
        %4077 = vmatmul.mubr.f32.gmra.mrb[0].mxu0 %v4007
        %v4078 = vpop.f32.mrb[0].mxu0
        %v4079 = vadd.f32 %v4005, %v4078
        %v4080 = vpop.f32.mrb[0].mxu0
        %4081 = vmatprep.mubr.f32.mxu0 0.0
        %4082 = vmatmul.mubr.f32.gmra.mrb[0].mxu0 %v4010
        %v4083 = vpop.f32.mrb[0].mxu0
        %v4084 = vadd.f32 %v4005, %v4083
        %v4085 = vpop.f32.mrb[0].mxu0
        %4086 = vdwg.mxu0
        %v4087 = vmul.f32 %v4079, 0.5
        %v4088 = vmul.f32 %v4084, 0.5
        %v4089 = vmul.f32 %v4079, 0.70710677
        %v4090 = vmul.f32 %v4084, 0.70710677
        %v4091 = verf.f32.pop %v4089
        %v4092 = verf.f32.pop %v4090
        %v4093 = vadd.f32 %v4091, 1.0
        %v4094 = vadd.f32 %v4092, 1.0
        %v4095 = vmul.f32 %v4087, %v4093
        %v4096 = vmul.f32 %v4088, %v4094
        %v4097 = vsel %vm285, %v4095, 0.0
        %4098 = vadd.xlane.f32.xlu0 %v4097
        %v4099 = vpop.xlane.xlu0 %4098
        %v4100 = vsel %vm285, %v4096, 0.0
        %4101 = vadd.xlane.f32.xlu0 %v4100
        %v4102 = vpop.xlane.xlu0 %4101
        %v4103 = vmul.f32 %v4099, %v292
        %v4104 = vmul.f32 %v4102, %v292
        %v4105 = vsub.f32 %v4095, %v4103
        %v4106 = vsub.f32 %v4096, %v4104
        %v4107 = vmul.f32 %v4105, %v4105
        %v4108 = vmul.f32 %v4106, %v4106
        %v4109 = vsel %vm285, %v4107, 0.0
        %4110 = vadd.xlane.f32.xlu0 %v4109
        %v4111 = vpop.xlane.xlu0 %4110
        %v4112 = vsel %vm285, %v4108, 0.0
        %4113 = vadd.xlane.f32.xlu0 %v4112
        %v4114 = vpop.xlane.xlu0 %4113
        %v4115 = vmul.f32 %v4111, %v292
        %v4116 = vmul.f32 %v4114, %v292
        %v4117 = vadd.f32 %v4115, 1e-12
        %v4118 = vadd.f32 %v4116, 1e-12
        %v4119 = vrsqrt.pop %v4117
        %v4120 = vrsqrt.pop %v4118
        %v4121 = vmul.f32 %v4105, %v4119
        %v4122 = vmul.f32 %v4106, %v4120
        %v4123 = vlaneseq
        %v4124 = vshrl.u32 %v4123, 7
        %v4125 = vsub.s32 5, %v4124
        %v4126 = vrot.slane %v280, %v4125
        %v4127 = vmul.f32 %v4121, %v4126
        %v4128 = vmul.f32 %v4122, %v4126
        %v4129 = vlaneseq
        %v4130 = vshrl.u32 %v4129, 7
        %v4131 = vsub.s32 6, %v4130
        %v4132 = vrot.slane %v280, %v4131
        %v4133 = vadd.f32 %v4127, %v4132
        %v4134 = vadd.f32 %v4128, %v4132
        %v4135 = vld [vmem:[%s6] sm:$0xff]
        %v4136 = vld [vmem:[%s6 + $0x8] sm:$0xff]
        %v4137 = vld [vmem:[%s6 + $0x10] sm:$0xff]
        %v4138 = vld [vmem:[%s6 + $0x18] sm:$0xff]
        %v4139 = vlaneseq
        %v4140 = vshrl.u32 %v4139, 7
        %v4141 = vsub.s32 7, %v4140
        %v4142 = vrot.slane %v280, %v4141
        %v4144 = vsel %vm285, %v4133, 0
        %v4147 = vsel %vm285, %v4134, 0
        %4149 = vmatprep.subr.mxu0 0.0
        %4150 = vmatpush1.msra.mxu0 %v4135
        %4151 = vmatprep.subr.mxu0 0.0
        %4152 = vmatpush1.msra.mxu0 %v4136
        %4153 = vmatprep.subr.mxu0 0.0
        %4154 = vmatpush1.msra.mxu0 %v4137
        %4155 = vmatprep.subr.mxu0 0.0
        %4156 = vmatpush1.msra.mxu0 %v4138
        %4157 = vmatprep.subr.mxu0 0.0
        %4158 = vmatpush1.msra.mxu0 0.0
        %4159 = vmatprep.subr.mxu0 0.0
        %4160 = vmatpush1.msra.mxu0 0.0
        %4161 = vmatprep.subr.mxu0 0.0
        %4162 = vmatpush1.msra.mxu0 0.0
        %4163 = vmatprep.subr.mxu0 0.0
        %4164 = vmatpush1.msra.mxu0 0.0
        %4165 = vmatprep.subr.mxu0 0.0
        %4166 = vmatpush1.msra.mxu0 0.0
        %4167 = vmatprep.subr.mxu0 0.0
        %4168 = vmatpush1.msra.mxu0 0.0
        %4169 = vmatprep.subr.mxu0 0.0
        %4170 = vmatpush1.msra.mxu0 0.0
        %4171 = vmatprep.subr.mxu0 0.0
        %4172 = vmatpush1.msra.mxu0 0.0
        %4173 = vmatprep.subr.mxu0 0.0
        %4174 = vmatpush1.msra.mxu0 0.0
        %4175 = vmatprep.subr.mxu0 0.0
        %4176 = vmatpush1.msra.mxu0 0.0
        %4177 = vmatprep.subr.mxu0 0.0
        %4178 = vmatpush1.msra.mxu0 0.0
        %4179 = vmatprep.subr.mxu0 0.0
        %4180 = vmatpush1.msra.mxu0 0.0
        %4181 = vmatprep.subr.mxu0 0.0
        %4182 = vmatpush1.msra.mxu0 0.0
        %4183 = vmatprep.subr.mxu0 0.0
        %4184 = vmatpush1.msra.mxu0 0.0
        %4185 = vmatprep.subr.mxu0 0.0
        %4186 = vmatpush1.msra.mxu0 0.0
        %4187 = vmatprep.subr.mxu0 0.0
        %4188 = vmatpush1.msra.mxu0 0.0
        %4189 = vmatprep.subr.mxu0 0.0
        %4190 = vmatpush1.msra.mxu0 0.0
        %4191 = vmatprep.subr.mxu0 0.0
        %4192 = vmatpush1.msra.mxu0 0.0
        %4193 = vmatprep.subr.mxu0 0.0
        %4194 = vmatpush1.msra.mxu0 0.0
        %4195 = vmatprep.subr.mxu0 0.0
        %4196 = vmatpush1.msra.mxu0 0.0
        %4197 = vmatprep.subr.mxu0 0.0
        %4198 = vmatpush1.msra.mxu0 0.0
        %4199 = vmatprep.subr.mxu0 0.0
        %4200 = vmatpush1.msra.mxu0 0.0
        %4201 = vmatprep.subr.mxu0 0.0
        %4202 = vmatpush1.msra.mxu0 0.0
        %4203 = vmatprep.subr.mxu0 0.0
        %4204 = vmatpush1.msra.mxu0 0.0
        %4205 = vmatprep.subr.mxu0 0.0
        %4206 = vmatpush1.msra.mxu0 0.0
        %4207 = vmatprep.subr.mxu0 0.0
        %4208 = vmatpush1.msra.mxu0 0.0
        %4209 = vmatprep.subr.mxu0 0.0
        %4210 = vmatpush1.msra.mxu0 0.0
        %4211 = vmatprep.subr.mxu0 0.0
        %4212 = vmatpush1.msra.mxu0 0.0
        %4213 = vmatprep.mubr.f32.mxu0 0.0
        %4214 = vmatmul.mubr.f32.gmra.mrb[0].mxu0 %v4144
        %v4215 = vpop.f32.mrb[0].mxu0
        %v4216 = vadd.f32 %v4142, %v4215
        %v4217 = vpop.f32.mrb[0].mxu0
        %4218 = vmatprep.mubr.f32.mxu0 0.0
        %4219 = vmatmul.mubr.f32.gmra.mrb[0].mxu0 %v4147
        %v4220 = vpop.f32.mrb[0].mxu0
        %v4221 = vadd.f32 %v4142, %v4220
        %v4222 = vpop.f32.mrb[0].mxu0
        %4223 = vdwg.mxu0
        %4224 = vst [vmem:[%s272] sm:$0xff] %v4216
        %4225 = vst [vmem:[%s272 + $0x8] sm:$0xff] %v4221
        %s4226 = sand.u32 %s181, 1
        %s4227 = scalar_lea.sflag [#allocation3], %s4226
        %s4228 = sand.u32 %s181, 1
        %s4229 = smul.addr %s4228, 16
        %s4230 = scalar_lea.vmem [#allocation2], %s4229
        // Predicated region
        $region49: #{roberta_prelayernorm_mlm.1} parent=47 // pred_check
          %p4231 = pneg %p191
        $region50: #{roberta_prelayernorm_mlm.1} parent=47 // pred_check_branch
          %4233 = sbr.rel (%p4231) target = $region52
        $region51: #{roberta_prelayernorm_mlm.1} parent=47 // pred_region
          %s4234 = smul.u32 2, %s21
          %s4236 = ssub.s32 256, 256
          %4237 = vsyncadd %s4227, %s4236
          %s4238 = smul.addr %s4234, 128
          %s4239 = scalar_lea.hbm %s7, %s4238
          %s4240 = sshll.u32 %s4230, 4
          %s4241 = int_to_ptr.vmem [resolvable:$true] %s4240
          %4246 = dma.vmem_to_hbm [thread:$0]  %s4241, 256, %s4239, %s4227, 128, 128, 8
        $region52: #{roberta_prelayernorm_mlm.1} parent=47 // pred_fallthru
          _
      $region48: #{roberta_prelayernorm_mlm.1} parent=5 // pred_fallthru
        _
      %p4247 = scmp.le.s32.totalorder 2, %s16
      // Predicated region
      $region53: #{roberta_prelayernorm_mlm.1} parent=5 // pred_check
        %p4248 = pneg %p4247
      $region54: #{roberta_prelayernorm_mlm.1} parent=5 // pred_check_branch
        %4250 = sbr.rel (%p4248) target = $region56
      $region55: #{roberta_prelayernorm_mlm.1} parent=5 // pred_region
        %s4251 = ssub.s32 %s16, 2
        // Predicated region
        $region57: #{roberta_prelayernorm_mlm.1} parent=55 // pred_check
          %p4252 = pneg %p197
        $region58: #{roberta_prelayernorm_mlm.1} parent=55 // pred_check_branch
          %4254 = sbr.rel (%p4252) target = $region60
        $region59: #{roberta_prelayernorm_mlm.1} parent=55 // pred_region
          %s4255 = sand.u32 %s182, 1
          %s4256 = scalar_lea.sflag [#allocation3], %s4255
          %s4257 = sand.u32 %s182, 1
          %s4258 = smul.addr %s4257, 16
          %s4259 = scalar_lea.vmem [#allocation2], %s4258
          %4260 = dma.done %s4256, 256
        $region60: #{roberta_prelayernorm_mlm.1} parent=55 // pred_fallthru
          _
      $region56: #{roberta_prelayernorm_mlm.1} parent=5 // pred_fallthru
        _
    $region6: #{roberta_prelayernorm_mlm.1} parent=1 // loop_footer
      %s20 = sadd.s32 1, %s16
    $region7: #{roberta_prelayernorm_mlm.1} parent=1 // loop_footer_branch
      %15 = sbr.rel target = $region3
    $region8: #{roberta_prelayernorm_mlm.1} parent=1 // loop_exit
      _
    %4261 = vsyncpa [#allocation3], 1
    %s4262 = scalar_lea.sflag [#allocation3], 1
    %4263 = vsyncpa %s4262, 1

</llo_original>
